<compile_context>
chip_gen: v6e
topology: v6e:2x2x1
jax: 0.10.0
libtpu: 0.0.40
codegen_flags: <defaults>
</compile_context>

<pallas_src>
import math

import jax
import jax.numpy as jnp
from jax.experimental import pallas as pl
from jax.experimental.pallas import tpu as pltpu

# ----------------------------- model dims (small synthetic ViT) --------------
IMAGE_SIZE = 16          # model.visual.image_size
PATCH = 8                # patch size (stride of conv1)
GRID = IMAGE_SIZE // PATCH
N_PATCH = GRID * GRID
SEQ = N_PATCH + 1        # +1 class token
SEQ_PAD = 8              # token rows per image, padded to one sublane tile
CPP = 3 * PATCH * PATCH  # flattened (C, ph, pw) patch row = 192
WIDTH = 64               # transformer width
WPAD = 128               # lane-padded width (zero-padded cols 64..127)
HEADS = 2
HEAD_DIM = WIDTH // HEADS
HPAD = 128               # lane-padded per-head dim
QKVW = HEADS * 3 * HPAD  # 768: [Q_h0 K_h0 V_h0 Q_h1 K_h1 V_h1], each 128 lanes
MLP = 4 * WIDTH          # 256
LAYERS = 2
EMBED = 32               # output embedding dim (visual.proj)
EPAD = 128               # lane-padded embedding dim

BBLK_MAX = 16            # images per grid step -> 16*8 = 128 matmul rows

_WEIGHT_ORDER = (
    "conv_w", "ln_pre_g", "ln_pre_b",
    "ln1_g", "ln1_b", "qkv_w", "qkv_b", "out_w", "out_b",
    "ln2_g", "ln2_b", "fc_w", "fc_b", "pj_w", "pj_b",
    "ln_post_g", "ln_post_b", "proj",
)


def _cdiv(a, b):
    return -(-a // b)


# ----------------------------- in-kernel helpers ------------------------------
def _mm(a, b):
    """a @ b; activation cast to bf16, weight already bf16, f32 accumulation."""
    return jnp.dot(a.astype(jnp.bfloat16), b, preferred_element_type=jnp.float32)


def _mm_t(a, b):
    """a @ b.T (contract last dims); both operands already bf16, f32 acc."""
    return jax.lax.dot_general(
        a, b, (((1,), (1,)), ((), ())), preferred_element_type=jnp.float32)


def _layernorm(x, g, b, eps=1e-5):
    """LayerNorm over the REAL `WIDTH` columns of a lane-padded (rows, WPAD) slab.

    Padded columns of x are exactly zero, so E[x] and E[x^2] over WIDTH are
    correct without a mask; padded gamma/beta keep padded output columns zero.
    """
    mean = jnp.sum(x, axis=-1, keepdims=True) * (1.0 / WIDTH)
    msq = jnp.sum(x * x, axis=-1, keepdims=True) * (1.0 / WIDTH)
    var = msq - mean * mean
    return (x - mean) * jax.lax.rsqrt(var + eps) * g + b


def _gelu(x):
    # TODO(synk): open_clip's nn.GELU is erf-based; tanh approximation used since
    # erf is not guaranteed to lower in Mosaic (numerically ~1e-3 close).
    c = math.sqrt(2.0 / math.pi)
    return 0.5 * x * (1.0 + jnp.tanh(c * (x + 0.044715 * x * x * x)))


# ----------------------------- fused ViT kernel -------------------------------
def _clip_vit_kernel(
    patches_ref,                                 # (ROWS, CPP) f32
    embed_add_ref,                               # (ROWS, WPAD) f32
    attn_bias_ref,                               # (ROWS, ROWS) f32 additive mask
    conv_w_ref,                                  # (CPP, WPAD) bf16
    ln_pre_g_ref, ln_pre_b_ref,                  # (1, WPAD) f32
    ln1_g_ref, ln1_b_ref,                        # (L, 1, WPAD) f32
    qkv_w_ref, qkv_b_ref,                        # (L, WPAD, QKVW) bf16 / (L,1,QKVW) f32
    out_w_ref, out_b_ref,                        # (L, HEADS*128, WPAD) bf16 / (L,1,WPAD) f32
    ln2_g_ref, ln2_b_ref,                        # (L, 1, WPAD) f32
    fc_w_ref, fc_b_ref,                          # (L, WPAD, MLP) bf16 / (L,1,MLP) f32
    pj_w_ref, pj_b_ref,                          # (L, MLP, WPAD) bf16 / (L,1,WPAD) f32
    ln_post_g_ref, ln_post_b_ref,                # (1, WPAD) f32
    proj_ref,                                    # (WPAD, EPAD) bf16
    o_ref,                                       # (1, ROWS, EPAD) f32
):
    # patch embedding (+ folded Normalize, class token, positional embedding)
    x = _mm(patches_ref[...], conv_w_ref[...]) + embed_add_ref[...]   # (ROWS, WPAD)
    x = _layernorm(x, ln_pre_g_ref[...], ln_pre_b_ref[...])

    attn_bias = attn_bias_ref[...]                                    # (ROWS, ROWS)
    scale = 1.0 / math.sqrt(HEAD_DIM)

    # LAYERS=2 -> static unroll is fine.
    # TODO(synk): switch to lax.fori_loop over the stacked (L, ...) refs if
    # LAYERS is ever scaled up (code size / vreg live-range control).
    for l in range(LAYERS):
        # ---- block-diagonal multi-head self-attention over the image slab ----
        h = _layernorm(x, ln1_g_ref[l], ln1_b_ref[l])
        qkv = (_mm(h, qkv_w_ref[l]) + qkv_b_ref[l]).astype(jnp.bfloat16)  # (ROWS, QKVW)
        w_out = out_w_ref[l]                                          # (HEADS*128, WPAD)
        attn_out = None
        for head in range(HEADS):                                     # unrolled
            base = head * 3 * HPAD                                    # 128-lane aligned
            q = qkv[:, base:base + HPAD]                              # (ROWS, 128)
            k = qkv[:, base + HPAD:base + 2 * HPAD]
            v = qkv[:, base + 2 * HPAD:base + 3 * HPAD]
            s = _mm_t(q, k) * scale + attn_bias                       # (ROWS, ROWS)
            s = s - jnp.max(s, axis=-1, keepdims=True)
            p = jnp.exp(s)
            p = p * pl.reciprocal(jnp.sum(p, axis=-1, keepdims=True), approx=True)
            o_h = _mm(p, v)                                           # (ROWS, 128)
            # head-concat + out_proj == sum over per-head (128, WPAD) weight slabs
            contrib = _mm(o_h, w_out[head * HPAD:(head + 1) * HPAD, :])
            attn_out = contrib if attn_out is None else attn_out + contrib
        x = x + attn_out + out_b_ref[l]                               # residual

        # ---- MLP ----
        h = _layernorm(x, ln2_g_ref[l], ln2_b_ref[l])
        h = _gelu(_mm(h, fc_w_ref[l]) + fc_b_ref[l])                  # (ROWS, MLP)
        x = x + _mm(h, pj_w_ref[l]) + pj_b_ref[l]                     # residual

    # ---- head: ln_post -> proj -> F.normalize on ALL rows (lane/sublane dense;
    # the wrapper picks out the cls rows and the real EMBED lanes) ----
    x = _layernorm(x, ln_post_g_ref[...], ln_post_b_ref[...])
    emb = _mm(x, proj_ref[...])                                       # (ROWS, EPAD)
    n2 = jnp.sum(emb * emb, axis=-1, keepdims=True)
    inv = jax.lax.rsqrt(jnp.maximum(n2, 1e-24))                       # eps=1e-12 clamp
    o_ref[0] = (emb * inv).astype(o_ref.dtype)


# ----------------------------- parameters ------------------------------------
def _normal(key, shape, scale=0.02):
    return scale * jax.random.normal(key, shape, dtype=jnp.float32)


def _pad_lanes(x, target=WPAD):
    return jnp.pad(x, [(0, 0)] * (x.ndim - 1) + [(0, target - x.shape[-1])])


def init_params(key):
    keys = iter(jax.random.split(key, 4 + 8 * LAYERS))
    mean = jnp.array([0.48145466, 0.4578275, 0.40821073], jnp.float32)
    std = jnp.array([0.26862954, 0.26130258, 0.27577711], jnp.float32)

    # conv1 (bias=False in open_clip ViT); fold transforms.Normalize into it:
    #   conv((x - mean) / std) == (w / std) * x  -  sum(w * mean / std)
    conv_w = _normal(next(keys), (WIDTH, 3, PATCH, PATCH))
    w_scaled = conv_w / std[None, :, None, None]
    conv_w_folded = w_scaled.reshape(WIDTH, CPP).T                          # (CPP, W)
    conv_b_folded = -(w_scaled * mean[None, :, None, None]).sum(axis=(1, 2, 3))

    class_embedding = _normal(next(keys), (WIDTH,))
    pos_embedding = _normal(next(keys), (SEQ, WIDTH))
    # Token row 0 of each image's patch slab is all-zero (class-token stand-in)
    # and rows SEQ..SEQ_PAD-1 are zero padding, so fold cls+pos[0] into row 0,
    # conv_b+pos[i] into the patch rows, and leave the pad rows at zero.
    embed_add = jnp.zeros((SEQ_PAD, WIDTH), jnp.float32)
    embed_add = embed_add.at[0].set(class_embedding + pos_embedding[0])
    embed_add = embed_add.at[1:SEQ].set(conv_b_folded[None, :] + pos_embedding[1:])

    proj = _normal(next(keys), (WIDTH, EMBED))

    ones_pad = _pad_lanes(jnp.ones((1, WIDTH), jnp.float32))
    zeros_pad = jnp.zeros((1, WPAD), jnp.float32)

    params = {
        "conv_w": _pad_lanes(conv_w_folded).astype(jnp.bfloat16),     # (CPP, WPAD)
        "embed_add": _pad_lanes(embed_add),                           # (SEQ_PAD, WPAD)
        "ln_pre_g": ones_pad, "ln_pre_b": zeros_pad,
        "ln_post_g": ones_pad, "ln_post_b": zeros_pad,
        "proj": jnp.pad(proj, ((0, WPAD - WIDTH), (0, EPAD - EMBED))
                        ).astype(jnp.bfloat16),                       # (WPAD, EPAD)
    }

    per = {k: [] for k in ("ln1_g", "ln1_b", "qkv_w", "qkv_b", "out_w", "out_b",
                           "ln2_g", "ln2_b", "fc_w", "fc_b", "pj_w", "pj_b")}
    HD = HEAD_DIM
    for _ in range(LAYERS):
        # Weights stored transposed (kernel does x @ W; PyTorch Linear is x @ W^T),
        # zero-padded so every activation-touching dim is 128-lane/sublane aligned,
        # and large weights pre-cast to bfloat16.
        per["ln1_g"].append(ones_pad)
        per["ln1_b"].append(zeros_pad)

        w_qkv = _normal(next(keys), (WIDTH, 3 * WIDTH))
        b_qkv = _normal(next(keys), (3 * WIDTH,))
        q_w, k_w, v_w = jnp.split(w_qkv, 3, axis=1)
        q_b, k_b, v_b = jnp.split(b_qkv, 3)
        w_slabs, b_slabs = [], []
        for h in range(HEADS):
            sl = slice(h * HD, (h + 1) * HD)
            for wm, bm in ((q_w, q_b), (k_w, k_b), (v_w, v_b)):
                w_slabs.append(jnp.pad(wm[:, sl],
                                       ((0, WPAD - WIDTH), (0, HPAD - HD))))
                b_slabs.append(jnp.pad(bm[sl], (0, HPAD - HD)))
        per["qkv_w"].append(jnp.concatenate(w_slabs, axis=1).astype(jnp.bfloat16))
        per["qkv_b"].append(jnp.concatenate(b_slabs)[None, :])        # (1, QKVW) f32

        w_out = _normal(next(keys), (WIDTH, WIDTH))
        o_slabs = [jnp.pad(w_out[h * HD:(h + 1) * HD, :],
                           ((0, HPAD - HD), (0, WPAD - WIDTH)))
                   for h in range(HEADS)]
        per["out_w"].append(jnp.concatenate(o_slabs, axis=0).astype(jnp.bfloat16))
        per["out_b"].append(_pad_lanes(_normal(next(keys), (1, WIDTH))))

        per["ln2_g"].append(ones_pad)
        per["ln2_b"].append(zeros_pad)
        per["fc_w"].append(jnp.pad(_normal(next(keys), (WIDTH, MLP)),
                                   ((0, WPAD - WIDTH), (0, 0))).astype(jnp.bfloat16))
        per["fc_b"].append(_normal(next(keys), (1, MLP)))
        per["pj_w"].append(_pad_lanes(_normal(next(keys), (MLP, WIDTH))
                                      ).astype(jnp.bfloat16))
        per["pj_b"].append(_pad_lanes(_normal(next(keys), (1, WIDTH))))
    for k, v in per.items():
        params[k] = jnp.stack(v, axis=0)
    return params


# ----------------------------- forward (encode_images) -----------------------
def _full_spec(shape):
    nd = len(shape)
    return pl.BlockSpec(shape, lambda b, _nd=nd: (0,) * _nd)


@jax.jit
def encode_images(params, images):
    """images: (B, 3, H, W) float32 in [0, 1] (NCHW) -> (B, EMBED) unit-norm."""
    B = images.shape[0]
    # TODO(synk): perceptor's resize (resize_right, antialiased) approximated
    # with plain bilinear jax.image.resize.
    x = jax.image.resize(images, (B, 3, IMAGE_SIZE, IMAGE_SIZE), method="bilinear")
    # patchify (== stride-PATCH conv): rows are (C, ph, pw) flattened
    x = x.reshape(B, 3, GRID, PATCH, GRID, PATCH)
    patches = x.transpose(0, 2, 4, 1, 3, 5).reshape(B, N_PATCH, CPP)
    # token-pad each image to SEQ_PAD rows: row 0 = zero cls stand-in (its
    # embedding lives in embed_add), rows SEQ..SEQ_PAD-1 = zero padding tokens.
    patches = jnp.pad(patches, ((0, 0), (1, SEQ_PAD - 1 - N_PATCH), (0, 0)))

    # --- batch blocking: fill the matmul M dimension, keep >=2 parallel steps ---
    nsteps = max(_cdiv(B, BBLK_MAX), 2 if B >= 2 else 1)
    bblk = _cdiv(B, nsteps)
    nsteps = _cdiv(B, bblk)
    b_pad = nsteps * bblk
    rows = bblk * SEQ_PAD
    patches = jnp.pad(patches, ((0, b_pad - B), (0, 0), (0, 0)))
    patches = patches.reshape(b_pad * SEQ_PAD, CPP)

    embed_add = jnp.tile(params["embed_add"], (bblk, 1))              # (rows, WPAD)

    # block-diagonal attention mask: attend only within the same image and only
    # to real (non-padding) token columns.
    r = jnp.arange(rows)
    same_img = (r[:, None] // SEQ_PAD) == (r[None, :] // SEQ_PAD)
    valid_col = (r[None, :] % SEQ_PAD) < SEQ
    attn_bias = jnp.where(same_img & valid_col, 0.0, -1e30).astype(jnp.float32)

    weights = [params[k] for k in _WEIGHT_ORDER]
    out = pl.pallas_call(
        _clip_vit_kernel,
        out_shape=jax.ShapeDtypeStruct((nsteps, rows, EPAD), jnp.float32),
        grid=(nsteps,),
        in_specs=[pl.BlockSpec((rows, CPP), lambda b: (b, 0)),
                  pl.BlockSpec((rows, WPAD), lambda b: (0, 0)),
                  pl.BlockSpec((rows, rows), lambda b: (0, 0))]
                 + [_full_spec(w.shape) for w in weights],
        out_specs=pl.BlockSpec((1, rows, EPAD), lambda b: (b, 0, 0)),
        compiler_params=pltpu.CompilerParams(
            dimension_semantics=("parallel",)),   # both TCs on v7x
    )(patches, embed_add, attn_bias, *weights)

    # pick the cls row of each image and the real embedding lanes
    cls = out.reshape(b_pad * SEQ_PAD, EPAD)[::SEQ_PAD]               # (b_pad, EPAD)
    return cls[:B, :EMBED]


# ----------------------------- main -------------------------------------------
if __name__ == "__main__":
    key = jax.random.PRNGKey(0)
    pkey, xkey = jax.random.split(key)
    params = init_params(pkey)
    images = jax.random.uniform(xkey, (2, 3, 24, 24), dtype=jnp.float32)  # NCHW in [0,1]

    feats = jax.block_until_ready(encode_images(params, images))

    assert feats.shape == (2, EMBED), feats.shape
    assert bool(jnp.all(jnp.isfinite(feats)))
    norms = jnp.linalg.norm(feats, axis=-1)
    assert bool(jnp.allclose(norms, 1.0, atol=1e-4)), norms
    print("KERNEL_OK")
</pallas_src>

<mosaic_0001>
module attributes {stable_mosaic.version = 11 : i64} {
  func.func @_clip_vit_kernel(%arg0: i32, %arg1: memref<8x192xf32, #tpu.memory_space<vmem>>, %arg2: memref<8x128xf32, #tpu.memory_space<vmem>>, %arg3: memref<8x8xf32, #tpu.memory_space<vmem>>, %arg4: memref<192x128xbf16, #tpu.memory_space<vmem>>, %arg5: memref<1x128xf32, #tpu.memory_space<vmem>>, %arg6: memref<1x128xf32, #tpu.memory_space<vmem>>, %arg7: memref<2x1x128xf32, #tpu.memory_space<vmem>>, %arg8: memref<2x1x128xf32, #tpu.memory_space<vmem>>, %arg9: memref<2x128x768xbf16, #tpu.memory_space<vmem>>, %arg10: memref<2x1x768xf32, #tpu.memory_space<vmem>>, %arg11: memref<2x256x128xbf16, #tpu.memory_space<vmem>>, %arg12: memref<2x1x128xf32, #tpu.memory_space<vmem>>, %arg13: memref<2x1x128xf32, #tpu.memory_space<vmem>>, %arg14: memref<2x1x128xf32, #tpu.memory_space<vmem>>, %arg15: memref<2x128x256xbf16, #tpu.memory_space<vmem>>, %arg16: memref<2x1x256xf32, #tpu.memory_space<vmem>>, %arg17: memref<2x256x128xbf16, #tpu.memory_space<vmem>>, %arg18: memref<2x1x128xf32, #tpu.memory_space<vmem>>, %arg19: memref<1x128xf32, #tpu.memory_space<vmem>>, %arg20: memref<1x128xf32, #tpu.memory_space<vmem>>, %arg21: memref<128x128xbf16, #tpu.memory_space<vmem>>, %arg22: memref<1x8x128xf32, #tpu.memory_space<vmem>>) attributes {dimension_semantics = [#tpu.dimension_semantics<parallel>], iteration_bounds = array<i64: 2>, scalar_prefetch = 0 : i64, scratch_operands = 0 : i64, tpu.core_type = #tpu.core_type<tc>, window_params = [{transform_indices = @transform_0, window_bounds = array<i64: 8, 192>}, {pipeline_mode = #tpu.pipeline_mode<synchronous>, transform_indices = @transform_1, window_bounds = array<i64: 8, 128>}, {pipeline_mode = #tpu.pipeline_mode<synchronous>, transform_indices = @transform_2, window_bounds = array<i64: 8, 8>}, {pipeline_mode = #tpu.pipeline_mode<synchronous>, transform_indices = @transform_3, window_bounds = array<i64: 192, 128>}, {pipeline_mode = #tpu.pipeline_mode<synchronous>, transform_indices = @transform_4, window_bounds = array<i64: 1, 128>}, {pipeline_mode = #tpu.pipeline_mode<synchronous>, transform_indices = @transform_5, window_bounds = array<i64: 1, 128>}, {pipeline_mode = #tpu.pipeline_mode<synchronous>, transform_indices = @transform_6, window_bounds = array<i64: 2, 1, 128>}, {pipeline_mode = #tpu.pipeline_mode<synchronous>, transform_indices = @transform_7, window_bounds = array<i64: 2, 1, 128>}, {pipeline_mode = #tpu.pipeline_mode<synchronous>, transform_indices = @transform_8, window_bounds = array<i64: 2, 128, 768>}, {pipeline_mode = #tpu.pipeline_mode<synchronous>, transform_indices = @transform_9, window_bounds = array<i64: 2, 1, 768>}, {pipeline_mode = #tpu.pipeline_mode<synchronous>, transform_indices = @transform_10, window_bounds = array<i64: 2, 256, 128>}, {pipeline_mode = #tpu.pipeline_mode<synchronous>, transform_indices = @transform_11, window_bounds = array<i64: 2, 1, 128>}, {pipeline_mode = #tpu.pipeline_mode<synchronous>, transform_indices = @transform_12, window_bounds = array<i64: 2, 1, 128>}, {pipeline_mode = #tpu.pipeline_mode<synchronous>, transform_indices = @transform_13, window_bounds = array<i64: 2, 1, 128>}, {pipeline_mode = #tpu.pipeline_mode<synchronous>, transform_indices = @transform_14, window_bounds = array<i64: 2, 128, 256>}, {pipeline_mode = #tpu.pipeline_mode<synchronous>, transform_indices = @transform_15, window_bounds = array<i64: 2, 1, 256>}, {pipeline_mode = #tpu.pipeline_mode<synchronous>, transform_indices = @transform_16, window_bounds = array<i64: 2, 256, 128>}, {pipeline_mode = #tpu.pipeline_mode<synchronous>, transform_indices = @transform_17, window_bounds = array<i64: 2, 1, 128>}, {pipeline_mode = #tpu.pipeline_mode<synchronous>, transform_indices = @transform_18, window_bounds = array<i64: 1, 128>}, {pipeline_mode = #tpu.pipeline_mode<synchronous>, transform_indices = @transform_19, window_bounds = array<i64: 1, 128>}, {pipeline_mode = #tpu.pipeline_mode<synchronous>, transform_indices = @transform_20, window_bounds = array<i64: 128, 128>}, {transform_indices = @transform_21, window_bounds = array<i64: 1, 8, 128>}]} {
    %c0 = arith.constant 0 : index
    %c0_0 = arith.constant 0 : index
    %0 = vector.load %arg1[%c0, %c0_0] : memref<8x192xf32, #tpu.memory_space<vmem>>, vector<8x192xf32>
    %c0_1 = arith.constant 0 : index
    %c0_2 = arith.constant 0 : index
    %1 = vector.load %arg4[%c0_1, %c0_2] : memref<192x128xbf16, #tpu.memory_space<vmem>>, vector<192x128xbf16>
    %2 = arith.truncf %0 : vector<8x192xf32> to vector<8x192xbf16>
    %cst = arith.constant dense<0.000000e+00> : vector<8x128xf32>
    %3 = tpu.matmul %2, %1, %cst {dimension_numbers = #tpu.dot_dimension_numbers<[1], [0], [0], [1], [0, 0, 1, 1], [], []>} : vector<8x192xbf16>, vector<192x128xbf16>, vector<8x128xf32> -> vector<8x128xf32>
    %c0_3 = arith.constant 0 : index
    %c0_4 = arith.constant 0 : index
    %4 = vector.load %arg2[%c0_3, %c0_4] : memref<8x128xf32, #tpu.memory_space<vmem>>, vector<8x128xf32>
    %5 = arith.addf %3, %4 : vector<8x128xf32>
    %c0_5 = arith.constant 0 : index
    %c0_6 = arith.constant 0 : index
    %6 = vector.load %arg5[%c0_5, %c0_6] : memref<1x128xf32, #tpu.memory_space<vmem>>, vector<1x128xf32>
    %c0_7 = arith.constant 0 : index
    %c0_8 = arith.constant 0 : index
    %7 = vector.load %arg6[%c0_7, %c0_8] : memref<1x128xf32, #tpu.memory_space<vmem>>, vector<1x128xf32>
    %cst_9 = arith.constant dense<0.000000e+00> : vector<8xf32>
    %8 = vector.multi_reduction <add>, %5, %cst_9 [1] : vector<8x128xf32> to vector<8xf32>
    %9 = vector.shape_cast %8 : vector<8xf32> to vector<8x1xf32>
    %cst_10 = arith.constant 1.562500e-02 : f32
    %10 = vector.broadcast %cst_10 : f32 to vector<8x1xf32>
    %11 = arith.mulf %9, %10 : vector<8x1xf32>
    %12 = arith.mulf %5, %5 : vector<8x128xf32>
    %cst_11 = arith.constant dense<0.000000e+00> : vector<8xf32>
    %13 = vector.multi_reduction <add>, %12, %cst_11 [1] : vector<8x128xf32> to vector<8xf32>
    %14 = vector.shape_cast %13 : vector<8xf32> to vector<8x1xf32>
    %cst_12 = arith.constant 1.562500e-02 : f32
    %15 = vector.broadcast %cst_12 : f32 to vector<8x1xf32>
    %16 = arith.mulf %14, %15 : vector<8x1xf32>
    %17 = arith.mulf %11, %11 : vector<8x1xf32>
    %18 = arith.subf %16, %17 : vector<8x1xf32>
    %19 = vector.broadcast %11 : vector<8x1xf32> to vector<8x128xf32>
    %20 = arith.subf %5, %19 : vector<8x128xf32>
    %cst_13 = arith.constant 9.99999974E-6 : f32
    %21 = vector.broadcast %cst_13 : f32 to vector<8x1xf32>
    %22 = arith.addf %18, %21 : vector<8x1xf32>
    %23 = math.rsqrt %22 : vector<8x1xf32>
    %24 = vector.broadcast %23 : vector<8x1xf32> to vector<8x128xf32>
    %25 = arith.mulf %20, %24 : vector<8x128xf32>
    %26 = vector.broadcast %6 : vector<1x128xf32> to vector<8x128xf32>
    %27 = arith.mulf %25, %26 : vector<8x128xf32>
    %28 = vector.broadcast %7 : vector<1x128xf32> to vector<8x128xf32>
    %29 = arith.addf %27, %28 : vector<8x128xf32>
    %c0_14 = arith.constant 0 : index
    %c0_15 = arith.constant 0 : index
    %30 = vector.load %arg3[%c0_14, %c0_15] : memref<8x8xf32, #tpu.memory_space<vmem>>, vector<8x8xf32>
    %c0_16 = arith.constant 0 : index
    %c0_17 = arith.constant 0 : index
    %c0_18 = arith.constant 0 : index
    %31 = vector.load %arg7[%c0_16, %c0_17, %c0_18] : memref<2x1x128xf32, #tpu.memory_space<vmem>>, vector<1x1x128xf32>
    %32 = vector.shape_cast %31 : vector<1x1x128xf32> to vector<1x128xf32>
    %c0_19 = arith.constant 0 : index
    %c0_20 = arith.constant 0 : index
    %c0_21 = arith.constant 0 : index
    %33 = vector.load %arg8[%c0_19, %c0_20, %c0_21] : memref<2x1x128xf32, #tpu.memory_space<vmem>>, vector<1x1x128xf32>
    %34 = vector.shape_cast %33 : vector<1x1x128xf32> to vector<1x128xf32>
    %cst_22 = arith.constant dense<0.000000e+00> : vector<8xf32>
    %35 = vector.multi_reduction <add>, %29, %cst_22 [1] : vector<8x128xf32> to vector<8xf32>
    %36 = vector.shape_cast %35 : vector<8xf32> to vector<8x1xf32>
    %cst_23 = arith.constant 1.562500e-02 : f32
    %37 = vector.broadcast %cst_23 : f32 to vector<8x1xf32>
    %38 = arith.mulf %36, %37 : vector<8x1xf32>
    %39 = arith.mulf %29, %29 : vector<8x128xf32>
    %cst_24 = arith.constant dense<0.000000e+00> : vector<8xf32>
    %40 = vector.multi_reduction <add>, %39, %cst_24 [1] : vector<8x128xf32> to vector<8xf32>
    %41 = vector.shape_cast %40 : vector<8xf32> to vector<8x1xf32>
    %cst_25 = arith.constant 1.562500e-02 : f32
    %42 = vector.broadcast %cst_25 : f32 to vector<8x1xf32>
    %43 = arith.mulf %41, %42 : vector<8x1xf32>
    %44 = arith.mulf %38, %38 : vector<8x1xf32>
    %45 = arith.subf %43, %44 : vector<8x1xf32>
    %46 = vector.broadcast %38 : vector<8x1xf32> to vector<8x128xf32>
    %47 = arith.subf %29, %46 : vector<8x128xf32>
    %cst_26 = arith.constant 9.99999974E-6 : f32
    %48 = vector.broadcast %cst_26 : f32 to vector<8x1xf32>
    %49 = arith.addf %45, %48 : vector<8x1xf32>
    %50 = math.rsqrt %49 : vector<8x1xf32>
    %51 = vector.broadcast %50 : vector<8x1xf32> to vector<8x128xf32>
    %52 = arith.mulf %47, %51 : vector<8x128xf32>
    %53 = vector.broadcast %32 : vector<1x128xf32> to vector<8x128xf32>
    %54 = arith.mulf %52, %53 : vector<8x128xf32>
    %55 = vector.broadcast %34 : vector<1x128xf32> to vector<8x128xf32>
    %56 = arith.addf %54, %55 : vector<8x128xf32>
    %c0_27 = arith.constant 0 : index
    %c0_28 = arith.constant 0 : index
    %c0_29 = arith.constant 0 : index
    %57 = vector.load %arg9[%c0_27, %c0_28, %c0_29] : memref<2x128x768xbf16, #tpu.memory_space<vmem>>, vector<1x128x768xbf16>
    %58 = vector.shape_cast %57 : vector<1x128x768xbf16> to vector<128x768xbf16>
    %59 = arith.truncf %56 : vector<8x128xf32> to vector<8x128xbf16>
    %cst_30 = arith.constant dense<0.000000e+00> : vector<8x768xf32>
    %60 = tpu.matmul %59, %58, %cst_30 {dimension_numbers = #tpu.dot_dimension_numbers<[1], [0], [0], [1], [0, 0, 1, 1], [], []>} : vector<8x128xbf16>, vector<128x768xbf16>, vector<8x768xf32> -> vector<8x768xf32>
    %c0_31 = arith.constant 0 : index
    %c0_32 = arith.constant 0 : index
    %c0_33 = arith.constant 0 : index
    %61 = vector.load %arg10[%c0_31, %c0_32, %c0_33] : memref<2x1x768xf32, #tpu.memory_space<vmem>>, vector<1x1x768xf32>
    %62 = vector.shape_cast %61 : vector<1x1x768xf32> to vector<1x768xf32>
    %63 = vector.broadcast %62 : vector<1x768xf32> to vector<8x768xf32>
    %64 = arith.addf %60, %63 : vector<8x768xf32>
    %65 = arith.truncf %64 : vector<8x768xf32> to vector<8x768xbf16>
    %c0_34 = arith.constant 0 : index
    %c0_35 = arith.constant 0 : index
    %c0_36 = arith.constant 0 : index
    %66 = vector.load %arg11[%c0_34, %c0_35, %c0_36] : memref<2x256x128xbf16, #tpu.memory_space<vmem>>, vector<1x256x128xbf16>
    %67 = vector.shape_cast %66 : vector<1x256x128xbf16> to vector<256x128xbf16>
    %68 = vector.extract_strided_slice %65 {offsets = [0, 0], sizes = [8, 128], strides = [1, 1]} : vector<8x768xbf16> to vector<8x128xbf16>
    %69 = vector.extract_strided_slice %65 {offsets = [0, 128], sizes = [8, 128], strides = [1, 1]} : vector<8x768xbf16> to vector<8x128xbf16>
    %70 = vector.extract_strided_slice %65 {offsets = [0, 256], sizes = [8, 128], strides = [1, 1]} : vector<8x768xbf16> to vector<8x128xbf16>
    %cst_37 = arith.constant dense<0.000000e+00> : vector<8x8xf32>
    %71 = tpu.matmul %68, %69, %cst_37 {dimension_numbers = #tpu.dot_dimension_numbers<[1], [1], [0], [0], [0, 0, 1, 0], [], []>} : vector<8x128xbf16>, vector<8x128xbf16>, vector<8x8xf32> -> vector<8x8xf32>
    %cst_38 = arith.constant 0.176776692 : f32
    %72 = vector.broadcast %cst_38 : f32 to vector<8x8xf32>
    %73 = arith.mulf %71, %72 : vector<8x8xf32>
    %74 = arith.addf %73, %30 : vector<8x8xf32>
    %cst_39 = arith.constant dense<0xFF800000> : vector<8xf32>
    %75 = vector.multi_reduction <maximumf>, %74, %cst_39 [1] : vector<8x8xf32> to vector<8xf32>
    %76 = vector.shape_cast %75 : vector<8xf32> to vector<8x1xf32>
    %77 = vector.broadcast %76 : vector<8x1xf32> to vector<8x8xf32>
    %78 = arith.subf %74, %77 : vector<8x8xf32>
    %79 = math.exp %78 : vector<8x8xf32>
    %cst_40 = arith.constant dense<0.000000e+00> : vector<8xf32>
    %80 = vector.multi_reduction <add>, %79, %cst_40 [1] : vector<8x8xf32> to vector<8xf32>
    %81 = vector.shape_cast %80 : vector<8xf32> to vector<8x1xf32>
    %82 = tpu.reciprocal %81 {approx = true} : vector<8x1xf32> -> vector<8x1xf32>
    %83 = vector.broadcast %82 : vector<8x1xf32> to vector<8x8xf32>
    %84 = arith.mulf %79, %83 : vector<8x8xf32>
    %85 = arith.truncf %84 : vector<8x8xf32> to vector<8x8xbf16>
    %cst_41 = arith.constant dense<0.000000e+00> : vector<8x128xf32>
    %86 = tpu.matmul %85, %70, %cst_41 {dimension_numbers = #tpu.dot_dimension_numbers<[1], [0], [0], [1], [0, 0, 1, 1], [], []>} : vector<8x8xbf16>, vector<8x128xbf16>, vector<8x128xf32> -> vector<8x128xf32>
    %87 = vector.extract_strided_slice %67 {offsets = [0, 0], sizes = [128, 128], strides = [1, 1]} : vector<256x128xbf16> to vector<128x128xbf16>
    %88 = arith.truncf %86 : vector<8x128xf32> to vector<8x128xbf16>
    %cst_42 = arith.constant dense<0.000000e+00> : vector<8x128xf32>
    %89 = tpu.matmul %88, %87, %cst_42 {dimension_numbers = #tpu.dot_dimension_numbers<[1], [0], [0], [1], [0, 0, 1, 1], [], []>} : vector<8x128xbf16>, vector<128x128xbf16>, vector<8x128xf32> -> vector<8x128xf32>
    %90 = vector.extract_strided_slice %65 {offsets = [0, 384], sizes = [8, 128], strides = [1, 1]} : vector<8x768xbf16> to vector<8x128xbf16>
    %91 = vector.extract_strided_slice %65 {offsets = [0, 512], sizes = [8, 128], strides = [1, 1]} : vector<8x768xbf16> to vector<8x128xbf16>
    %92 = vector.extract_strided_slice %65 {offsets = [0, 640], sizes = [8, 128], strides = [1, 1]} : vector<8x768xbf16> to vector<8x128xbf16>
    %cst_43 = arith.constant dense<0.000000e+00> : vector<8x8xf32>
    %93 = tpu.matmul %90, %91, %cst_43 {dimension_numbers = #tpu.dot_dimension_numbers<[1], [1], [0], [0], [0, 0, 1, 0], [], []>} : vector<8x128xbf16>, vector<8x128xbf16>, vector<8x8xf32> -> vector<8x8xf32>
    %cst_44 = arith.constant 0.176776692 : f32
    %94 = vector.broadcast %cst_44 : f32 to vector<8x8xf32>
    %95 = arith.mulf %93, %94 : vector<8x8xf32>
    %96 = arith.addf %95, %30 : vector<8x8xf32>
    %cst_45 = arith.constant dense<0xFF800000> : vector<8xf32>
    %97 = vector.multi_reduction <maximumf>, %96, %cst_45 [1] : vector<8x8xf32> to vector<8xf32>
    %98 = vector.shape_cast %97 : vector<8xf32> to vector<8x1xf32>
    %99 = vector.broadcast %98 : vector<8x1xf32> to vector<8x8xf32>
    %100 = arith.subf %96, %99 : vector<8x8xf32>
    %101 = math.exp %100 : vector<8x8xf32>
    %cst_46 = arith.constant dense<0.000000e+00> : vector<8xf32>
    %102 = vector.multi_reduction <add>, %101, %cst_46 [1] : vector<8x8xf32> to vector<8xf32>
    %103 = vector.shape_cast %102 : vector<8xf32> to vector<8x1xf32>
    %104 = tpu.reciprocal %103 {approx = true} : vector<8x1xf32> -> vector<8x1xf32>
    %105 = vector.broadcast %104 : vector<8x1xf32> to vector<8x8xf32>
    %106 = arith.mulf %101, %105 : vector<8x8xf32>
    %107 = arith.truncf %106 : vector<8x8xf32> to vector<8x8xbf16>
    %cst_47 = arith.constant dense<0.000000e+00> : vector<8x128xf32>
    %108 = tpu.matmul %107, %92, %cst_47 {dimension_numbers = #tpu.dot_dimension_numbers<[1], [0], [0], [1], [0, 0, 1, 1], [], []>} : vector<8x8xbf16>, vector<8x128xbf16>, vector<8x128xf32> -> vector<8x128xf32>
    %109 = vector.extract_strided_slice %67 {offsets = [128, 0], sizes = [128, 128], strides = [1, 1]} : vector<256x128xbf16> to vector<128x128xbf16>
    %110 = arith.truncf %108 : vector<8x128xf32> to vector<8x128xbf16>
    %cst_48 = arith.constant dense<0.000000e+00> : vector<8x128xf32>
    %111 = tpu.matmul %110, %109, %cst_48 {dimension_numbers = #tpu.dot_dimension_numbers<[1], [0], [0], [1], [0, 0, 1, 1], [], []>} : vector<8x128xbf16>, vector<128x128xbf16>, vector<8x128xf32> -> vector<8x128xf32>
    %112 = arith.addf %89, %111 : vector<8x128xf32>
    %113 = arith.addf %29, %112 : vector<8x128xf32>
    %c0_49 = arith.constant 0 : index
    %c0_50 = arith.constant 0 : index
    %c0_51 = arith.constant 0 : index
    %114 = vector.load %arg12[%c0_49, %c0_50, %c0_51] : memref<2x1x128xf32, #tpu.memory_space<vmem>>, vector<1x1x128xf32>
    %115 = vector.shape_cast %114 : vector<1x1x128xf32> to vector<1x128xf32>
    %116 = vector.broadcast %115 : vector<1x128xf32> to vector<8x128xf32>
    %117 = arith.addf %113, %116 : vector<8x128xf32>
    %c0_52 = arith.constant 0 : index
    %c0_53 = arith.constant 0 : index
    %c0_54 = arith.constant 0 : index
    %118 = vector.load %arg13[%c0_52, %c0_53, %c0_54] : memref<2x1x128xf32, #tpu.memory_space<vmem>>, vector<1x1x128xf32>
    %119 = vector.shape_cast %118 : vector<1x1x128xf32> to vector<1x128xf32>
    %c0_55 = arith.constant 0 : index
    %c0_56 = arith.constant 0 : index
    %c0_57 = arith.constant 0 : index
    %120 = vector.load %arg14[%c0_55, %c0_56, %c0_57] : memref<2x1x128xf32, #tpu.memory_space<vmem>>, vector<1x1x128xf32>
    %121 = vector.shape_cast %120 : vector<1x1x128xf32> to vector<1x128xf32>
    %cst_58 = arith.constant dense<0.000000e+00> : vector<8xf32>
    %122 = vector.multi_reduction <add>, %117, %cst_58 [1] : vector<8x128xf32> to vector<8xf32>
    %123 = vector.shape_cast %122 : vector<8xf32> to vector<8x1xf32>
    %cst_59 = arith.constant 1.562500e-02 : f32
    %124 = vector.broadcast %cst_59 : f32 to vector<8x1xf32>
    %125 = arith.mulf %123, %124 : vector<8x1xf32>
    %126 = arith.mulf %117, %117 : vector<8x128xf32>
    %cst_60 = arith.constant dense<0.000000e+00> : vector<8xf32>
    %127 = vector.multi_reduction <add>, %126, %cst_60 [1] : vector<8x128xf32> to vector<8xf32>
    %128 = vector.shape_cast %127 : vector<8xf32> to vector<8x1xf32>
    %cst_61 = arith.constant 1.562500e-02 : f32
    %129 = vector.broadcast %cst_61 : f32 to vector<8x1xf32>
    %130 = arith.mulf %128, %129 : vector<8x1xf32>
    %131 = arith.mulf %125, %125 : vector<8x1xf32>
    %132 = arith.subf %130, %131 : vector<8x1xf32>
    %133 = vector.broadcast %125 : vector<8x1xf32> to vector<8x128xf32>
    %134 = arith.subf %117, %133 : vector<8x128xf32>
    %cst_62 = arith.constant 9.99999974E-6 : f32
    %135 = vector.broadcast %cst_62 : f32 to vector<8x1xf32>
    %136 = arith.addf %132, %135 : vector<8x1xf32>
    %137 = math.rsqrt %136 : vector<8x1xf32>
    %138 = vector.broadcast %137 : vector<8x1xf32> to vector<8x128xf32>
    %139 = arith.mulf %134, %138 : vector<8x128xf32>
    %140 = vector.broadcast %119 : vector<1x128xf32> to vector<8x128xf32>
    %141 = arith.mulf %139, %140 : vector<8x128xf32>
    %142 = vector.broadcast %121 : vector<1x128xf32> to vector<8x128xf32>
    %143 = arith.addf %141, %142 : vector<8x128xf32>
    %c0_63 = arith.constant 0 : index
    %c0_64 = arith.constant 0 : index
    %c0_65 = arith.constant 0 : index
    %144 = vector.load %arg15[%c0_63, %c0_64, %c0_65] : memref<2x128x256xbf16, #tpu.memory_space<vmem>>, vector<1x128x256xbf16>
    %145 = vector.shape_cast %144 : vector<1x128x256xbf16> to vector<128x256xbf16>
    %146 = arith.truncf %143 : vector<8x128xf32> to vector<8x128xbf16>
    %cst_66 = arith.constant dense<0.000000e+00> : vector<8x256xf32>
    %147 = tpu.matmul %146, %145, %cst_66 {dimension_numbers = #tpu.dot_dimension_numbers<[1], [0], [0], [1], [0, 0, 1, 1], [], []>} : vector<8x128xbf16>, vector<128x256xbf16>, vector<8x256xf32> -> vector<8x256xf32>
    %c0_67 = arith.constant 0 : index
    %c0_68 = arith.constant 0 : index
    %c0_69 = arith.constant 0 : index
    %148 = vector.load %arg16[%c0_67, %c0_68, %c0_69] : memref<2x1x256xf32, #tpu.memory_space<vmem>>, vector<1x1x256xf32>
    %149 = vector.shape_cast %148 : vector<1x1x256xf32> to vector<1x256xf32>
    %150 = vector.broadcast %149 : vector<1x256xf32> to vector<8x256xf32>
    %151 = arith.addf %147, %150 : vector<8x256xf32>
    %cst_70 = arith.constant 5.000000e-01 : f32
    %152 = vector.broadcast %cst_70 : f32 to vector<8x256xf32>
    %153 = arith.mulf %152, %151 : vector<8x256xf32>
    %cst_71 = arith.constant 4.471500e-02 : f32
    %154 = vector.broadcast %cst_71 : f32 to vector<8x256xf32>
    %155 = arith.mulf %154, %151 : vector<8x256xf32>
    %156 = arith.mulf %155, %151 : vector<8x256xf32>
    %157 = arith.mulf %156, %151 : vector<8x256xf32>
    %158 = arith.addf %151, %157 : vector<8x256xf32>
    %cst_72 = arith.constant 0.797884583 : f32
    %159 = vector.broadcast %cst_72 : f32 to vector<8x256xf32>
    %160 = arith.mulf %159, %158 : vector<8x256xf32>
    %161 = math.tanh %160 : vector<8x256xf32>
    %cst_73 = arith.constant 1.000000e+00 : f32
    %162 = vector.broadcast %cst_73 : f32 to vector<8x256xf32>
    %163 = arith.addf %162, %161 : vector<8x256xf32>
    %164 = arith.mulf %153, %163 : vector<8x256xf32>
    %c0_74 = arith.constant 0 : index
    %c0_75 = arith.constant 0 : index
    %c0_76 = arith.constant 0 : index
    %165 = vector.load %arg17[%c0_74, %c0_75, %c0_76] : memref<2x256x128xbf16, #tpu.memory_space<vmem>>, vector<1x256x128xbf16>
    %166 = vector.shape_cast %165 : vector<1x256x128xbf16> to vector<256x128xbf16>
    %167 = arith.truncf %164 : vector<8x256xf32> to vector<8x256xbf16>
    %cst_77 = arith.constant dense<0.000000e+00> : vector<8x128xf32>
    %168 = tpu.matmul %167, %166, %cst_77 {dimension_numbers = #tpu.dot_dimension_numbers<[1], [0], [0], [1], [0, 0, 1, 1], [], []>} : vector<8x256xbf16>, vector<256x128xbf16>, vector<8x128xf32> -> vector<8x128xf32>
    %169 = arith.addf %117, %168 : vector<8x128xf32>
    %c0_78 = arith.constant 0 : index
    %c0_79 = arith.constant 0 : index
    %c0_80 = arith.constant 0 : index
    %170 = vector.load %arg18[%c0_78, %c0_79, %c0_80] : memref<2x1x128xf32, #tpu.memory_space<vmem>>, vector<1x1x128xf32>
    %171 = vector.shape_cast %170 : vector<1x1x128xf32> to vector<1x128xf32>
    %172 = vector.broadcast %171 : vector<1x128xf32> to vector<8x128xf32>
    %173 = arith.addf %169, %172 : vector<8x128xf32>
    %c1 = arith.constant 1 : index
    %c0_81 = arith.constant 0 : index
    %c0_82 = arith.constant 0 : index
    %174 = vector.load %arg7[%c1, %c0_81, %c0_82] : memref<2x1x128xf32, #tpu.memory_space<vmem>>, vector<1x1x128xf32>
    %175 = vector.shape_cast %174 : vector<1x1x128xf32> to vector<1x128xf32>
    %c1_83 = arith.constant 1 : index
    %c0_84 = arith.constant 0 : index
    %c0_85 = arith.constant 0 : index
    %176 = vector.load %arg8[%c1_83, %c0_84, %c0_85] : memref<2x1x128xf32, #tpu.memory_space<vmem>>, vector<1x1x128xf32>
    %177 = vector.shape_cast %176 : vector<1x1x128xf32> to vector<1x128xf32>
    %cst_86 = arith.constant dense<0.000000e+00> : vector<8xf32>
    %178 = vector.multi_reduction <add>, %173, %cst_86 [1] : vector<8x128xf32> to vector<8xf32>
    %179 = vector.shape_cast %178 : vector<8xf32> to vector<8x1xf32>
    %cst_87 = arith.constant 1.562500e-02 : f32
    %180 = vector.broadcast %cst_87 : f32 to vector<8x1xf32>
    %181 = arith.mulf %179, %180 : vector<8x1xf32>
    %182 = arith.mulf %173, %173 : vector<8x128xf32>
    %cst_88 = arith.constant dense<0.000000e+00> : vector<8xf32>
    %183 = vector.multi_reduction <add>, %182, %cst_88 [1] : vector<8x128xf32> to vector<8xf32>
    %184 = vector.shape_cast %183 : vector<8xf32> to vector<8x1xf32>
    %cst_89 = arith.constant 1.562500e-02 : f32
    %185 = vector.broadcast %cst_89 : f32 to vector<8x1xf32>
    %186 = arith.mulf %184, %185 : vector<8x1xf32>
    %187 = arith.mulf %181, %181 : vector<8x1xf32>
    %188 = arith.subf %186, %187 : vector<8x1xf32>
    %189 = vector.broadcast %181 : vector<8x1xf32> to vector<8x128xf32>
    %190 = arith.subf %173, %189 : vector<8x128xf32>
    %cst_90 = arith.constant 9.99999974E-6 : f32
    %191 = vector.broadcast %cst_90 : f32 to vector<8x1xf32>
    %192 = arith.addf %188, %191 : vector<8x1xf32>
    %193 = math.rsqrt %192 : vector<8x1xf32>
    %194 = vector.broadcast %193 : vector<8x1xf32> to vector<8x128xf32>
    %195 = arith.mulf %190, %194 : vector<8x128xf32>
    %196 = vector.broadcast %175 : vector<1x128xf32> to vector<8x128xf32>
    %197 = arith.mulf %195, %196 : vector<8x128xf32>
    %198 = vector.broadcast %177 : vector<1x128xf32> to vector<8x128xf32>
    %199 = arith.addf %197, %198 : vector<8x128xf32>
    %c1_91 = arith.constant 1 : index
    %c0_92 = arith.constant 0 : index
    %c0_93 = arith.constant 0 : index
    %200 = vector.load %arg9[%c1_91, %c0_92, %c0_93] : memref<2x128x768xbf16, #tpu.memory_space<vmem>>, vector<1x128x768xbf16>
    %201 = vector.shape_cast %200 : vector<1x128x768xbf16> to vector<128x768xbf16>
    %202 = arith.truncf %199 : vector<8x128xf32> to vector<8x128xbf16>
    %cst_94 = arith.constant dense<0.000000e+00> : vector<8x768xf32>
    %203 = tpu.matmul %202, %201, %cst_94 {dimension_numbers = #tpu.dot_dimension_numbers<[1], [0], [0], [1], [0, 0, 1, 1], [], []>} : vector<8x128xbf16>, vector<128x768xbf16>, vector<8x768xf32> -> vector<8x768xf32>
    %c1_95 = arith.constant 1 : index
    %c0_96 = arith.constant 0 : index
    %c0_97 = arith.constant 0 : index
    %204 = vector.load %arg10[%c1_95, %c0_96, %c0_97] : memref<2x1x768xf32, #tpu.memory_space<vmem>>, vector<1x1x768xf32>
    %205 = vector.shape_cast %204 : vector<1x1x768xf32> to vector<1x768xf32>
    %206 = vector.broadcast %205 : vector<1x768xf32> to vector<8x768xf32>
    %207 = arith.addf %203, %206 : vector<8x768xf32>
    %208 = arith.truncf %207 : vector<8x768xf32> to vector<8x768xbf16>
    %c1_98 = arith.constant 1 : index
    %c0_99 = arith.constant 0 : index
    %c0_100 = arith.constant 0 : index
    %209 = vector.load %arg11[%c1_98, %c0_99, %c0_100] : memref<2x256x128xbf16, #tpu.memory_space<vmem>>, vector<1x256x128xbf16>
    %210 = vector.shape_cast %209 : vector<1x256x128xbf16> to vector<256x128xbf16>
    %211 = vector.extract_strided_slice %208 {offsets = [0, 0], sizes = [8, 128], strides = [1, 1]} : vector<8x768xbf16> to vector<8x128xbf16>
    %212 = vector.extract_strided_slice %208 {offsets = [0, 128], sizes = [8, 128], strides = [1, 1]} : vector<8x768xbf16> to vector<8x128xbf16>
    %213 = vector.extract_strided_slice %208 {offsets = [0, 256], sizes = [8, 128], strides = [1, 1]} : vector<8x768xbf16> to vector<8x128xbf16>
    %cst_101 = arith.constant dense<0.000000e+00> : vector<8x8xf32>
    %214 = tpu.matmul %211, %212, %cst_101 {dimension_numbers = #tpu.dot_dimension_numbers<[1], [1], [0], [0], [0, 0, 1, 0], [], []>} : vector<8x128xbf16>, vector<8x128xbf16>, vector<8x8xf32> -> vector<8x8xf32>
    %cst_102 = arith.constant 0.176776692 : f32
    %215 = vector.broadcast %cst_102 : f32 to vector<8x8xf32>
    %216 = arith.mulf %214, %215 : vector<8x8xf32>
    %217 = arith.addf %216, %30 : vector<8x8xf32>
    %cst_103 = arith.constant dense<0xFF800000> : vector<8xf32>
    %218 = vector.multi_reduction <maximumf>, %217, %cst_103 [1] : vector<8x8xf32> to vector<8xf32>
    %219 = vector.shape_cast %218 : vector<8xf32> to vector<8x1xf32>
    %220 = vector.broadcast %219 : vector<8x1xf32> to vector<8x8xf32>
    %221 = arith.subf %217, %220 : vector<8x8xf32>
    %222 = math.exp %221 : vector<8x8xf32>
    %cst_104 = arith.constant dense<0.000000e+00> : vector<8xf32>
    %223 = vector.multi_reduction <add>, %222, %cst_104 [1] : vector<8x8xf32> to vector<8xf32>
    %224 = vector.shape_cast %223 : vector<8xf32> to vector<8x1xf32>
    %225 = tpu.reciprocal %224 {approx = true} : vector<8x1xf32> -> vector<8x1xf32>
    %226 = vector.broadcast %225 : vector<8x1xf32> to vector<8x8xf32>
    %227 = arith.mulf %222, %226 : vector<8x8xf32>
    %228 = arith.truncf %227 : vector<8x8xf32> to vector<8x8xbf16>
    %cst_105 = arith.constant dense<0.000000e+00> : vector<8x128xf32>
    %229 = tpu.matmul %228, %213, %cst_105 {dimension_numbers = #tpu.dot_dimension_numbers<[1], [0], [0], [1], [0, 0, 1, 1], [], []>} : vector<8x8xbf16>, vector<8x128xbf16>, vector<8x128xf32> -> vector<8x128xf32>
    %230 = vector.extract_strided_slice %210 {offsets = [0, 0], sizes = [128, 128], strides = [1, 1]} : vector<256x128xbf16> to vector<128x128xbf16>
    %231 = arith.truncf %229 : vector<8x128xf32> to vector<8x128xbf16>
    %cst_106 = arith.constant dense<0.000000e+00> : vector<8x128xf32>
    %232 = tpu.matmul %231, %230, %cst_106 {dimension_numbers = #tpu.dot_dimension_numbers<[1], [0], [0], [1], [0, 0, 1, 1], [], []>} : vector<8x128xbf16>, vector<128x128xbf16>, vector<8x128xf32> -> vector<8x128xf32>
    %233 = vector.extract_strided_slice %208 {offsets = [0, 384], sizes = [8, 128], strides = [1, 1]} : vector<8x768xbf16> to vector<8x128xbf16>
    %234 = vector.extract_strided_slice %208 {offsets = [0, 512], sizes = [8, 128], strides = [1, 1]} : vector<8x768xbf16> to vector<8x128xbf16>
    %235 = vector.extract_strided_slice %208 {offsets = [0, 640], sizes = [8, 128], strides = [1, 1]} : vector<8x768xbf16> to vector<8x128xbf16>
    %cst_107 = arith.constant dense<0.000000e+00> : vector<8x8xf32>
    %236 = tpu.matmul %233, %234, %cst_107 {dimension_numbers = #tpu.dot_dimension_numbers<[1], [1], [0], [0], [0, 0, 1, 0], [], []>} : vector<8x128xbf16>, vector<8x128xbf16>, vector<8x8xf32> -> vector<8x8xf32>
    %cst_108 = arith.constant 0.176776692 : f32
    %237 = vector.broadcast %cst_108 : f32 to vector<8x8xf32>
    %238 = arith.mulf %236, %237 : vector<8x8xf32>
    %239 = arith.addf %238, %30 : vector<8x8xf32>
    %cst_109 = arith.constant dense<0xFF800000> : vector<8xf32>
    %240 = vector.multi_reduction <maximumf>, %239, %cst_109 [1] : vector<8x8xf32> to vector<8xf32>
    %241 = vector.shape_cast %240 : vector<8xf32> to vector<8x1xf32>
    %242 = vector.broadcast %241 : vector<8x1xf32> to vector<8x8xf32>
    %243 = arith.subf %239, %242 : vector<8x8xf32>
    %244 = math.exp %243 : vector<8x8xf32>
    %cst_110 = arith.constant dense<0.000000e+00> : vector<8xf32>
    %245 = vector.multi_reduction <add>, %244, %cst_110 [1] : vector<8x8xf32> to vector<8xf32>
    %246 = vector.shape_cast %245 : vector<8xf32> to vector<8x1xf32>
    %247 = tpu.reciprocal %246 {approx = true} : vector<8x1xf32> -> vector<8x1xf32>
    %248 = vector.broadcast %247 : vector<8x1xf32> to vector<8x8xf32>
    %249 = arith.mulf %244, %248 : vector<8x8xf32>
    %250 = arith.truncf %249 : vector<8x8xf32> to vector<8x8xbf16>
    %cst_111 = arith.constant dense<0.000000e+00> : vector<8x128xf32>
    %251 = tpu.matmul %250, %235, %cst_111 {dimension_numbers = #tpu.dot_dimension_numbers<[1], [0], [0], [1], [0, 0, 1, 1], [], []>} : vector<8x8xbf16>, vector<8x128xbf16>, vector<8x128xf32> -> vector<8x128xf32>
    %252 = vector.extract_strided_slice %210 {offsets = [128, 0], sizes = [128, 128], strides = [1, 1]} : vector<256x128xbf16> to vector<128x128xbf16>
    %253 = arith.truncf %251 : vector<8x128xf32> to vector<8x128xbf16>
    %cst_112 = arith.constant dense<0.000000e+00> : vector<8x128xf32>
    %254 = tpu.matmul %253, %252, %cst_112 {dimension_numbers = #tpu.dot_dimension_numbers<[1], [0], [0], [1], [0, 0, 1, 1], [], []>} : vector<8x128xbf16>, vector<128x128xbf16>, vector<8x128xf32> -> vector<8x128xf32>
    %255 = arith.addf %232, %254 : vector<8x128xf32>
    %256 = arith.addf %173, %255 : vector<8x128xf32>
    %c1_113 = arith.constant 1 : index
    %c0_114 = arith.constant 0 : index
    %c0_115 = arith.constant 0 : index
    %257 = vector.load %arg12[%c1_113, %c0_114, %c0_115] : memref<2x1x128xf32, #tpu.memory_space<vmem>>, vector<1x1x128xf32>
    %258 = vector.shape_cast %257 : vector<1x1x128xf32> to vector<1x128xf32>
    %259 = vector.broadcast %258 : vector<1x128xf32> to vector<8x128xf32>
    %260 = arith.addf %256, %259 : vector<8x128xf32>
    %c1_116 = arith.constant 1 : index
    %c0_117 = arith.constant 0 : index
    %c0_118 = arith.constant 0 : index
    %261 = vector.load %arg13[%c1_116, %c0_117, %c0_118] : memref<2x1x128xf32, #tpu.memory_space<vmem>>, vector<1x1x128xf32>
    %262 = vector.shape_cast %261 : vector<1x1x128xf32> to vector<1x128xf32>
    %c1_119 = arith.constant 1 : index
    %c0_120 = arith.constant 0 : index
    %c0_121 = arith.constant 0 : index
    %263 = vector.load %arg14[%c1_119, %c0_120, %c0_121] : memref<2x1x128xf32, #tpu.memory_space<vmem>>, vector<1x1x128xf32>
    %264 = vector.shape_cast %263 : vector<1x1x128xf32> to vector<1x128xf32>
    %cst_122 = arith.constant dense<0.000000e+00> : vector<8xf32>
    %265 = vector.multi_reduction <add>, %260, %cst_122 [1] : vector<8x128xf32> to vector<8xf32>
    %266 = vector.shape_cast %265 : vector<8xf32> to vector<8x1xf32>
    %cst_123 = arith.constant 1.562500e-02 : f32
    %267 = vector.broadcast %cst_123 : f32 to vector<8x1xf32>
    %268 = arith.mulf %266, %267 : vector<8x1xf32>
    %269 = arith.mulf %260, %260 : vector<8x128xf32>
    %cst_124 = arith.constant dense<0.000000e+00> : vector<8xf32>
    %270 = vector.multi_reduction <add>, %269, %cst_124 [1] : vector<8x128xf32> to vector<8xf32>
    %271 = vector.shape_cast %270 : vector<8xf32> to vector<8x1xf32>
    %cst_125 = arith.constant 1.562500e-02 : f32
    %272 = vector.broadcast %cst_125 : f32 to vector<8x1xf32>
    %273 = arith.mulf %271, %272 : vector<8x1xf32>
    %274 = arith.mulf %268, %268 : vector<8x1xf32>
    %275 = arith.subf %273, %274 : vector<8x1xf32>
    %276 = vector.broadcast %268 : vector<8x1xf32> to vector<8x128xf32>
    %277 = arith.subf %260, %276 : vector<8x128xf32>
    %cst_126 = arith.constant 9.99999974E-6 : f32
    %278 = vector.broadcast %cst_126 : f32 to vector<8x1xf32>
    %279 = arith.addf %275, %278 : vector<8x1xf32>
    %280 = math.rsqrt %279 : vector<8x1xf32>
    %281 = vector.broadcast %280 : vector<8x1xf32> to vector<8x128xf32>
    %282 = arith.mulf %277, %281 : vector<8x128xf32>
    %283 = vector.broadcast %262 : vector<1x128xf32> to vector<8x128xf32>
    %284 = arith.mulf %282, %283 : vector<8x128xf32>
    %285 = vector.broadcast %264 : vector<1x128xf32> to vector<8x128xf32>
    %286 = arith.addf %284, %285 : vector<8x128xf32>
    %c1_127 = arith.constant 1 : index
    %c0_128 = arith.constant 0 : index
    %c0_129 = arith.constant 0 : index
    %287 = vector.load %arg15[%c1_127, %c0_128, %c0_129] : memref<2x128x256xbf16, #tpu.memory_space<vmem>>, vector<1x128x256xbf16>
    %288 = vector.shape_cast %287 : vector<1x128x256xbf16> to vector<128x256xbf16>
    %289 = arith.truncf %286 : vector<8x128xf32> to vector<8x128xbf16>
    %cst_130 = arith.constant dense<0.000000e+00> : vector<8x256xf32>
    %290 = tpu.matmul %289, %288, %cst_130 {dimension_numbers = #tpu.dot_dimension_numbers<[1], [0], [0], [1], [0, 0, 1, 1], [], []>} : vector<8x128xbf16>, vector<128x256xbf16>, vector<8x256xf32> -> vector<8x256xf32>
    %c1_131 = arith.constant 1 : index
    %c0_132 = arith.constant 0 : index
    %c0_133 = arith.constant 0 : index
    %291 = vector.load %arg16[%c1_131, %c0_132, %c0_133] : memref<2x1x256xf32, #tpu.memory_space<vmem>>, vector<1x1x256xf32>
    %292 = vector.shape_cast %291 : vector<1x1x256xf32> to vector<1x256xf32>
    %293 = vector.broadcast %292 : vector<1x256xf32> to vector<8x256xf32>
    %294 = arith.addf %290, %293 : vector<8x256xf32>
    %cst_134 = arith.constant 5.000000e-01 : f32
    %295 = vector.broadcast %cst_134 : f32 to vector<8x256xf32>
    %296 = arith.mulf %295, %294 : vector<8x256xf32>
    %cst_135 = arith.constant 4.471500e-02 : f32
    %297 = vector.broadcast %cst_135 : f32 to vector<8x256xf32>
    %298 = arith.mulf %297, %294 : vector<8x256xf32>
    %299 = arith.mulf %298, %294 : vector<8x256xf32>
    %300 = arith.mulf %299, %294 : vector<8x256xf32>
    %301 = arith.addf %294, %300 : vector<8x256xf32>
    %cst_136 = arith.constant 0.797884583 : f32
    %302 = vector.broadcast %cst_136 : f32 to vector<8x256xf32>
    %303 = arith.mulf %302, %301 : vector<8x256xf32>
    %304 = math.tanh %303 : vector<8x256xf32>
    %cst_137 = arith.constant 1.000000e+00 : f32
    %305 = vector.broadcast %cst_137 : f32 to vector<8x256xf32>
    %306 = arith.addf %305, %304 : vector<8x256xf32>
    %307 = arith.mulf %296, %306 : vector<8x256xf32>
    %c1_138 = arith.constant 1 : index
    %c0_139 = arith.constant 0 : index
    %c0_140 = arith.constant 0 : index
    %308 = vector.load %arg17[%c1_138, %c0_139, %c0_140] : memref<2x256x128xbf16, #tpu.memory_space<vmem>>, vector<1x256x128xbf16>
    %309 = vector.shape_cast %308 : vector<1x256x128xbf16> to vector<256x128xbf16>
    %310 = arith.truncf %307 : vector<8x256xf32> to vector<8x256xbf16>
    %cst_141 = arith.constant dense<0.000000e+00> : vector<8x128xf32>
    %311 = tpu.matmul %310, %309, %cst_141 {dimension_numbers = #tpu.dot_dimension_numbers<[1], [0], [0], [1], [0, 0, 1, 1], [], []>} : vector<8x256xbf16>, vector<256x128xbf16>, vector<8x128xf32> -> vector<8x128xf32>
    %312 = arith.addf %260, %311 : vector<8x128xf32>
    %c1_142 = arith.constant 1 : index
    %c0_143 = arith.constant 0 : index
    %c0_144 = arith.constant 0 : index
    %313 = vector.load %arg18[%c1_142, %c0_143, %c0_144] : memref<2x1x128xf32, #tpu.memory_space<vmem>>, vector<1x1x128xf32>
    %314 = vector.shape_cast %313 : vector<1x1x128xf32> to vector<1x128xf32>
    %315 = vector.broadcast %314 : vector<1x128xf32> to vector<8x128xf32>
    %316 = arith.addf %312, %315 : vector<8x128xf32>
    %c0_145 = arith.constant 0 : index
    %c0_146 = arith.constant 0 : index
    %317 = vector.load %arg19[%c0_145, %c0_146] : memref<1x128xf32, #tpu.memory_space<vmem>>, vector<1x128xf32>
    %c0_147 = arith.constant 0 : index
    %c0_148 = arith.constant 0 : index
    %318 = vector.load %arg20[%c0_147, %c0_148] : memref<1x128xf32, #tpu.memory_space<vmem>>, vector<1x128xf32>
    %cst_149 = arith.constant dense<0.000000e+00> : vector<8xf32>
    %319 = vector.multi_reduction <add>, %316, %cst_149 [1] : vector<8x128xf32> to vector<8xf32>
    %320 = vector.shape_cast %319 : vector<8xf32> to vector<8x1xf32>
    %cst_150 = arith.constant 1.562500e-02 : f32
    %321 = vector.broadcast %cst_150 : f32 to vector<8x1xf32>
    %322 = arith.mulf %320, %321 : vector<8x1xf32>
    %323 = arith.mulf %316, %316 : vector<8x128xf32>
    %cst_151 = arith.constant dense<0.000000e+00> : vector<8xf32>
    %324 = vector.multi_reduction <add>, %323, %cst_151 [1] : vector<8x128xf32> to vector<8xf32>
    %325 = vector.shape_cast %324 : vector<8xf32> to vector<8x1xf32>
    %cst_152 = arith.constant 1.562500e-02 : f32
    %326 = vector.broadcast %cst_152 : f32 to vector<8x1xf32>
    %327 = arith.mulf %325, %326 : vector<8x1xf32>
    %328 = arith.mulf %322, %322 : vector<8x1xf32>
    %329 = arith.subf %327, %328 : vector<8x1xf32>
    %330 = vector.broadcast %322 : vector<8x1xf32> to vector<8x128xf32>
    %331 = arith.subf %316, %330 : vector<8x128xf32>
    %cst_153 = arith.constant 9.99999974E-6 : f32
    %332 = vector.broadcast %cst_153 : f32 to vector<8x1xf32>
    %333 = arith.addf %329, %332 : vector<8x1xf32>
    %334 = math.rsqrt %333 : vector<8x1xf32>
    %335 = vector.broadcast %334 : vector<8x1xf32> to vector<8x128xf32>
    %336 = arith.mulf %331, %335 : vector<8x128xf32>
    %337 = vector.broadcast %317 : vector<1x128xf32> to vector<8x128xf32>
    %338 = arith.mulf %336, %337 : vector<8x128xf32>
    %339 = vector.broadcast %318 : vector<1x128xf32> to vector<8x128xf32>
    %340 = arith.addf %338, %339 : vector<8x128xf32>
    %c0_154 = arith.constant 0 : index
    %c0_155 = arith.constant 0 : index
    %341 = vector.load %arg21[%c0_154, %c0_155] : memref<128x128xbf16, #tpu.memory_space<vmem>>, vector<128x128xbf16>
    %342 = arith.truncf %340 : vector<8x128xf32> to vector<8x128xbf16>
    %cst_156 = arith.constant dense<0.000000e+00> : vector<8x128xf32>
    %343 = tpu.matmul %342, %341, %cst_156 {dimension_numbers = #tpu.dot_dimension_numbers<[1], [0], [0], [1], [0, 0, 1, 1], [], []>} : vector<8x128xbf16>, vector<128x128xbf16>, vector<8x128xf32> -> vector<8x128xf32>
    %344 = arith.mulf %343, %343 : vector<8x128xf32>
    %cst_157 = arith.constant dense<0.000000e+00> : vector<8xf32>
    %345 = vector.multi_reduction <add>, %344, %cst_157 [1] : vector<8x128xf32> to vector<8xf32>
    %346 = vector.shape_cast %345 : vector<8xf32> to vector<8x1xf32>
    %cst_158 = arith.constant 1.000000e-24 : f32
    %347 = vector.broadcast %cst_158 : f32 to vector<8x1xf32>
    %348 = arith.maximumf %346, %347 : vector<8x1xf32>
    %349 = math.rsqrt %348 : vector<8x1xf32>
    %350 = vector.broadcast %349 : vector<8x1xf32> to vector<8x128xf32>
    %351 = arith.mulf %343, %350 : vector<8x128xf32>
    %c0_159 = arith.constant 0 : index
    %c0_160 = arith.constant 0 : index
    %c0_161 = arith.constant 0 : index
    %352 = vector.load %arg22[%c0_159, %c0_160, %c0_161] : memref<1x8x128xf32, #tpu.memory_space<vmem>>, vector<1x8x128xf32>
    %353 = vector.shape_cast %352 : vector<1x8x128xf32> to vector<8x128xf32>
    %354 = vector.shape_cast %351 : vector<8x128xf32> to vector<1x8x128xf32>
    tpu.vector_store %arg22[%c0_159, %c0_160, %c0_161], %354 {strides = array<i32>} : memref<1x8x128xf32, #tpu.memory_space<vmem>>, vector<1x8x128xf32>,
    return
  }
  func.func @transform_0(%arg0: i32) -> (i32, i32) {
    %c0_i32 = arith.constant 0 : i32
    %c0_i32_0 = arith.constant 0 : i32
    return %arg0, %c0_i32 : i32, i32
  }
  func.func @transform_1(%arg0: i32) -> (i32, i32) {
    %c0_i32 = arith.constant 0 : i32
    %c0_i32_0 = arith.constant 0 : i32
    %c0_i32_1 = arith.constant 0 : i32
    return %c0_i32, %c0_i32_0 : i32, i32
  }
  func.func @transform_2(%arg0: i32) -> (i32, i32) {
    %c0_i32 = arith.constant 0 : i32
    %c0_i32_0 = arith.constant 0 : i32
    %c0_i32_1 = arith.constant 0 : i32
    return %c0_i32, %c0_i32_0 : i32, i32
  }
  func.func @transform_3(%arg0: i32) -> (i32, i32) {
    %c0_i32 = arith.constant 0 : i32
    %c0_i32_0 = arith.constant 0 : i32
    %c0_i32_1 = arith.constant 0 : i32
    return %c0_i32, %c0_i32_0 : i32, i32
  }
  func.func @transform_4(%arg0: i32) -> (i32, i32) {
    %c0_i32 = arith.constant 0 : i32
    %c0_i32_0 = arith.constant 0 : i32
    %c0_i32_1 = arith.constant 0 : i32
    return %c0_i32, %c0_i32_0 : i32, i32
  }
  func.func @transform_5(%arg0: i32) -> (i32, i32) {
    %c0_i32 = arith.constant 0 : i32
    %c0_i32_0 = arith.constant 0 : i32
    %c0_i32_1 = arith.constant 0 : i32
    return %c0_i32, %c0_i32_0 : i32, i32
  }
  func.func @transform_6(%arg0: i32) -> (i32, i32, i32) {
    %c0_i32 = arith.constant 0 : i32
    %c0_i32_0 = arith.constant 0 : i32
    %c0_i32_1 = arith.constant 0 : i32
    %c0_i32_2 = arith.constant 0 : i32
    return %c0_i32, %c0_i32_0, %c0_i32_1 : i32, i32, i32
  }
  func.func @transform_7(%arg0: i32) -> (i32, i32, i32) {
    %c0_i32 = arith.constant 0 : i32
    %c0_i32_0 = arith.constant 0 : i32
    %c0_i32_1 = arith.constant 0 : i32
    %c0_i32_2 = arith.constant 0 : i32
    return %c0_i32, %c0_i32_0, %c0_i32_1 : i32, i32, i32
  }
  func.func @transform_8(%arg0: i32) -> (i32, i32, i32) {
    %c0_i32 = arith.constant 0 : i32
    %c0_i32_0 = arith.constant 0 : i32
    %c0_i32_1 = arith.constant 0 : i32
    %c0_i32_2 = arith.constant 0 : i32
    return %c0_i32, %c0_i32_0, %c0_i32_1 : i32, i32, i32
  }
  func.func @transform_9(%arg0: i32) -> (i32, i32, i32) {
    %c0_i32 = arith.constant 0 : i32
    %c0_i32_0 = arith.constant 0 : i32
    %c0_i32_1 = arith.constant 0 : i32
    %c0_i32_2 = arith.constant 0 : i32
    return %c0_i32, %c0_i32_0, %c0_i32_1 : i32, i32, i32
  }
  func.func @transform_10(%arg0: i32) -> (i32, i32, i32) {
    %c0_i32 = arith.constant 0 : i32
    %c0_i32_0 = arith.constant 0 : i32
    %c0_i32_1 = arith.constant 0 : i32
    %c0_i32_2 = arith.constant 0 : i32
    return %c0_i32, %c0_i32_0, %c0_i32_1 : i32, i32, i32
  }
  func.func @transform_11(%arg0: i32) -> (i32, i32, i32) {
    %c0_i32 = arith.constant 0 : i32
    %c0_i32_0 = arith.constant 0 : i32
    %c0_i32_1 = arith.constant 0 : i32
    %c0_i32_2 = arith.constant 0 : i32
    return %c0_i32, %c0_i32_0, %c0_i32_1 : i32, i32, i32
  }
  func.func @transform_12(%arg0: i32) -> (i32, i32, i32) {
    %c0_i32 = arith.constant 0 : i32
    %c0_i32_0 = arith.constant 0 : i32
    %c0_i32_1 = arith.constant 0 : i32
    %c0_i32_2 = arith.constant 0 : i32
    return %c0_i32, %c0_i32_0, %c0_i32_1 : i32, i32, i32
  }
  func.func @transform_13(%arg0: i32) -> (i32, i32, i32) {
    %c0_i32 = arith.constant 0 : i32
    %c0_i32_0 = arith.constant 0 : i32
    %c0_i32_1 = arith.constant 0 : i32
    %c0_i32_2 = arith.constant 0 : i32
    return %c0_i32, %c0_i32_0, %c0_i32_1 : i32, i32, i32
  }
  func.func @transform_14(%arg0: i32) -> (i32, i32, i32) {
    %c0_i32 = arith.constant 0 : i32
    %c0_i32_0 = arith.constant 0 : i32
    %c0_i32_1 = arith.constant 0 : i32
    %c0_i32_2 = arith.constant 0 : i32
    return %c0_i32, %c0_i32_0, %c0_i32_1 : i32, i32, i32
  }
  func.func @transform_15(%arg0: i32) -> (i32, i32, i32) {
    %c0_i32 = arith.constant 0 : i32
    %c0_i32_0 = arith.constant 0 : i32
    %c0_i32_1 = arith.constant 0 : i32
    %c0_i32_2 = arith.constant 0 : i32
    return %c0_i32, %c0_i32_0, %c0_i32_1 : i32, i32, i32
  }
  func.func @transform_16(%arg0: i32) -> (i32, i32, i32) {
    %c0_i32 = arith.constant 0 : i32
    %c0_i32_0 = arith.constant 0 : i32
    %c0_i32_1 = arith.constant 0 : i32
    %c0_i32_2 = arith.constant 0 : i32
    return %c0_i32, %c0_i32_0, %c0_i32_1 : i32, i32, i32
  }
  func.func @transform_17(%arg0: i32) -> (i32, i32, i32) {
    %c0_i32 = arith.constant 0 : i32
    %c0_i32_0 = arith.constant 0 : i32
    %c0_i32_1 = arith.constant 0 : i32
    %c0_i32_2 = arith.constant 0 : i32
    return %c0_i32, %c0_i32_0, %c0_i32_1 : i32, i32, i32
  }
  func.func @transform_18(%arg0: i32) -> (i32, i32) {
    %c0_i32 = arith.constant 0 : i32
    %c0_i32_0 = arith.constant 0 : i32
    %c0_i32_1 = arith.constant 0 : i32
    return %c0_i32, %c0_i32_0 : i32, i32
  }
  func.func @transform_19(%arg0: i32) -> (i32, i32) {
    %c0_i32 = arith.constant 0 : i32
    %c0_i32_0 = arith.constant 0 : i32
    %c0_i32_1 = arith.constant 0 : i32
    return %c0_i32, %c0_i32_0 : i32, i32
  }
  func.func @transform_20(%arg0: i32) -> (i32, i32) {
    %c0_i32 = arith.constant 0 : i32
    %c0_i32_0 = arith.constant 0 : i32
    %c0_i32_1 = arith.constant 0 : i32
    return %c0_i32, %c0_i32_0 : i32, i32
  }
  func.func @transform_21(%arg0: i32) -> (i32, i32, i32) {
    %c0_i32 = arith.constant 0 : i32
    %c0_i32_0 = arith.constant 0 : i32
    %c0_i32_1 = arith.constant 0 : i32
    return %arg0, %c0_i32, %c0_i32_0 : i32, i32, i32
  }
}

</mosaic_0001>

<llo_original>
// kernel: encode_images.1
$region0: #{encode_images.1}
  #allocation0 [shape = 'u32[]', space=smem, size = 0x4, offset = 0x4, fixed_abs, tag = 'smem constant byte address 0x4 - core index']
  #allocation1 [shape = 'u32[144,128]{1,0:T(1,128)}', space=vmem, size = 0x12000, scoped, tag = 'internal scratch']
  %s0 = inlined_call_operand.vmem [shape: f32[16,192], index: 0, kind: input, shape index: {}]
  %s1 = inlined_call_operand.vmem [shape: f32[8,128], index: 1, kind: input, shape index: {}]
  %s2 = inlined_call_operand.vmem [shape: f32[8,8], index: 2, kind: input, shape index: {}]
  %s3 = inlined_call_operand.vmem [shape: bf16[192,128], index: 3, kind: input, shape index: {}]
  %s4 = inlined_call_operand.hbm [shape: f32[1,128], index: 4, kind: input, shape index: {}]
  %s5 = inlined_call_operand.hbm [shape: f32[1,128], index: 5, kind: input, shape index: {}]
  %s6 = inlined_call_operand.vmem [shape: f32[2,1,128], index: 6, kind: input, shape index: {}]
  %s7 = inlined_call_operand.vmem [shape: f32[2,1,128], index: 7, kind: input, shape index: {}]
  %s8 = inlined_call_operand.vmem [shape: bf16[2,128,768], index: 8, kind: input, shape index: {}]
  %s9 = inlined_call_operand.hbm [shape: f32[2,1,768], index: 9, kind: input, shape index: {}]
  %s10 = inlined_call_operand.vmem [shape: bf16[2,256,128], index: 10, kind: input, shape index: {}]
  %s11 = inlined_call_operand.hbm [shape: f32[2,1,128], index: 11, kind: input, shape index: {}]
  %s12 = inlined_call_operand.vmem [shape: f32[2,1,128], index: 12, kind: input, shape index: {}]
  %s13 = inlined_call_operand.hbm [shape: f32[2,1,128], index: 13, kind: input, shape index: {}]
  %s14 = inlined_call_operand.vmem [shape: bf16[2,128,256], index: 14, kind: input, shape index: {}]
  %s15 = inlined_call_operand.vmem [shape: f32[2,1,256], index: 15, kind: input, shape index: {}]
  %s16 = inlined_call_operand.hbm [shape: bf16[2,256,128], index: 16, kind: input, shape index: {}]
  %s17 = inlined_call_operand.hbm [shape: f32[2,1,128], index: 17, kind: input, shape index: {}]
  %s18 = inlined_call_operand.hbm [shape: f32[1,128], index: 18, kind: input, shape index: {}]
  %s19 = inlined_call_operand.vmem [shape: f32[1,128], index: 19, kind: input, shape index: {}]
  %s20 = inlined_call_operand.vmem [shape: bf16[128,128], index: 20, kind: input, shape index: {}]
  %s21 = inlined_call_operand.vmem [shape: f32[2,8,128], index: 21, kind: output, shape index: {}]
  %s22 = sld [smem:[#allocation0]]
  $region149: #{encode_images.1} parent=0
    _
  %s24 = ssub.s32 1, %s22
  %s25 = scalar_select 0, %s24, %s22
  $region1: #{encode_images.1} parent=0
    #allocation2 [shape = 'u8[512]{0}', space=vmem, size = 0x400, scoped, tag = 'input window, operand 4, single buffered']
    #allocation3 [shape = 's32[2]{0}', space=sflag, size = 0x8, scoped, tag = 'scoped memory for encode_images.1']
    #allocation4 [shape = 'u8[512]{0}', space=vmem, size = 0x400, scoped, tag = 'input window, operand 5, single buffered']
    #allocation5 [shape = 's32[1]{0}', space=sflag, size = 0x4, scoped, tag = 'scoped memory for encode_images.1']
    #allocation6 [shape = 'u8[6144]{0}', space=vmem, size = 0x1800, scoped, tag = 'input window, operand 9, single buffered']
    #allocation7 [shape = 'u8[1024]{0}', space=vmem, size = 0x400, scoped, tag = 'input window, operand 11, single buffered']
    #allocation8 [shape = 's32[1]{0}', space=sflag, size = 0x4, scoped, tag = 'scoped memory for encode_images.1']
    #allocation9 [shape = 'u8[1024]{0}', space=vmem, size = 0x400, scoped, tag = 'input window, operand 13, single buffered']
    #allocation10 [shape = 'u8[131072]{0}', space=vmem, size = 0x20000, scoped, tag = 'input window, operand 16, single buffered']
    #allocation11 [shape = 's32[1]{0}', space=sflag, size = 0x4, scoped, tag = 'scoped memory for encode_images.1']
    #allocation12 [shape = 'u8[1024]{0}', space=vmem, size = 0x400, scoped, tag = 'input window, operand 17, single buffered']
    #allocation13 [shape = 'u8[512]{0}', space=vmem, size = 0x400, scoped, tag = 'input window, operand 18, single buffered']
    #allocation14 [shape = 's32[1]{0}', space=sflag, size = 0x4, scoped, tag = 'scoped memory for encode_images.1']
    %26 = vsyncpa [#allocation3], 0
    %27 = vsyncpa [#allocation5], 0
    %28 = vsyncpa [#allocation8], 0
    %29 = vsyncpa [#allocation11], 0
    %30 = vsyncpa [#allocation14], 0
    loop: start=0, step=1, limit=4
    $region2: #{encode_images.1} parent=1 // loop_pre_header
      _
    $region3: #{encode_images.1} parent=1 // loop_header
      %s32 = sphi 0, %s36
      %p33 = scmp.ge.s32.totalorder %s32, 4
      %s42 = sphi 0, %s44
      %s45 = sphi 0, %s42
      %s46 = sphi 0, %s45
      %s62 = sphi 0, %s46
      %s66 = sphi 0, %s66
      %s68 = sphi 0, %s66
      %s69 = sphi 0, %s68
      %s83 = sphi 0, %s69
      %s87 = sphi 0, %s87
      %s89 = sphi 0, %s87
      %s90 = sphi 0, %s89
      %s104 = sphi 0, %s90
      %s108 = sphi 0, %s108
      %s110 = sphi 0, %s108
      %s111 = sphi 0, %s110
      %s125 = sphi 0, %s111
      %s129 = sphi 0, %s129
      %s131 = sphi 0, %s129
      %s132 = sphi 0, %s131
      %s146 = sphi 0, %s132
      %s150 = sphi 0, %s150
      %s152 = sphi 0, %s150
      %s153 = sphi 0, %s152
      %s167 = sphi 0, %s153
      %s171 = sphi 0, %s171
      %s173 = sphi 0, %s171
      %s174 = sphi 0, %s173
      %s188 = sphi 0, %s174
      %s192 = sphi 0, %s192
      %s194 = sphi 0, %s192
      %s195 = sphi 0, %s194
      %s209 = sphi 0, %s195
      %s213 = sphi 0, %s213
      %s215 = sphi 0, %s213
      %s216 = sphi 0, %s215
      %s230 = sphi 0, %s216
      %s234 = sphi 0, %s234
      %s236 = sphi 0, %s234
      %s237 = sphi 0, %s236
      %s251 = sphi 0, %s237
      %s255 = sphi 0, %s255
      %s257 = sphi 0, %s255
      %s258 = sphi 0, %s257
      %s272 = sphi 0, %s258
      %s276 = sphi 0, %s276
      %s278 = sphi 0, %s276
      %s279 = sphi 0, %s278
      %s293 = sphi 0, %s279
      %s297 = sphi 0, %s297
      %s299 = sphi 0, %s297
      %s300 = sphi 0, %s299
      %s314 = sphi 0, %s300
      %s318 = sphi 0, %s318
      %s320 = sphi 0, %s318
      %s321 = sphi 0, %s320
      %s335 = sphi 0, %s321
      %s339 = sphi 0, %s339
      %s341 = sphi 0, %s339
      %s342 = sphi 0, %s341
      %s356 = sphi 0, %s342
      %s360 = sphi 0, %s360
      %s362 = sphi 0, %s360
      %s363 = sphi 0, %s362
      %s377 = sphi 0, %s363
      %s381 = sphi 0, %s381
      %s383 = sphi 0, %s381
      %s384 = sphi 0, %s383
      %s398 = sphi 0, %s384
      %s402 = sphi 0, %s402
      %s404 = sphi 0, %s402
      %s405 = sphi 0, %s404
      %s419 = sphi 0, %s405
      %s423 = sphi 0, %s423
      %s425 = sphi 0, %s423
      %s426 = sphi 0, %s425
      %s440 = sphi 0, %s426
      %s444 = sphi 0, %s444
      %s446 = sphi 0, %s444
      %s447 = sphi 0, %s446
      %s461 = sphi 0, %s447
      %s465 = sphi 0, %s465
      %s467 = sphi 0, %s465
      %s468 = sphi 0, %s467
      %s482 = sphi 0, %s468
      %s488 = sphi 0, %s490
      %s491 = sphi 0, %s488
      %s492 = sphi 0, %s491
      %s508 = sphi 0, %s492
    $region4: #{encode_images.1} parent=1 // loop_header_branch
      %35 = sbr.rel (%p33) target = $region8
    $region5: #{encode_images.1} parent=1 // loop_body
      %s37 = ssub.s32 %s32, 1
      %s38 = ssub.s32 %s32, 2
      %s39 = sadd.s32 %s32, 1
      %s40 = ssub.s32 %s32, %s39
      %p41 = scmp.eq.s32.totalorder %s40, 0
      %s43 = sadd.s32 %s42, 1
      %s44 = scalar_select %p41, %s42, %s43
      %p47 = pneg %p41
      %p48 = scmp.eq.s32.totalorder %s32, 1
      %p49 = por %p47, %p48
      %p50 = scmp.ne.s32.totalorder %s42, %s45
      %p51 = scmp.eq.s32.totalorder %s32, 0
      %p52 = por %p50, %p51
      %p53 = scmp.ne.s32.totalorder %s42, %s45
      %p54 = scmp.eq.s32.totalorder %s37, 1
      %p55 = por %p53, %p54
      %p56 = scmp.ne.s32.totalorder %s45, %s46
      %p57 = scmp.eq.s32.totalorder %s37, 0
      %p58 = por %p56, %p57
      %p59 = scmp.ne.s32.totalorder %s45, %s46
      %p60 = scmp.eq.s32.totalorder %s38, 1
      %p61 = por %p59, %p60
      %p63 = scmp.ne.s32.totalorder %s46, %s62
      %p64 = scmp.eq.s32.totalorder %s38, 0
      %p65 = por %p63, %p64
      %s67 = sadd.s32 %s66, 1
      %p70 = scmp.eq.s32.totalorder %s32, 1
      %p71 = scmp.ne.s32.totalorder %s66, %s68
      %p72 = scmp.eq.s32.totalorder %s32, 0
      %p73 = por %p71, %p72
      %p74 = scmp.ne.s32.totalorder %s66, %s68
      %p75 = scmp.eq.s32.totalorder %s37, 1
      %p76 = por %p74, %p75
      %p77 = scmp.ne.s32.totalorder %s68, %s69
      %p78 = scmp.eq.s32.totalorder %s37, 0
      %p79 = por %p77, %p78
      %p80 = scmp.ne.s32.totalorder %s68, %s69
      %p81 = scmp.eq.s32.totalorder %s38, 1
      %p82 = por %p80, %p81
      %p84 = scmp.ne.s32.totalorder %s69, %s83
      %p85 = scmp.eq.s32.totalorder %s38, 0
      %p86 = por %p84, %p85
      %s88 = sadd.s32 %s87, 1
      %p91 = scmp.eq.s32.totalorder %s32, 1
      %p92 = scmp.ne.s32.totalorder %s87, %s89
      %p93 = scmp.eq.s32.totalorder %s32, 0
      %p94 = por %p92, %p93
      %p95 = scmp.ne.s32.totalorder %s87, %s89
      %p96 = scmp.eq.s32.totalorder %s37, 1
      %p97 = por %p95, %p96
      %p98 = scmp.ne.s32.totalorder %s89, %s90
      %p99 = scmp.eq.s32.totalorder %s37, 0
      %p100 = por %p98, %p99
      %p101 = scmp.ne.s32.totalorder %s89, %s90
      %p102 = scmp.eq.s32.totalorder %s38, 1
      %p103 = por %p101, %p102
      %p105 = scmp.ne.s32.totalorder %s90, %s104
      %p106 = scmp.eq.s32.totalorder %s38, 0
      %p107 = por %p105, %p106
      %s109 = sadd.s32 %s108, 1
      %p112 = scmp.eq.s32.totalorder %s32, 1
      %p113 = scmp.ne.s32.totalorder %s108, %s110
      %p114 = scmp.eq.s32.totalorder %s32, 0
      %p115 = por %p113, %p114
      %p116 = scmp.ne.s32.totalorder %s108, %s110
      %p117 = scmp.eq.s32.totalorder %s37, 1
      %p118 = por %p116, %p117
      %p119 = scmp.ne.s32.totalorder %s110, %s111
      %p120 = scmp.eq.s32.totalorder %s37, 0
      %p121 = por %p119, %p120
      %p122 = scmp.ne.s32.totalorder %s110, %s111
      %p123 = scmp.eq.s32.totalorder %s38, 1
      %p124 = por %p122, %p123
      %p126 = scmp.ne.s32.totalorder %s111, %s125
      %p127 = scmp.eq.s32.totalorder %s38, 0
      %p128 = por %p126, %p127
      %s130 = sadd.s32 %s129, 1
      %p133 = scmp.eq.s32.totalorder %s32, 1
      %p134 = scmp.ne.s32.totalorder %s129, %s131
      %p135 = scmp.eq.s32.totalorder %s32, 0
      %p136 = por %p134, %p135
      %p137 = scmp.ne.s32.totalorder %s129, %s131
      %p138 = scmp.eq.s32.totalorder %s37, 1
      %p139 = por %p137, %p138
      %p140 = scmp.ne.s32.totalorder %s131, %s132
      %p141 = scmp.eq.s32.totalorder %s37, 0
      %p142 = por %p140, %p141
      %p143 = scmp.ne.s32.totalorder %s131, %s132
      %p144 = scmp.eq.s32.totalorder %s38, 1
      %p145 = por %p143, %p144
      %p147 = scmp.ne.s32.totalorder %s132, %s146
      %p148 = scmp.eq.s32.totalorder %s38, 0
      %p149 = por %p147, %p148
      %s151 = sadd.s32 %s150, 1
      %p154 = scmp.eq.s32.totalorder %s32, 1
      %p155 = scmp.ne.s32.totalorder %s150, %s152
      %p156 = scmp.eq.s32.totalorder %s32, 0
      %p157 = por %p155, %p156
      %p158 = scmp.ne.s32.totalorder %s150, %s152
      %p159 = scmp.eq.s32.totalorder %s37, 1
      %p160 = por %p158, %p159
      %p161 = scmp.ne.s32.totalorder %s152, %s153
      %p162 = scmp.eq.s32.totalorder %s37, 0
      %p163 = por %p161, %p162
      %p164 = scmp.ne.s32.totalorder %s152, %s153
      %p165 = scmp.eq.s32.totalorder %s38, 1
      %p166 = por %p164, %p165
      %p168 = scmp.ne.s32.totalorder %s153, %s167
      %p169 = scmp.eq.s32.totalorder %s38, 0
      %p170 = por %p168, %p169
      %s172 = sadd.s32 %s171, 1
      %p175 = scmp.eq.s32.totalorder %s32, 1
      %p176 = scmp.ne.s32.totalorder %s171, %s173
      %p177 = scmp.eq.s32.totalorder %s32, 0
      %p178 = por %p176, %p177
      %p179 = scmp.ne.s32.totalorder %s171, %s173
      %p180 = scmp.eq.s32.totalorder %s37, 1
      %p181 = por %p179, %p180
      %p182 = scmp.ne.s32.totalorder %s173, %s174
      %p183 = scmp.eq.s32.totalorder %s37, 0
      %p184 = por %p182, %p183
      %p185 = scmp.ne.s32.totalorder %s173, %s174
      %p186 = scmp.eq.s32.totalorder %s38, 1
      %p187 = por %p185, %p186
      %p189 = scmp.ne.s32.totalorder %s174, %s188
      %p190 = scmp.eq.s32.totalorder %s38, 0
      %p191 = por %p189, %p190
      %s193 = sadd.s32 %s192, 1
      %p196 = scmp.eq.s32.totalorder %s32, 1
      %p197 = scmp.ne.s32.totalorder %s192, %s194
      %p198 = scmp.eq.s32.totalorder %s32, 0
      %p199 = por %p197, %p198
      %p200 = scmp.ne.s32.totalorder %s192, %s194
      %p201 = scmp.eq.s32.totalorder %s37, 1
      %p202 = por %p200, %p201
      %p203 = scmp.ne.s32.totalorder %s194, %s195
      %p204 = scmp.eq.s32.totalorder %s37, 0
      %p205 = por %p203, %p204
      %p206 = scmp.ne.s32.totalorder %s194, %s195
      %p207 = scmp.eq.s32.totalorder %s38, 1
      %p208 = por %p206, %p207
      %p210 = scmp.ne.s32.totalorder %s195, %s209
      %p211 = scmp.eq.s32.totalorder %s38, 0
      %p212 = por %p210, %p211
      %s214 = sadd.s32 %s213, 1
      %p217 = scmp.eq.s32.totalorder %s32, 1
      %p218 = scmp.ne.s32.totalorder %s213, %s215
      %p219 = scmp.eq.s32.totalorder %s32, 0
      %p220 = por %p218, %p219
      %p221 = scmp.ne.s32.totalorder %s213, %s215
      %p222 = scmp.eq.s32.totalorder %s37, 1
      %p223 = por %p221, %p222
      %p224 = scmp.ne.s32.totalorder %s215, %s216
      %p225 = scmp.eq.s32.totalorder %s37, 0
      %p226 = por %p224, %p225
      %p227 = scmp.ne.s32.totalorder %s215, %s216
      %p228 = scmp.eq.s32.totalorder %s38, 1
      %p229 = por %p227, %p228
      %p231 = scmp.ne.s32.totalorder %s216, %s230
      %p232 = scmp.eq.s32.totalorder %s38, 0
      %p233 = por %p231, %p232
      %s235 = sadd.s32 %s234, 1
      %p238 = scmp.eq.s32.totalorder %s32, 1
      %p239 = scmp.ne.s32.totalorder %s234, %s236
      %p240 = scmp.eq.s32.totalorder %s32, 0
      %p241 = por %p239, %p240
      %p242 = scmp.ne.s32.totalorder %s234, %s236
      %p243 = scmp.eq.s32.totalorder %s37, 1
      %p244 = por %p242, %p243
      %p245 = scmp.ne.s32.totalorder %s236, %s237
      %p246 = scmp.eq.s32.totalorder %s37, 0
      %p247 = por %p245, %p246
      %p248 = scmp.ne.s32.totalorder %s236, %s237
      %p249 = scmp.eq.s32.totalorder %s38, 1
      %p250 = por %p248, %p249
      %p252 = scmp.ne.s32.totalorder %s237, %s251
      %p253 = scmp.eq.s32.totalorder %s38, 0
      %p254 = por %p252, %p253
      %s256 = sadd.s32 %s255, 1
      %p259 = scmp.eq.s32.totalorder %s32, 1
      %p260 = scmp.ne.s32.totalorder %s255, %s257
      %p261 = scmp.eq.s32.totalorder %s32, 0
      %p262 = por %p260, %p261
      %p263 = scmp.ne.s32.totalorder %s255, %s257
      %p264 = scmp.eq.s32.totalorder %s37, 1
      %p265 = por %p263, %p264
      %p266 = scmp.ne.s32.totalorder %s257, %s258
      %p267 = scmp.eq.s32.totalorder %s37, 0
      %p268 = por %p266, %p267
      %p269 = scmp.ne.s32.totalorder %s257, %s258
      %p270 = scmp.eq.s32.totalorder %s38, 1
      %p271 = por %p269, %p270
      %p273 = scmp.ne.s32.totalorder %s258, %s272
      %p274 = scmp.eq.s32.totalorder %s38, 0
      %p275 = por %p273, %p274
      %s277 = sadd.s32 %s276, 1
      %p280 = scmp.eq.s32.totalorder %s32, 1
      %p281 = scmp.ne.s32.totalorder %s276, %s278
      %p282 = scmp.eq.s32.totalorder %s32, 0
      %p283 = por %p281, %p282
      %p284 = scmp.ne.s32.totalorder %s276, %s278
      %p285 = scmp.eq.s32.totalorder %s37, 1
      %p286 = por %p284, %p285
      %p287 = scmp.ne.s32.totalorder %s278, %s279
      %p288 = scmp.eq.s32.totalorder %s37, 0
      %p289 = por %p287, %p288
      %p290 = scmp.ne.s32.totalorder %s278, %s279
      %p291 = scmp.eq.s32.totalorder %s38, 1
      %p292 = por %p290, %p291
      %p294 = scmp.ne.s32.totalorder %s279, %s293
      %p295 = scmp.eq.s32.totalorder %s38, 0
      %p296 = por %p294, %p295
      %s298 = sadd.s32 %s297, 1
      %p301 = scmp.eq.s32.totalorder %s32, 1
      %p302 = scmp.ne.s32.totalorder %s297, %s299
      %p303 = scmp.eq.s32.totalorder %s32, 0
      %p304 = por %p302, %p303
      %p305 = scmp.ne.s32.totalorder %s297, %s299
      %p306 = scmp.eq.s32.totalorder %s37, 1
      %p307 = por %p305, %p306
      %p308 = scmp.ne.s32.totalorder %s299, %s300
      %p309 = scmp.eq.s32.totalorder %s37, 0
      %p310 = por %p308, %p309
      %p311 = scmp.ne.s32.totalorder %s299, %s300
      %p312 = scmp.eq.s32.totalorder %s38, 1
      %p313 = por %p311, %p312
      %p315 = scmp.ne.s32.totalorder %s300, %s314
      %p316 = scmp.eq.s32.totalorder %s38, 0
      %p317 = por %p315, %p316
      %s319 = sadd.s32 %s318, 1
      %p322 = scmp.eq.s32.totalorder %s32, 1
      %p323 = scmp.ne.s32.totalorder %s318, %s320
      %p324 = scmp.eq.s32.totalorder %s32, 0
      %p325 = por %p323, %p324
      %p326 = scmp.ne.s32.totalorder %s318, %s320
      %p327 = scmp.eq.s32.totalorder %s37, 1
      %p328 = por %p326, %p327
      %p329 = scmp.ne.s32.totalorder %s320, %s321
      %p330 = scmp.eq.s32.totalorder %s37, 0
      %p331 = por %p329, %p330
      %p332 = scmp.ne.s32.totalorder %s320, %s321
      %p333 = scmp.eq.s32.totalorder %s38, 1
      %p334 = por %p332, %p333
      %p336 = scmp.ne.s32.totalorder %s321, %s335
      %p337 = scmp.eq.s32.totalorder %s38, 0
      %p338 = por %p336, %p337
      %s340 = sadd.s32 %s339, 1
      %p343 = scmp.eq.s32.totalorder %s32, 1
      %p344 = scmp.ne.s32.totalorder %s339, %s341
      %p345 = scmp.eq.s32.totalorder %s32, 0
      %p346 = por %p344, %p345
      %p347 = scmp.ne.s32.totalorder %s339, %s341
      %p348 = scmp.eq.s32.totalorder %s37, 1
      %p349 = por %p347, %p348
      %p350 = scmp.ne.s32.totalorder %s341, %s342
      %p351 = scmp.eq.s32.totalorder %s37, 0
      %p352 = por %p350, %p351
      %p353 = scmp.ne.s32.totalorder %s341, %s342
      %p354 = scmp.eq.s32.totalorder %s38, 1
      %p355 = por %p353, %p354
      %p357 = scmp.ne.s32.totalorder %s342, %s356
      %p358 = scmp.eq.s32.totalorder %s38, 0
      %p359 = por %p357, %p358
      %s361 = sadd.s32 %s360, 1
      %p364 = scmp.eq.s32.totalorder %s32, 1
      %p365 = scmp.ne.s32.totalorder %s360, %s362
      %p366 = scmp.eq.s32.totalorder %s32, 0
      %p367 = por %p365, %p366
      %p368 = scmp.ne.s32.totalorder %s360, %s362
      %p369 = scmp.eq.s32.totalorder %s37, 1
      %p370 = por %p368, %p369
      %p371 = scmp.ne.s32.totalorder %s362, %s363
      %p372 = scmp.eq.s32.totalorder %s37, 0
      %p373 = por %p371, %p372
      %p374 = scmp.ne.s32.totalorder %s362, %s363
      %p375 = scmp.eq.s32.totalorder %s38, 1
      %p376 = por %p374, %p375
      %p378 = scmp.ne.s32.totalorder %s363, %s377
      %p379 = scmp.eq.s32.totalorder %s38, 0
      %p380 = por %p378, %p379
      %s382 = sadd.s32 %s381, 1
      %p385 = scmp.eq.s32.totalorder %s32, 1
      %p386 = scmp.ne.s32.totalorder %s381, %s383
      %p387 = scmp.eq.s32.totalorder %s32, 0
      %p388 = por %p386, %p387
      %p389 = scmp.ne.s32.totalorder %s381, %s383
      %p390 = scmp.eq.s32.totalorder %s37, 1
      %p391 = por %p389, %p390
      %p392 = scmp.ne.s32.totalorder %s383, %s384
      %p393 = scmp.eq.s32.totalorder %s37, 0
      %p394 = por %p392, %p393
      %p395 = scmp.ne.s32.totalorder %s383, %s384
      %p396 = scmp.eq.s32.totalorder %s38, 1
      %p397 = por %p395, %p396
      %p399 = scmp.ne.s32.totalorder %s384, %s398
      %p400 = scmp.eq.s32.totalorder %s38, 0
      %p401 = por %p399, %p400
      %s403 = sadd.s32 %s402, 1
      %p406 = scmp.eq.s32.totalorder %s32, 1
      %p407 = scmp.ne.s32.totalorder %s402, %s404
      %p408 = scmp.eq.s32.totalorder %s32, 0
      %p409 = por %p407, %p408
      %p410 = scmp.ne.s32.totalorder %s402, %s404
      %p411 = scmp.eq.s32.totalorder %s37, 1
      %p412 = por %p410, %p411
      %p413 = scmp.ne.s32.totalorder %s404, %s405
      %p414 = scmp.eq.s32.totalorder %s37, 0
      %p415 = por %p413, %p414
      %p416 = scmp.ne.s32.totalorder %s404, %s405
      %p417 = scmp.eq.s32.totalorder %s38, 1
      %p418 = por %p416, %p417
      %p420 = scmp.ne.s32.totalorder %s405, %s419
      %p421 = scmp.eq.s32.totalorder %s38, 0
      %p422 = por %p420, %p421
      %s424 = sadd.s32 %s423, 1
      %p427 = scmp.eq.s32.totalorder %s32, 1
      %p428 = scmp.ne.s32.totalorder %s423, %s425
      %p429 = scmp.eq.s32.totalorder %s32, 0
      %p430 = por %p428, %p429
      %p431 = scmp.ne.s32.totalorder %s423, %s425
      %p432 = scmp.eq.s32.totalorder %s37, 1
      %p433 = por %p431, %p432
      %p434 = scmp.ne.s32.totalorder %s425, %s426
      %p435 = scmp.eq.s32.totalorder %s37, 0
      %p436 = por %p434, %p435
      %p437 = scmp.ne.s32.totalorder %s425, %s426
      %p438 = scmp.eq.s32.totalorder %s38, 1
      %p439 = por %p437, %p438
      %p441 = scmp.ne.s32.totalorder %s426, %s440
      %p442 = scmp.eq.s32.totalorder %s38, 0
      %p443 = por %p441, %p442
      %s445 = sadd.s32 %s444, 1
      %p448 = scmp.eq.s32.totalorder %s32, 1
      %p449 = scmp.ne.s32.totalorder %s444, %s446
      %p450 = scmp.eq.s32.totalorder %s32, 0
      %p451 = por %p449, %p450
      %p452 = scmp.ne.s32.totalorder %s444, %s446
      %p453 = scmp.eq.s32.totalorder %s37, 1
      %p454 = por %p452, %p453
      %p455 = scmp.ne.s32.totalorder %s446, %s447
      %p456 = scmp.eq.s32.totalorder %s37, 0
      %p457 = por %p455, %p456
      %p458 = scmp.ne.s32.totalorder %s446, %s447
      %p459 = scmp.eq.s32.totalorder %s38, 1
      %p460 = por %p458, %p459
      %p462 = scmp.ne.s32.totalorder %s447, %s461
      %p463 = scmp.eq.s32.totalorder %s38, 0
      %p464 = por %p462, %p463
      %s466 = sadd.s32 %s465, 1
      %p469 = scmp.eq.s32.totalorder %s32, 1
      %p470 = scmp.ne.s32.totalorder %s465, %s467
      %p471 = scmp.eq.s32.totalorder %s32, 0
      %p472 = por %p470, %p471
      %p473 = scmp.ne.s32.totalorder %s465, %s467
      %p474 = scmp.eq.s32.totalorder %s37, 1
      %p475 = por %p473, %p474
      %p476 = scmp.ne.s32.totalorder %s467, %s468
      %p477 = scmp.eq.s32.totalorder %s37, 0
      %p478 = por %p476, %p477
      %p479 = scmp.ne.s32.totalorder %s467, %s468
      %p480 = scmp.eq.s32.totalorder %s38, 1
      %p481 = por %p479, %p480
      %p483 = scmp.ne.s32.totalorder %s468, %s482
      %p484 = scmp.eq.s32.totalorder %s38, 0
      %p485 = por %p483, %p484
      %s486 = ssub.s32 %s32, %s39
      %p487 = scmp.eq.s32.totalorder %s486, 0
      %s489 = sadd.s32 %s488, 1
      %s490 = scalar_select %p487, %s488, %s489
      %p493 = pneg %p487
      %p494 = scmp.eq.s32.totalorder %s32, 1
      %p495 = por %p493, %p494
      %p496 = scmp.ne.s32.totalorder %s488, %s491
      %p497 = scmp.eq.s32.totalorder %s32, 0
      %p498 = por %p496, %p497
      %p499 = scmp.ne.s32.totalorder %s488, %s491
      %p500 = scmp.eq.s32.totalorder %s37, 1
      %p501 = por %p499, %p500
      %p502 = scmp.ne.s32.totalorder %s491, %s492
      %p503 = scmp.eq.s32.totalorder %s37, 0
      %p504 = por %p502, %p503
      %p505 = scmp.ne.s32.totalorder %s491, %s492
      %p506 = scmp.eq.s32.totalorder %s38, 1
      %p507 = por %p505, %p506
      %p509 = scmp.ne.s32.totalorder %s492, %s508
      %p510 = scmp.eq.s32.totalorder %s38, 0
      %p511 = por %p509, %p510
      %p512 = scmp.le.s32.totalorder 1, %s32
      %p513 = scmp.lt.s32.totalorder %s32, 3
      %p514 = pnand %p512, %p513
      %p515 = pneg %p514
      // Predicated region
      $region9: #{encode_images.1} parent=5 // pred_check
        _
      $region10: #{encode_images.1} parent=5 // pred_check_branch
        %517 = sbr.rel (%p514) target = $region12
      $region11: #{encode_images.1} parent=5 // pred_region
        %s518 = ssub.s32 %s32, 1
        // Predicated region
        $region13: #{encode_images.1} parent=11 // pred_check
          %p519 = pneg %p79
        $region14: #{encode_images.1} parent=11 // pred_check_branch
          %521 = sbr.rel (%p519) target = $region16
        $region15: #{encode_images.1} parent=11 // pred_region
          _
        $region16: #{encode_images.1} parent=11 // pred_fallthru
          _
        // Predicated region
        $region17: #{encode_images.1} parent=11 // pred_check
          %p522 = pneg %p100
        $region18: #{encode_images.1} parent=11 // pred_check_branch
          %524 = sbr.rel (%p522) target = $region20
        $region19: #{encode_images.1} parent=11 // pred_region
          _
        $region20: #{encode_images.1} parent=11 // pred_fallthru
          _
        // Predicated region
        $region21: #{encode_images.1} parent=11 // pred_check
          %p525 = pneg %p121
        $region22: #{encode_images.1} parent=11 // pred_check_branch
          %527 = sbr.rel (%p525) target = $region24
        $region23: #{encode_images.1} parent=11 // pred_region
          _
        $region24: #{encode_images.1} parent=11 // pred_fallthru
          _
        // Predicated region
        $region25: #{encode_images.1} parent=11 // pred_check
          %p528 = pneg %p142
        $region26: #{encode_images.1} parent=11 // pred_check_branch
          %530 = sbr.rel (%p528) target = $region28
        $region27: #{encode_images.1} parent=11 // pred_region
          %s532 = ssub.s32 16, 16
          %533 = vsyncadd [#allocation3], %s532
          %s535 = sshll.u32 [#allocation2], 4
          %s536 = int_to_ptr.vmem [resolvable:$true] %s535
          %538 = dma.hbm_to_vmem [thread:$0]  %s4, 16, %s536, [#allocation3]
        $region28: #{encode_images.1} parent=11 // pred_fallthru
          _
        // Predicated region
        $region29: #{encode_images.1} parent=11 // pred_check
          %p539 = pneg %p163
        $region30: #{encode_images.1} parent=11 // pred_check_branch
          %541 = sbr.rel (%p539) target = $region32
        $region31: #{encode_images.1} parent=11 // pred_region
          %s543 = ssub.s32 16, 16
          %544 = vsyncadd [#allocation5], %s543
          %s546 = sshll.u32 [#allocation4], 4
          %s547 = int_to_ptr.vmem [resolvable:$true] %s546
          %549 = dma.hbm_to_vmem [thread:$0]  %s5, 16, %s547, [#allocation5]
        $region32: #{encode_images.1} parent=11 // pred_fallthru
          _
        // Predicated region
        $region33: #{encode_images.1} parent=11 // pred_check
          %p550 = pneg %p184
        $region34: #{encode_images.1} parent=11 // pred_check_branch
          %552 = sbr.rel (%p550) target = $region36
        $region35: #{encode_images.1} parent=11 // pred_region
          _
        $region36: #{encode_images.1} parent=11 // pred_fallthru
          _
        // Predicated region
        $region37: #{encode_images.1} parent=11 // pred_check
          %p553 = pneg %p205
        $region38: #{encode_images.1} parent=11 // pred_check_branch
          %555 = sbr.rel (%p553) target = $region40
        $region39: #{encode_images.1} parent=11 // pred_region
          _
        $region40: #{encode_images.1} parent=11 // pred_fallthru
          _
        // Predicated region
        $region41: #{encode_images.1} parent=11 // pred_check
          %p556 = pneg %p226
        $region42: #{encode_images.1} parent=11 // pred_check_branch
          %558 = sbr.rel (%p556) target = $region44
        $region43: #{encode_images.1} parent=11 // pred_region
          _
        $region44: #{encode_images.1} parent=11 // pred_fallthru
          _
        // Predicated region
        $region45: #{encode_images.1} parent=11 // pred_check
          %p559 = pneg %p247
        $region46: #{encode_images.1} parent=11 // pred_check_branch
          %561 = sbr.rel (%p559) target = $region48
        $region47: #{encode_images.1} parent=11 // pred_region
          %s563 = ssub.s32 192, 192
          %564 = vsyncadd [#allocation5], %s563
          %s565 = sshll.u32 [#allocation6], 4
          %s566 = int_to_ptr.vmem [resolvable:$true] %s565
          %571 = dma.hbm_to_vmem [thread:$0]  %s9, 192, %s566, [#allocation5], 96, 96, 6
        $region48: #{encode_images.1} parent=11 // pred_fallthru
          _
        // Predicated region
        $region49: #{encode_images.1} parent=11 // pred_check
          %p572 = pneg %p268
        $region50: #{encode_images.1} parent=11 // pred_check_branch
          %574 = sbr.rel (%p572) target = $region52
        $region51: #{encode_images.1} parent=11 // pred_region
          _
        $region52: #{encode_images.1} parent=11 // pred_fallthru
          _
        // Predicated region
        $region53: #{encode_images.1} parent=11 // pred_check
          %p575 = pneg %p289
        $region54: #{encode_images.1} parent=11 // pred_check_branch
          %577 = sbr.rel (%p575) target = $region56
        $region55: #{encode_images.1} parent=11 // pred_region
          %s579 = ssub.s32 32, 32
          %580 = vsyncadd [#allocation8], %s579
          %s581 = sshll.u32 [#allocation7], 4
          %s582 = int_to_ptr.vmem [resolvable:$true] %s581
          %587 = dma.hbm_to_vmem [thread:$0]  %s11, 32, %s582, [#allocation8], 16, 16, 1
        $region56: #{encode_images.1} parent=11 // pred_fallthru
          _
        // Predicated region
        $region57: #{encode_images.1} parent=11 // pred_check
          %p588 = pneg %p310
        $region58: #{encode_images.1} parent=11 // pred_check_branch
          %590 = sbr.rel (%p588) target = $region60
        $region59: #{encode_images.1} parent=11 // pred_region
          _
        $region60: #{encode_images.1} parent=11 // pred_fallthru
          _
        // Predicated region
        $region61: #{encode_images.1} parent=11 // pred_check
          %p591 = pneg %p331
        $region62: #{encode_images.1} parent=11 // pred_check_branch
          %593 = sbr.rel (%p591) target = $region64
        $region63: #{encode_images.1} parent=11 // pred_region
          %s595 = ssub.s32 32, 32
          %596 = vsyncadd [#allocation8], %s595
          %s597 = sshll.u32 [#allocation9], 4
          %s598 = int_to_ptr.vmem [resolvable:$true] %s597
          %603 = dma.hbm_to_vmem [thread:$0]  %s13, 32, %s598, [#allocation8], 16, 16, 1
        $region64: #{encode_images.1} parent=11 // pred_fallthru
          _
        // Predicated region
        $region65: #{encode_images.1} parent=11 // pred_check
          %p604 = pneg %p352
        $region66: #{encode_images.1} parent=11 // pred_check_branch
          %606 = sbr.rel (%p604) target = $region68
        $region67: #{encode_images.1} parent=11 // pred_region
          _
        $region68: #{encode_images.1} parent=11 // pred_fallthru
          _
        // Predicated region
        $region69: #{encode_images.1} parent=11 // pred_check
          %p607 = pneg %p373
        $region70: #{encode_images.1} parent=11 // pred_check_branch
          %609 = sbr.rel (%p607) target = $region72
        $region71: #{encode_images.1} parent=11 // pred_region
          _
        $region72: #{encode_images.1} parent=11 // pred_fallthru
          _
        // Predicated region
        $region73: #{encode_images.1} parent=11 // pred_check
          %p610 = pneg %p394
        $region74: #{encode_images.1} parent=11 // pred_check_branch
          %612 = sbr.rel (%p610) target = $region76
        $region75: #{encode_images.1} parent=11 // pred_region
          %s614 = ssub.s32 4096, 4096
          %615 = vsyncadd [#allocation11], %s614
          %s616 = sshll.u32 [#allocation10], 4
          %s617 = int_to_ptr.vmem [resolvable:$true] %s616
          %622 = dma.hbm_to_vmem [thread:$0]  %s16, 4096, %s617, [#allocation11], 64, 64, 4
        $region76: #{encode_images.1} parent=11 // pred_fallthru
          _
        // Predicated region
        $region77: #{encode_images.1} parent=11 // pred_check
          %p623 = pneg %p415
        $region78: #{encode_images.1} parent=11 // pred_check_branch
          %625 = sbr.rel (%p623) target = $region80
        $region79: #{encode_images.1} parent=11 // pred_region
          %s627 = ssub.s32 32, 32
          %628 = vsyncadd [#allocation11], %s627
          %s629 = sshll.u32 [#allocation12], 4
          %s630 = int_to_ptr.vmem [resolvable:$true] %s629
          %635 = dma.hbm_to_vmem [thread:$0]  %s17, 32, %s630, [#allocation11], 16, 16, 1
        $region80: #{encode_images.1} parent=11 // pred_fallthru
          _
        // Predicated region
        $region81: #{encode_images.1} parent=11 // pred_check
          %p636 = pneg %p436
        $region82: #{encode_images.1} parent=11 // pred_check_branch
          %638 = sbr.rel (%p636) target = $region84
        $region83: #{encode_images.1} parent=11 // pred_region
          %s640 = ssub.s32 16, 16
          %641 = vsyncadd [#allocation14], %s640
          %s643 = sshll.u32 [#allocation13], 4
          %s644 = int_to_ptr.vmem [resolvable:$true] %s643
          %646 = dma.hbm_to_vmem [thread:$0]  %s18, 16, %s644, [#allocation14]
        $region84: #{encode_images.1} parent=11 // pred_fallthru
          _
        // Predicated region
        $region85: #{encode_images.1} parent=11 // pred_check
          %p647 = pneg %p457
        $region86: #{encode_images.1} parent=11 // pred_check_branch
          %649 = sbr.rel (%p647) target = $region88
        $region87: #{encode_images.1} parent=11 // pred_region
          _
        $region88: #{encode_images.1} parent=11 // pred_fallthru
          _
        // Predicated region
        $region89: #{encode_images.1} parent=11 // pred_check
          %p650 = pneg %p478
        $region90: #{encode_images.1} parent=11 // pred_check_branch
          %652 = sbr.rel (%p650) target = $region92
        $region91: #{encode_images.1} parent=11 // pred_region
          _
        $region92: #{encode_images.1} parent=11 // pred_fallthru
          _
      $region12: #{encode_images.1} parent=5 // pred_fallthru
        _
      %p653 = scmp.lt.s32.totalorder %s32, 2
      // Predicated region
      $region93: #{encode_images.1} parent=5 // pred_check
        %p654 = pneg %p653
      $region94: #{encode_images.1} parent=5 // pred_check_branch
        %656 = sbr.rel (%p654) target = $region96
      $region95: #{encode_images.1} parent=5 // pred_region
        // Predicated region
        $region97: #{encode_images.1} parent=95 // pred_check
          %p657 = pneg %p52
        $region98: #{encode_images.1} parent=95 // pred_check_branch
          %659 = sbr.rel (%p657) target = $region100
        $region99: #{encode_images.1} parent=95 // pred_region
          %p660 = scmp.lt.s32.totalorder %s32, 1
          %s661 = scalar_select %p660, %s32, 1
          %s662 = smul.addr %s661, 2
          %s663 = smul.addr %s662, 8
          %s664 = scalar_lea.vmem %s0, %s663
        $region100: #{encode_images.1} parent=95 // pred_fallthru
          _
      $region96: #{encode_images.1} parent=5 // pred_fallthru
        _
      %p665 = scmp.le.s32.totalorder 1, %s32
      %p666 = scmp.lt.s32.totalorder %s32, 3
      %p667 = pnand %p665, %p666
      %p668 = pneg %p667
      // Predicated region
      $region101: #{encode_images.1} parent=5 // pred_check
        _
      $region102: #{encode_images.1} parent=5 // pred_check_branch
        %670 = sbr.rel (%p667) target = $region104
      $region103: #{encode_images.1} parent=5 // pred_region
        %s671 = ssub.s32 %s32, 1
        // Predicated region
        $region105: #{encode_images.1} parent=103 // pred_check
          %p672 = pneg %p142
        $region106: #{encode_images.1} parent=103 // pred_check_branch
          %674 = sbr.rel (%p672) target = $region108
        $region107: #{encode_images.1} parent=103 // pred_region
          %675 = dma.done [#allocation3], 16
        $region108: #{encode_images.1} parent=103 // pred_fallthru
          _
        // Predicated region
        $region109: #{encode_images.1} parent=103 // pred_check
          %p676 = pneg %p163
        $region110: #{encode_images.1} parent=103 // pred_check_branch
          %678 = sbr.rel (%p676) target = $region112
        $region111: #{encode_images.1} parent=103 // pred_region
          %679 = dma.done [#allocation5], 16
        $region112: #{encode_images.1} parent=103 // pred_fallthru
          _
        // Predicated region
        $region113: #{encode_images.1} parent=103 // pred_check
          %p680 = pneg %p247
        $region114: #{encode_images.1} parent=103 // pred_check_branch
          %682 = sbr.rel (%p680) target = $region116
        $region115: #{encode_images.1} parent=103 // pred_region
          %683 = dma.done [#allocation5], 192
        $region116: #{encode_images.1} parent=103 // pred_fallthru
          _
        // Predicated region
        $region117: #{encode_images.1} parent=103 // pred_check
          %p684 = pneg %p289
        $region118: #{encode_images.1} parent=103 // pred_check_branch
          %686 = sbr.rel (%p684) target = $region120
        $region119: #{encode_images.1} parent=103 // pred_region
          %687 = dma.done [#allocation8], 32
        $region120: #{encode_images.1} parent=103 // pred_fallthru
          _
        // Predicated region
        $region121: #{encode_images.1} parent=103 // pred_check
          %p688 = pneg %p331
        $region122: #{encode_images.1} parent=103 // pred_check_branch
          %690 = sbr.rel (%p688) target = $region124
        $region123: #{encode_images.1} parent=103 // pred_region
          %691 = dma.done [#allocation8], 32
        $region124: #{encode_images.1} parent=103 // pred_fallthru
          _
        // Predicated region
        $region125: #{encode_images.1} parent=103 // pred_check
          %p692 = pneg %p394
        $region126: #{encode_images.1} parent=103 // pred_check_branch
          %694 = sbr.rel (%p692) target = $region128
        $region127: #{encode_images.1} parent=103 // pred_region
          %695 = dma.done [#allocation11], 4096
        $region128: #{encode_images.1} parent=103 // pred_fallthru
          _
        // Predicated region
        $region129: #{encode_images.1} parent=103 // pred_check
          %p696 = pneg %p415
        $region130: #{encode_images.1} parent=103 // pred_check_branch
          %698 = sbr.rel (%p696) target = $region132
        $region131: #{encode_images.1} parent=103 // pred_region
          %699 = dma.done [#allocation11], 32
        $region132: #{encode_images.1} parent=103 // pred_fallthru
          _
        // Predicated region
        $region133: #{encode_images.1} parent=103 // pred_check
          %p700 = pneg %p436
        $region134: #{encode_images.1} parent=103 // pred_check_branch
          %702 = sbr.rel (%p700) target = $region136
        $region135: #{encode_images.1} parent=103 // pred_region
          %703 = dma.done [#allocation14], 16
        $region136: #{encode_images.1} parent=103 // pred_fallthru
          _
        %p704 = scmp.lt.s32.totalorder %s37, 1
        %s705 = scalar_select %p704, %s37, 1
        %s706 = smul.addr %s705, 2
        %s707 = smul.addr %s706, 8
        %s708 = scalar_lea.vmem %s0, %s707
        %p709 = pneg %p58
        %p710 = pneg %p55
        %p711 = pneg %p79
        %p712 = pneg %p76
        %p713 = pneg %p100
        %p714 = pneg %p97
        %p715 = pneg %p121
        %p716 = pneg %p118
        %p717 = pneg %p142
        %p718 = pneg %p139
        %p719 = pneg %p163
        %p720 = pneg %p160
        %p721 = pneg %p184
        %p722 = pneg %p181
        %p723 = pneg %p205
        %p724 = pneg %p202
        %p725 = pneg %p226
        %p726 = pneg %p223
        %p727 = pneg %p247
        %p728 = pneg %p244
        %p729 = pneg %p268
        %p730 = pneg %p265
        %p731 = pneg %p289
        %p732 = pneg %p286
        %p733 = pneg %p310
        %p734 = pneg %p307
        %p735 = pneg %p331
        %p736 = pneg %p328
        %p737 = pneg %p352
        %p738 = pneg %p349
        %p739 = pneg %p373
        %p740 = pneg %p370
        %p741 = pneg %p394
        %p742 = pneg %p391
        %p743 = pneg %p415
        %p744 = pneg %p412
        %p745 = pneg %p436
        %p746 = pneg %p433
        %p747 = pneg %p457
        %p748 = pneg %p454
        %p749 = pneg %p478
        %p750 = pneg %p475
        %p751 = pneg %p504
        %p752 = pneg %p501
        %p753 = scmp.lt.s32.totalorder %s37, 1
        %s754 = scalar_select %p753, %s37, 1
        %s755 = smul.addr %s754, 8
        %s756 = scalar_lea.vmem %s21, %s755
        %p757 = scmp.lt.s32.totalorder %s37, 1
        %s758 = scalar_select %p757, %s37, 1
        %s759 = smul.addr %s758, 2
        %s760 = smul.addr %s759, 8
        %s761 = scalar_lea.vmem %s0, %s760
        %p762 = scmp.lt.s32.totalorder %s37, 1
        %s763 = scalar_select %p762, %s37, 1
        %s764 = smul.addr %s763, 8
        %s765 = scalar_lea.vmem %s21, %s764
        %v767 = vld [vmem:[%s761] sm:$0xff]
        %v768 = vld [vmem:[%s761 + $0x8] sm:$0xff]
        %v769 = vld [vmem:[%s3] sm:$0xf]
        %v770 = vld [vmem:[%s3 + $0x4] sm:$0xf]
        %v771 = vld [vmem:[%s3 + $0x8] sm:$0xf]
        %v772 = vld [vmem:[%s3 + $0xc] sm:$0xf]
        %v773 = vld [vmem:[%s3 + $0x10] sm:$0xf]
        %v774 = vld [vmem:[%s3 + $0x14] sm:$0xf]
        %v775 = vld [vmem:[%s3 + $0x18] sm:$0xf]
        %v776 = vld [vmem:[%s3 + $0x1c] sm:$0xf]
        %v777 = vld [vmem:[%s3 + $0x20] sm:$0xf]
        %v778 = vld [vmem:[%s3 + $0x24] sm:$0xf]
        %v779 = vld [vmem:[%s3 + $0x28] sm:$0xf]
        %v780 = vld [vmem:[%s3 + $0x2c] sm:$0xf]
        %v781 = vld [vmem:[%s3 + $0x30] sm:$0xf]
        %v782 = vld [vmem:[%s3 + $0x34] sm:$0xf]
        %v783 = vld [vmem:[%s3 + $0x38] sm:$0xf]
        %v784 = vld [vmem:[%s3 + $0x3c] sm:$0xf]
        %v785 = vld [vmem:[%s3 + $0x40] sm:$0xf]
        %v786 = vld [vmem:[%s3 + $0x44] sm:$0xf]
        %v787 = vld [vmem:[%s3 + $0x48] sm:$0xf]
        %v788 = vld [vmem:[%s3 + $0x4c] sm:$0xf]
        %v789 = vld [vmem:[%s3 + $0x50] sm:$0xf]
        %v790 = vld [vmem:[%s3 + $0x54] sm:$0xf]
        %v791 = vld [vmem:[%s3 + $0x58] sm:$0xf]
        %v792 = vld [vmem:[%s3 + $0x5c] sm:$0xf]
        %v793 = vpack.c.bf16 %v767, %v767
        %v794 = vpack.c.bf16 %v768, %v768
        %v795 = vld [vmem:[%s1] sm:$0xff]
        %v820 = vunpack.c.l.b16 %v769
        %v821 = vunpack.c.l.b16 %v770
        %v822 = vunpack.c.l.b16 %v771
        %v823 = vunpack.c.l.b16 %v772
        %v824 = vunpack.c.l.b16 %v773
        %v825 = vunpack.c.l.b16 %v774
        %v826 = vunpack.c.l.b16 %v775
        %v827 = vunpack.c.l.b16 %v776
        %v828 = vunpack.c.l.b16 %v777
        %v829 = vunpack.c.l.b16 %v778
        %v830 = vunpack.c.l.b16 %v779
        %v831 = vunpack.c.l.b16 %v780
        %v832 = vunpack.c.l.b16 %v781
        %v833 = vunpack.c.l.b16 %v782
        %v834 = vunpack.c.l.b16 %v783
        %v835 = vunpack.c.l.b16 %v784
        %v836 = vunpack.c.l.b16 %v785
        %v837 = vunpack.c.l.b16 %v786
        %v838 = vunpack.c.l.b16 %v787
        %v839 = vunpack.c.l.b16 %v788
        %v840 = vunpack.c.l.b16 %v789
        %v841 = vunpack.c.l.b16 %v790
        %v842 = vunpack.c.l.b16 %v791
        %v843 = vunpack.c.l.b16 %v792
        %v844 = vpack.c.b16 %v821, %v820
        %v845 = vpack.c.b16 %v823, %v822
        %v846 = vpack.c.b16 %v825, %v824
        %v847 = vpack.c.b16 %v827, %v826
        %v848 = vpack.c.b16 %v829, %v828
        %v849 = vpack.c.b16 %v831, %v830
        %v850 = vpack.c.b16 %v833, %v832
        %v851 = vpack.c.b16 %v835, %v834
        %v852 = vpack.c.b16 %v837, %v836
        %v853 = vpack.c.b16 %v839, %v838
        %v854 = vpack.c.b16 %v841, %v840
        %v855 = vpack.c.b16 %v843, %v842
        %vm868 = vcmask 523264
        %v870 = vsel %vm868, %v794, 0
        %872 = vmatprep.subr.bf16.mxu0 0
        %873 = vmatpush1.bf16.msra.mxu0 %v851
        %874 = vmatprep.subr.bf16.mxu0 0
        %875 = vmatpush1.bf16.msra.mxu0 %v850
        %876 = vmatprep.subr.bf16.mxu0 0
        %877 = vmatpush1.bf16.msra.mxu0 %v849
        %878 = vmatprep.subr.bf16.mxu0 0
        %879 = vmatpush1.bf16.msra.mxu0 %v848
        %880 = vmatprep.subr.bf16.mxu0 0
        %881 = vmatpush1.bf16.msra.mxu0 %v847
        %882 = vmatprep.subr.bf16.mxu0 0
        %883 = vmatpush1.bf16.msra.mxu0 %v846
        %884 = vmatprep.subr.bf16.mxu0 0
        %885 = vmatpush1.bf16.msra.mxu0 %v845
        %886 = vmatprep.subr.bf16.mxu0 0
        %887 = vmatpush1.bf16.msra.mxu0 %v844
        %888 = vmatprep.subr.bf16.mxu0 0
        %889 = vmatpush2.bf16.msra.mxu0 0
        %890 = vmatprep.subr.bf16.mxu0 0
        %891 = vmatpush2.bf16.msra.mxu0 0
        %892 = vmatprep.subr.bf16.mxu0 0
        %893 = vmatpush2.bf16.msra.mxu0 0
        %894 = vmatprep.subr.bf16.mxu0 0
        %895 = vmatpush2.bf16.msra.mxu0 0
        %896 = vmatprep.subr.bf16.mxu0 0
        %897 = vmatpush2.bf16.msra.mxu0 %v855
        %898 = vmatprep.subr.bf16.mxu0 0
        %899 = vmatpush2.bf16.msra.mxu0 %v854
        %900 = vmatprep.subr.bf16.mxu0 0
        %901 = vmatpush2.bf16.msra.mxu0 %v853
        %902 = vmatprep.subr.bf16.mxu0 0
        %903 = vmatpush2.bf16.msra.mxu0 %v852
        %904 = vmatprep.mubr.bf16.mxu0 %v870
        %905 = vmatmul.mubr.bf16.gmra.mxu0 %v793
        %v906 = vpop.f32.mrf.mxu0
        %v907 = vadd.f32 %v795, %v906
        %v908 = vpop.f32.mrf.mxu0
        %v909 = vpop.f32.mrf.mxu0
        %v910 = vpop.f32.mrf.mxu0
        %911 = vdwg.mxu0
        %v912 = vld [vmem:[#allocation2] sm:$0x1]
        %v913 = vld [vmem:[#allocation4] sm:$0x1]
        %914 = vadd.xlane.f32.xlu0 %v907
        %v915 = vpop.xlane.xlu0 %914
        %v916 = vmul.f32 %v915, 0.015625
        %v917 = vmul.f32 %v907, %v907
        %918 = vadd.xlane.f32.xlu0 %v917
        %v919 = vpop.xlane.xlu0 %918
        %v920 = vmul.f32 %v919, 0.015625
        %v921 = vmul.f32 %v916, %v916
        %v922 = vsub.f32 %v920, %v921
        %v923 = vsub.f32 %v907, %v916
        %v924 = vadd.f32 %v922, 1e-05
        %v925 = vrsqrt.pop %v924
        %v926 = vmul.f32 %v923, %v925
        %v928 = vlaneseq
        %v929 = vshrl.u32 %v928, 7
        %v930 = vsub.s32 0, %v929
        %v931 = vrot.slane %v912, %v930
        %v933 = vmul.f32 %v926, %v931
        %v935 = vlaneseq
        %v936 = vshrl.u32 %v935, 7
        %v937 = vsub.s32 0, %v936
        %v938 = vrot.slane %v913, %v937
        %v940 = vadd.f32 %v933, %v938
        %v941 = vld [vmem:[%s2] sm:$0xff]
        %v942 = vld [vmem:[%s6] sm:$0x1]
        %v943 = vld [vmem:[%s7] sm:$0x1]
        %944 = vadd.xlane.f32.xlu0 %v940
        %v945 = vpop.xlane.xlu0 %944
        %v946 = vmul.f32 %v945, 0.015625
        %v947 = vmul.f32 %v940, %v940
        %948 = vadd.xlane.f32.xlu0 %v947
        %v949 = vpop.xlane.xlu0 %948
        %v950 = vmul.f32 %v949, 0.015625
        %v951 = vmul.f32 %v946, %v946
        %v952 = vsub.f32 %v950, %v951
        %v953 = vsub.f32 %v940, %v946
        %v954 = vadd.f32 %v952, 1e-05
        %v955 = vrsqrt.pop %v954
        %v956 = vmul.f32 %v953, %v955
        %v958 = vlaneseq
        %v959 = vshrl.u32 %v958, 7
        %v960 = vsub.s32 0, %v959
        %v961 = vrot.slane %v942, %v960
        %v963 = vmul.f32 %v956, %v961
        %v965 = vlaneseq
        %v966 = vshrl.u32 %v965, 7
        %v967 = vsub.s32 0, %v966
        %v968 = vrot.slane %v943, %v967
        %v970 = vadd.f32 %v963, %v968
        %v971 = vld [vmem:[%s8] sm:$0xff]
        %v972 = vld [vmem:[%s8 + $0x8] sm:$0xff]
        %v973 = vld [vmem:[%s8 + $0x10] sm:$0xff]
        %v974 = vld [vmem:[%s8 + $0x18] sm:$0xff]
        %v975 = vld [vmem:[%s8 + $0x20] sm:$0xff]
        %v976 = vld [vmem:[%s8 + $0x28] sm:$0xff]
        %v977 = vld [vmem:[%s8 + $0x30] sm:$0xff]
        %v978 = vld [vmem:[%s8 + $0x38] sm:$0xff]
        %v979 = vld [vmem:[%s8 + $0x40] sm:$0xff]
        %v980 = vld [vmem:[%s8 + $0x48] sm:$0xff]
        %v981 = vld [vmem:[%s8 + $0x50] sm:$0xff]
        %v982 = vld [vmem:[%s8 + $0x58] sm:$0xff]
        %v983 = vld [vmem:[%s8 + $0x60] sm:$0xff]
        %v984 = vld [vmem:[%s8 + $0x68] sm:$0xff]
        %v985 = vld [vmem:[%s8 + $0x70] sm:$0xff]
        %v986 = vld [vmem:[%s8 + $0x78] sm:$0xff]
        %v987 = vld [vmem:[%s8 + $0x80] sm:$0xff]
        %v988 = vld [vmem:[%s8 + $0x88] sm:$0xff]
        %v989 = vld [vmem:[%s8 + $0x90] sm:$0xff]
        %v990 = vld [vmem:[%s8 + $0x98] sm:$0xff]
        %v991 = vld [vmem:[%s8 + $0xa0] sm:$0xff]
        %v992 = vld [vmem:[%s8 + $0xa8] sm:$0xff]
        %v993 = vld [vmem:[%s8 + $0xb0] sm:$0xff]
        %v994 = vld [vmem:[%s8 + $0xb8] sm:$0xff]
        %v995 = vld [vmem:[%s8 + $0xc0] sm:$0xff]
        %v996 = vld [vmem:[%s8 + $0xc8] sm:$0xff]
        %v997 = vld [vmem:[%s8 + $0xd0] sm:$0xff]
        %v998 = vld [vmem:[%s8 + $0xd8] sm:$0xff]
        %v999 = vld [vmem:[%s8 + $0xe0] sm:$0xff]
        %v1000 = vld [vmem:[%s8 + $0xe8] sm:$0xff]
        %v1001 = vld [vmem:[%s8 + $0xf0] sm:$0xff]
        %v1002 = vld [vmem:[%s8 + $0xf8] sm:$0xff]
        %v1003 = vld [vmem:[%s8 + $0x100] sm:$0xff]
        %v1004 = vld [vmem:[%s8 + $0x108] sm:$0xff]
        %v1005 = vld [vmem:[%s8 + $0x110] sm:$0xff]
        %v1006 = vld [vmem:[%s8 + $0x118] sm:$0xff]
        %v1007 = vld [vmem:[%s8 + $0x120] sm:$0xff]
        %v1008 = vld [vmem:[%s8 + $0x128] sm:$0xff]
        %v1009 = vld [vmem:[%s8 + $0x130] sm:$0xff]
        %v1010 = vld [vmem:[%s8 + $0x138] sm:$0xff]
        %v1011 = vld [vmem:[%s8 + $0x140] sm:$0xff]
        %v1012 = vld [vmem:[%s8 + $0x148] sm:$0xff]
        %v1013 = vld [vmem:[%s8 + $0x150] sm:$0xff]
        %v1014 = vld [vmem:[%s8 + $0x158] sm:$0xff]
        %v1015 = vld [vmem:[%s8 + $0x160] sm:$0xff]
        %v1016 = vld [vmem:[%s8 + $0x168] sm:$0xff]
        %v1017 = vld [vmem:[%s8 + $0x170] sm:$0xff]
        %v1018 = vld [vmem:[%s8 + $0x178] sm:$0xff]
        %v1019 = vpack.c.bf16 %v970, %v970
        %v1020 = vld [vmem:[#allocation6] sm:$0x3f]
        %v1022 = vlaneseq
        %v1023 = vshrl.u32 %v1022, 7
        %v1024 = vsub.s32 0, %v1023
        %v1025 = vrot.slane %v1020, %v1024
        %v1026 = vlaneseq
        %v1027 = vshrl.u32 %v1026, 7
        %v1028 = vsub.s32 1, %v1027
        %v1029 = vrot.slane %v1020, %v1028
        %v1030 = vlaneseq
        %v1031 = vshrl.u32 %v1030, 7
        %v1032 = vsub.s32 2, %v1031
        %v1033 = vrot.slane %v1020, %v1032
        %v1034 = vlaneseq
        %v1035 = vshrl.u32 %v1034, 7
        %v1036 = vsub.s32 3, %v1035
        %v1037 = vrot.slane %v1020, %v1036
        %v1038 = vlaneseq
        %v1039 = vshrl.u32 %v1038, 7
        %v1040 = vsub.s32 4, %v1039
        %v1041 = vrot.slane %v1020, %v1040
        %v1042 = vlaneseq
        %v1043 = vshrl.u32 %v1042, 7
        %v1044 = vsub.s32 5, %v1043
        %v1045 = vrot.slane %v1020, %v1044
        %v1100 = vunpack.c.l.b16 %v971
        %v1101 = vunpack.c.h.b16 %v971
        %v1102 = vunpack.c.l.b16 %v972
        %v1103 = vunpack.c.h.b16 %v972
        %v1104 = vunpack.c.l.b16 %v973
        %v1105 = vunpack.c.h.b16 %v973
        %v1106 = vunpack.c.l.b16 %v974
        %v1107 = vunpack.c.h.b16 %v974
        %v1108 = vunpack.c.l.b16 %v975
        %v1109 = vunpack.c.h.b16 %v975
        %v1110 = vunpack.c.l.b16 %v976
        %v1111 = vunpack.c.h.b16 %v976
        %v1112 = vunpack.c.l.b16 %v977
        %v1113 = vunpack.c.h.b16 %v977
        %v1114 = vunpack.c.l.b16 %v978
        %v1115 = vunpack.c.h.b16 %v978
        %v1116 = vunpack.c.l.b16 %v979
        %v1117 = vunpack.c.h.b16 %v979
        %v1118 = vunpack.c.l.b16 %v980
        %v1119 = vunpack.c.h.b16 %v980
        %v1120 = vunpack.c.l.b16 %v981
        %v1121 = vunpack.c.h.b16 %v981
        %v1122 = vunpack.c.l.b16 %v982
        %v1123 = vunpack.c.h.b16 %v982
        %v1124 = vunpack.c.l.b16 %v983
        %v1125 = vunpack.c.h.b16 %v983
        %v1126 = vunpack.c.l.b16 %v984
        %v1127 = vunpack.c.h.b16 %v984
        %v1128 = vunpack.c.l.b16 %v985
        %v1129 = vunpack.c.h.b16 %v985
        %v1130 = vunpack.c.l.b16 %v986
        %v1131 = vunpack.c.h.b16 %v986
        %v1132 = vunpack.c.l.b16 %v987
        %v1133 = vunpack.c.h.b16 %v987
        %v1134 = vunpack.c.l.b16 %v988
        %v1135 = vunpack.c.h.b16 %v988
        %v1136 = vunpack.c.l.b16 %v989
        %v1137 = vunpack.c.h.b16 %v989
        %v1138 = vunpack.c.l.b16 %v990
        %v1139 = vunpack.c.h.b16 %v990
        %v1140 = vunpack.c.l.b16 %v991
        %v1141 = vunpack.c.h.b16 %v991
        %v1142 = vunpack.c.l.b16 %v992
        %v1143 = vunpack.c.h.b16 %v992
        %v1144 = vunpack.c.l.b16 %v993
        %v1145 = vunpack.c.h.b16 %v993
        %v1146 = vunpack.c.l.b16 %v994
        %v1147 = vunpack.c.h.b16 %v994
        %v1148 = vunpack.c.l.b16 %v995
        %v1149 = vunpack.c.h.b16 %v995
        %v1150 = vunpack.c.l.b16 %v996
        %v1151 = vunpack.c.h.b16 %v996
        %v1152 = vunpack.c.l.b16 %v997
        %v1153 = vunpack.c.h.b16 %v997
        %v1154 = vunpack.c.l.b16 %v998
        %v1155 = vunpack.c.h.b16 %v998
        %v1156 = vunpack.c.l.b16 %v999
        %v1157 = vunpack.c.h.b16 %v999
        %v1158 = vunpack.c.l.b16 %v1000
        %v1159 = vunpack.c.h.b16 %v1000
        %v1160 = vunpack.c.l.b16 %v1001
        %v1161 = vunpack.c.h.b16 %v1001
        %v1162 = vunpack.c.l.b16 %v1002
        %v1163 = vunpack.c.h.b16 %v1002
        %v1164 = vunpack.c.l.b16 %v1003
        %v1165 = vunpack.c.h.b16 %v1003
        %v1166 = vunpack.c.l.b16 %v1004
        %v1167 = vunpack.c.h.b16 %v1004
        %v1168 = vunpack.c.l.b16 %v1005
        %v1169 = vunpack.c.h.b16 %v1005
        %v1170 = vunpack.c.l.b16 %v1006
        %v1171 = vunpack.c.h.b16 %v1006
        %v1172 = vunpack.c.l.b16 %v1007
        %v1173 = vunpack.c.h.b16 %v1007
        %v1174 = vunpack.c.l.b16 %v1008
        %v1175 = vunpack.c.h.b16 %v1008
        %v1176 = vunpack.c.l.b16 %v1009
        %v1177 = vunpack.c.h.b16 %v1009
        %v1178 = vunpack.c.l.b16 %v1010
        %v1179 = vunpack.c.h.b16 %v1010
        %v1180 = vunpack.c.l.b16 %v1011
        %v1181 = vunpack.c.h.b16 %v1011
        %v1182 = vunpack.c.l.b16 %v1012
        %v1183 = vunpack.c.h.b16 %v1012
        %v1184 = vunpack.c.l.b16 %v1013
        %v1185 = vunpack.c.h.b16 %v1013
        %v1186 = vunpack.c.l.b16 %v1014
        %v1187 = vunpack.c.h.b16 %v1014
        %v1188 = vunpack.c.l.b16 %v1015
        %v1189 = vunpack.c.h.b16 %v1015
        %v1190 = vunpack.c.l.b16 %v1016
        %v1191 = vunpack.c.h.b16 %v1016
        %v1192 = vunpack.c.l.b16 %v1017
        %v1193 = vunpack.c.h.b16 %v1017
        %v1194 = vunpack.c.l.b16 %v1018
        %v1195 = vunpack.c.h.b16 %v1018
        %v1196 = vpack.c.b16 %v1106, %v1100
        %v1197 = vpack.c.b16 %v1107, %v1101
        %v1198 = vpack.c.b16 %v1108, %v1102
        %v1199 = vpack.c.b16 %v1109, %v1103
        %v1200 = vpack.c.b16 %v1110, %v1104
        %v1201 = vpack.c.b16 %v1111, %v1105
        %v1202 = vpack.c.b16 %v1118, %v1112
        %v1203 = vpack.c.b16 %v1119, %v1113
        %v1204 = vpack.c.b16 %v1120, %v1114
        %v1205 = vpack.c.b16 %v1121, %v1115
        %v1206 = vpack.c.b16 %v1122, %v1116
        %v1207 = vpack.c.b16 %v1123, %v1117
        %v1208 = vpack.c.b16 %v1130, %v1124
        %v1209 = vpack.c.b16 %v1131, %v1125
        %v1210 = vpack.c.b16 %v1132, %v1126
        %v1211 = vpack.c.b16 %v1133, %v1127
        %v1212 = vpack.c.b16 %v1134, %v1128
        %v1213 = vpack.c.b16 %v1135, %v1129
        %v1214 = vpack.c.b16 %v1142, %v1136
        %v1215 = vpack.c.b16 %v1143, %v1137
        %v1216 = vpack.c.b16 %v1144, %v1138
        %v1217 = vpack.c.b16 %v1145, %v1139
        %v1218 = vpack.c.b16 %v1146, %v1140
        %v1219 = vpack.c.b16 %v1147, %v1141
        %v1220 = vpack.c.b16 %v1154, %v1148
        %v1221 = vpack.c.b16 %v1155, %v1149
        %v1222 = vpack.c.b16 %v1156, %v1150
        %v1223 = vpack.c.b16 %v1157, %v1151
        %v1224 = vpack.c.b16 %v1158, %v1152
        %v1225 = vpack.c.b16 %v1159, %v1153
        %v1226 = vpack.c.b16 %v1166, %v1160
        %v1227 = vpack.c.b16 %v1167, %v1161
        %v1228 = vpack.c.b16 %v1168, %v1162
        %v1229 = vpack.c.b16 %v1169, %v1163
        %v1230 = vpack.c.b16 %v1170, %v1164
        %v1231 = vpack.c.b16 %v1171, %v1165
        %v1232 = vpack.c.b16 %v1178, %v1172
        %v1233 = vpack.c.b16 %v1179, %v1173
        %v1234 = vpack.c.b16 %v1180, %v1174
        %v1235 = vpack.c.b16 %v1181, %v1175
        %v1236 = vpack.c.b16 %v1182, %v1176
        %v1237 = vpack.c.b16 %v1183, %v1177
        %v1238 = vpack.c.b16 %v1190, %v1184
        %v1239 = vpack.c.b16 %v1191, %v1185
        %v1240 = vpack.c.b16 %v1192, %v1186
        %v1241 = vpack.c.b16 %v1193, %v1187
        %v1242 = vpack.c.b16 %v1194, %v1188
        %v1243 = vpack.c.b16 %v1195, %v1189
        %1292 = vmatprep.subr.bf16.mxu0 %v1239
        %1293 = vmatpush1.bf16.msra.mxu0 %v1238
        %1294 = vmatprep.subr.bf16.mxu0 %v1233
        %1295 = vmatpush1.bf16.msra.mxu0 %v1232
        %1296 = vmatprep.subr.bf16.mxu0 %v1227
        %1297 = vmatpush1.bf16.msra.mxu0 %v1226
        %1298 = vmatprep.subr.bf16.mxu0 %v1221
        %1299 = vmatpush1.bf16.msra.mxu0 %v1220
        %1300 = vmatprep.subr.bf16.mxu0 %v1215
        %1301 = vmatpush1.bf16.msra.mxu0 %v1214
        %1302 = vmatprep.subr.bf16.mxu0 %v1209
        %1303 = vmatpush1.bf16.msra.mxu0 %v1208
        %1304 = vmatprep.subr.bf16.mxu0 %v1203
        %1305 = vmatpush1.bf16.msra.mxu0 %v1202
        %1306 = vmatprep.subr.bf16.mxu0 %v1197
        %1307 = vmatpush1.bf16.msra.mxu0 %v1196
        %1308 = vmatprep.subr.bf16.mxu0 0
        %1309 = vmatpush2.bf16.msra.mxu0 0
        %1310 = vmatprep.subr.bf16.mxu0 0
        %1311 = vmatpush2.bf16.msra.mxu0 0
        %1312 = vmatprep.subr.bf16.mxu0 0
        %1313 = vmatpush2.bf16.msra.mxu0 0
        %1314 = vmatprep.subr.bf16.mxu0 0
        %1315 = vmatpush2.bf16.msra.mxu0 0
        %1316 = vmatprep.subr.bf16.mxu0 0
        %1317 = vmatpush2.bf16.msra.mxu0 0
        %1318 = vmatprep.subr.bf16.mxu0 0
        %1319 = vmatpush2.bf16.msra.mxu0 0
        %1320 = vmatprep.subr.bf16.mxu0 0
        %1321 = vmatpush2.bf16.msra.mxu0 0
        %1322 = vmatprep.subr.bf16.mxu0 0
        %1323 = vmatpush2.bf16.msra.mxu0 0
        %1324 = vmatprep.mubr.bf16.mxu0 0
        %1325 = vmatmul.mubr.bf16.gmra.mxu0 %v1019
        %v1326 = vpop.f32.mrf.mxu0
        %v1327 = vadd.f32 %v1025, %v1326
        %v1328 = vpop.f32.mrf.mxu0
        %v1329 = vadd.f32 %v1029, %v1328
        %v1330 = vpop.f32.mrf.mxu0
        %v1331 = vpop.f32.mrf.mxu0
        %1332 = vdwg.mxu0
        %1333 = vmatprep.subr.bf16.mxu0 %v1241
        %1334 = vmatpush1.bf16.msra.mxu0 %v1240
        %1335 = vmatprep.subr.bf16.mxu0 %v1235
        %1336 = vmatpush1.bf16.msra.mxu0 %v1234
        %1337 = vmatprep.subr.bf16.mxu0 %v1229
        %1338 = vmatpush1.bf16.msra.mxu0 %v1228
        %1339 = vmatprep.subr.bf16.mxu0 %v1223
        %1340 = vmatpush1.bf16.msra.mxu0 %v1222
        %1341 = vmatprep.subr.bf16.mxu0 %v1217
        %1342 = vmatpush1.bf16.msra.mxu0 %v1216
        %1343 = vmatprep.subr.bf16.mxu0 %v1211
        %1344 = vmatpush1.bf16.msra.mxu0 %v1210
        %1345 = vmatprep.subr.bf16.mxu0 %v1205
        %1346 = vmatpush1.bf16.msra.mxu0 %v1204
        %1347 = vmatprep.subr.bf16.mxu0 %v1199
        %1348 = vmatpush1.bf16.msra.mxu0 %v1198
        %1349 = vmatprep.subr.bf16.mxu0 0
        %1350 = vmatpush2.bf16.msra.mxu0 0
        %1351 = vmatprep.subr.bf16.mxu0 0
        %1352 = vmatpush2.bf16.msra.mxu0 0
        %1353 = vmatprep.subr.bf16.mxu0 0
        %1354 = vmatpush2.bf16.msra.mxu0 0
        %1355 = vmatprep.subr.bf16.mxu0 0
        %1356 = vmatpush2.bf16.msra.mxu0 0
        %1357 = vmatprep.subr.bf16.mxu0 0
        %1358 = vmatpush2.bf16.msra.mxu0 0
        %1359 = vmatprep.subr.bf16.mxu0 0
        %1360 = vmatpush2.bf16.msra.mxu0 0
        %1361 = vmatprep.subr.bf16.mxu0 0
        %1362 = vmatpush2.bf16.msra.mxu0 0
        %1363 = vmatprep.subr.bf16.mxu0 0
        %1364 = vmatpush2.bf16.msra.mxu0 0
        %1365 = vmatprep.mubr.bf16.mxu0 0
        %1366 = vmatmul.mubr.bf16.gmra.mxu0 %v1019
        %v1367 = vpop.f32.mrf.mxu0
        %v1368 = vadd.f32 %v1033, %v1367
        %v1369 = vpop.f32.mrf.mxu0
        %v1370 = vadd.f32 %v1037, %v1369
        %v1371 = vpop.f32.mrf.mxu0
        %v1372 = vpop.f32.mrf.mxu0
        %1373 = vdwg.mxu0
        %1374 = vmatprep.subr.bf16.mxu0 %v1243
        %1375 = vmatpush1.bf16.msra.mxu0 %v1242
        %1376 = vmatprep.subr.bf16.mxu0 %v1237
        %1377 = vmatpush1.bf16.msra.mxu0 %v1236
        %1378 = vmatprep.subr.bf16.mxu0 %v1231
        %1379 = vmatpush1.bf16.msra.mxu0 %v1230
        %1380 = vmatprep.subr.bf16.mxu0 %v1225
        %1381 = vmatpush1.bf16.msra.mxu0 %v1224
        %1382 = vmatprep.subr.bf16.mxu0 %v1219
        %1383 = vmatpush1.bf16.msra.mxu0 %v1218
        %1384 = vmatprep.subr.bf16.mxu0 %v1213
        %1385 = vmatpush1.bf16.msra.mxu0 %v1212
        %1386 = vmatprep.subr.bf16.mxu0 %v1207
        %1387 = vmatpush1.bf16.msra.mxu0 %v1206
        %1388 = vmatprep.subr.bf16.mxu0 %v1201
        %1389 = vmatpush1.bf16.msra.mxu0 %v1200
        %1390 = vmatprep.subr.bf16.mxu0 0
        %1391 = vmatpush2.bf16.msra.mxu0 0
        %1392 = vmatprep.subr.bf16.mxu0 0
        %1393 = vmatpush2.bf16.msra.mxu0 0
        %1394 = vmatprep.subr.bf16.mxu0 0
        %1395 = vmatpush2.bf16.msra.mxu0 0
        %1396 = vmatprep.subr.bf16.mxu0 0
        %1397 = vmatpush2.bf16.msra.mxu0 0
        %1398 = vmatprep.subr.bf16.mxu0 0
        %1399 = vmatpush2.bf16.msra.mxu0 0
        %1400 = vmatprep.subr.bf16.mxu0 0
        %1401 = vmatpush2.bf16.msra.mxu0 0
        %1402 = vmatprep.subr.bf16.mxu0 0
        %1403 = vmatpush2.bf16.msra.mxu0 0
        %1404 = vmatprep.subr.bf16.mxu0 0
        %1405 = vmatpush2.bf16.msra.mxu0 0
        %1406 = vmatprep.mubr.bf16.mxu0 0
        %1407 = vmatmul.mubr.bf16.gmra.mxu0 %v1019
        %v1408 = vpop.f32.mrf.mxu0
        %v1409 = vadd.f32 %v1041, %v1408
        %v1410 = vpop.f32.mrf.mxu0
        %v1411 = vadd.f32 %v1045, %v1410
        %v1412 = vpop.f32.mrf.mxu0
        %v1413 = vpop.f32.mrf.mxu0
        %1414 = vdwg.mxu0
        %v1415 = vpack.c.bf16 %v1327, %v1327
        %v1416 = vpack.c.bf16 %v1329, %v1329
        %v1417 = vpack.c.bf16 %v1368, %v1368
        %v1418 = vpack.c.bf16 %v1370, %v1370
        %v1419 = vpack.c.bf16 %v1409, %v1409
        %v1420 = vpack.c.bf16 %v1411, %v1411
        %v1421 = vld [vmem:[%s10] sm:$0xf]
        %v1422 = vld [vmem:[%s10 + $0x4] sm:$0xf]
        %v1423 = vld [vmem:[%s10 + $0x8] sm:$0xf]
        %v1424 = vld [vmem:[%s10 + $0xc] sm:$0xf]
        %v1425 = vld [vmem:[%s10 + $0x10] sm:$0xf]
        %v1426 = vld [vmem:[%s10 + $0x14] sm:$0xf]
        %v1427 = vld [vmem:[%s10 + $0x18] sm:$0xf]
        %v1428 = vld [vmem:[%s10 + $0x1c] sm:$0xf]
        %v1429 = vld [vmem:[%s10 + $0x20] sm:$0xf]
        %v1430 = vld [vmem:[%s10 + $0x24] sm:$0xf]
        %v1431 = vld [vmem:[%s10 + $0x28] sm:$0xf]
        %v1432 = vld [vmem:[%s10 + $0x2c] sm:$0xf]
        %v1433 = vld [vmem:[%s10 + $0x30] sm:$0xf]
        %v1434 = vld [vmem:[%s10 + $0x34] sm:$0xf]
        %v1435 = vld [vmem:[%s10 + $0x38] sm:$0xf]
        %v1436 = vld [vmem:[%s10 + $0x3c] sm:$0xf]
        %v1437 = vld [vmem:[%s10 + $0x40] sm:$0xf]
        %v1438 = vld [vmem:[%s10 + $0x44] sm:$0xf]
        %v1439 = vld [vmem:[%s10 + $0x48] sm:$0xf]
        %v1440 = vld [vmem:[%s10 + $0x4c] sm:$0xf]
        %v1441 = vld [vmem:[%s10 + $0x50] sm:$0xf]
        %v1442 = vld [vmem:[%s10 + $0x54] sm:$0xf]
        %v1443 = vld [vmem:[%s10 + $0x58] sm:$0xf]
        %v1444 = vld [vmem:[%s10 + $0x5c] sm:$0xf]
        %v1445 = vld [vmem:[%s10 + $0x60] sm:$0xf]
        %v1446 = vld [vmem:[%s10 + $0x64] sm:$0xf]
        %v1447 = vld [vmem:[%s10 + $0x68] sm:$0xf]
        %v1448 = vld [vmem:[%s10 + $0x6c] sm:$0xf]
        %v1449 = vld [vmem:[%s10 + $0x70] sm:$0xf]
        %v1450 = vld [vmem:[%s10 + $0x74] sm:$0xf]
        %v1451 = vld [vmem:[%s10 + $0x78] sm:$0xf]
        %v1452 = vld [vmem:[%s10 + $0x7c] sm:$0xf]
        %1453 = vmatprep.subr.bf16.mxu0 0
        %1454 = vmatpush1.bf16.xpose.msra.mxu0 0
        %1455 = vmatprep.subr.bf16.mxu0 0
        %1456 = vmatpush1.bf16.xpose.msra.mxu0 0
        %1457 = vmatprep.subr.bf16.mxu0 0
        %1458 = vmatpush1.bf16.xpose.msra.mxu0 0
        %1459 = vmatprep.subr.bf16.mxu0 0
        %1460 = vmatpush1.bf16.xpose.msra.mxu0 0
        %1461 = vmatprep.subr.bf16.mxu0 0
        %1462 = vmatpush1.bf16.xpose.msra.mxu0 0
        %1463 = vmatprep.subr.bf16.mxu0 0
        %1464 = vmatpush1.bf16.xpose.msra.mxu0 0
        %1465 = vmatprep.subr.bf16.mxu0 0
        %1466 = vmatpush1.bf16.xpose.msra.mxu0 0
        %1467 = vmatprep.subr.bf16.mxu0 0
        %1468 = vmatpush1.bf16.xpose.msra.mxu0 %v1416
        %1469 = vmatprep.subr.bf16.mxu0 0
        %1470 = vmatpush2.bf16.xpose.msra.mxu0 0
        %1471 = vmatprep.subr.bf16.mxu0 0
        %1472 = vmatpush2.bf16.xpose.msra.mxu0 0
        %1473 = vmatprep.subr.bf16.mxu0 0
        %1474 = vmatpush2.bf16.xpose.msra.mxu0 0
        %1475 = vmatprep.subr.bf16.mxu0 0
        %1476 = vmatpush2.bf16.xpose.msra.mxu0 0
        %1477 = vmatprep.subr.bf16.mxu0 0
        %1478 = vmatpush2.bf16.xpose.msra.mxu0 0
        %1479 = vmatprep.subr.bf16.mxu0 0
        %1480 = vmatpush2.bf16.xpose.msra.mxu0 0
        %1481 = vmatprep.subr.bf16.mxu0 0
        %1482 = vmatpush2.bf16.xpose.msra.mxu0 0
        %1483 = vmatprep.subr.bf16.mxu0 0
        %1484 = vmatpush2.bf16.xpose.msra.mxu0 0
        %1485 = vmatprep.mubr.bf16.mxu0 0
        %1486 = vmatmul.mubr.bf16.gmra.mxu0 %v1415
        %v1487 = vpop.f32.mrf.mxu0
        %v1488 = vadd.f32 0.0, %v1487
        %v1489 = vpop.f32.mrf.mxu0
        %v1490 = vpop.f32.mrf.mxu0
        %v1491 = vpop.f32.mrf.mxu0
        %1492 = vdwg.mxu0
        %v1493 = vmul.f32 %v1488, 0.17677669
        %v1494 = vadd.f32 %v1493, %v941
        %vm1495 = vcmask 64512
        %v1496 = vsel %vm1495, %v1494, -inf
        %1497 = vmax.xlane.f32.xlu0 %v1496
        %v1498 = vpop.xlane.xlu0 %1497
        %v1499 = vsub.f32 %v1494, %v1498
        %v1500 = vmul.f32 %v1499, 1.442695
        %v1501 = vpow.pop %v1500
        %v1502 = vsel %vm1495, %v1501, 0.0
        %1503 = vadd.xlane.f32.xlu0 %v1502
        %v1504 = vpop.xlane.xlu0 %1503
        %v1505 = vrcp.pop %v1504
        %v1506 = vmul.f32 %v1501, %v1505
        %v1507 = vpack.c.bf16 %v1506, %v1506
        %v1509 = vsel %vm1495, %v1507, 0
        %vm1511 = vcmask 1043456
        %v1513 = vsel %vm1511, %v1417, 0
        %1515 = vmatprep.subr.bf16.mxu0 0
        %1516 = vmatpush1.bf16.msra.mxu0 0
        %1517 = vmatprep.subr.bf16.mxu0 0
        %1518 = vmatpush1.bf16.msra.mxu0 0
        %1519 = vmatprep.subr.bf16.mxu0 0
        %1520 = vmatpush1.bf16.msra.mxu0 0
        %1521 = vmatprep.subr.bf16.mxu0 0
        %1522 = vmatpush1.bf16.msra.mxu0 0
        %1523 = vmatprep.subr.bf16.mxu0 0
        %1524 = vmatpush1.bf16.msra.mxu0 0
        %1525 = vmatprep.subr.bf16.mxu0 0
        %1526 = vmatpush1.bf16.msra.mxu0 0
        %1527 = vmatprep.subr.bf16.mxu0 0
        %1528 = vmatpush1.bf16.msra.mxu0 0
        %1529 = vmatprep.subr.bf16.mxu0 0
        %1530 = vmatpush1.bf16.msra.mxu0 %v1513
        %1531 = vmatprep.subr.bf16.mxu0 0
        %1532 = vmatpush2.bf16.msra.mxu0 0
        %1533 = vmatprep.subr.bf16.mxu0 0
        %1534 = vmatpush2.bf16.msra.mxu0 0
        %1535 = vmatprep.subr.bf16.mxu0 0
        %1536 = vmatpush2.bf16.msra.mxu0 0
        %1537 = vmatprep.subr.bf16.mxu0 0
        %1538 = vmatpush2.bf16.msra.mxu0 0
        %1539 = vmatprep.subr.bf16.mxu0 0
        %1540 = vmatpush2.bf16.msra.mxu0 0
        %1541 = vmatprep.subr.bf16.mxu0 0
        %1542 = vmatpush2.bf16.msra.mxu0 0
        %1543 = vmatprep.subr.bf16.mxu0 0
        %1544 = vmatpush2.bf16.msra.mxu0 0
        %1545 = vmatprep.subr.bf16.mxu0 0
        %1546 = vmatpush2.bf16.msra.mxu0 0
        %1547 = vmatprep.mubr.bf16.mxu0 0
        %1548 = vmatmul.mubr.bf16.gmra.mxu0 %v1509
        %v1549 = vpop.f32.mrf.mxu0
        %v1550 = vadd.f32 0.0, %v1549
        %v1551 = vpop.f32.mrf.mxu0
        %v1552 = vpop.f32.mrf.mxu0
        %v1553 = vpop.f32.mrf.mxu0
        %1554 = vdwg.mxu0
        %v1555 = vpack.c.bf16 %v1550, %v1550
        %1556 = vmatprep.subr.bf16.mxu0 0
        %1557 = vmatpush1.bf16.xpose.msra.mxu0 0
        %1558 = vmatprep.subr.bf16.mxu0 0
        %1559 = vmatpush1.bf16.xpose.msra.mxu0 0
        %1560 = vmatprep.subr.bf16.mxu0 0
        %1561 = vmatpush1.bf16.xpose.msra.mxu0 0
        %1562 = vmatprep.subr.bf16.mxu0 0
        %1563 = vmatpush1.bf16.xpose.msra.mxu0 0
        %1564 = vmatprep.subr.bf16.mxu0 0
        %1565 = vmatpush1.bf16.xpose.msra.mxu0 0
        %1566 = vmatprep.subr.bf16.mxu0 0
        %1567 = vmatpush1.bf16.xpose.msra.mxu0 0
        %1568 = vmatprep.subr.bf16.mxu0 0
        %1569 = vmatpush1.bf16.xpose.msra.mxu0 0
        %1570 = vmatprep.subr.bf16.mxu0 0
        %1571 = vmatpush1.bf16.xpose.msra.mxu0 %v1419
        %1572 = vmatprep.subr.bf16.mxu0 0
        %1573 = vmatpush2.bf16.xpose.msra.mxu0 0
        %1574 = vmatprep.subr.bf16.mxu0 0
        %1575 = vmatpush2.bf16.xpose.msra.mxu0 0
        %1576 = vmatprep.subr.bf16.mxu0 0
        %1577 = vmatpush2.bf16.xpose.msra.mxu0 0
        %1578 = vmatprep.subr.bf16.mxu0 0
        %1579 = vmatpush2.bf16.xpose.msra.mxu0 0
        %1580 = vmatprep.subr.bf16.mxu0 0
        %1581 = vmatpush2.bf16.xpose.msra.mxu0 0
        %1582 = vmatprep.subr.bf16.mxu0 0
        %1583 = vmatpush2.bf16.xpose.msra.mxu0 0
        %1584 = vmatprep.subr.bf16.mxu0 0
        %1585 = vmatpush2.bf16.xpose.msra.mxu0 0
        %1586 = vmatprep.subr.bf16.mxu0 0
        %1587 = vmatpush2.bf16.xpose.msra.mxu0 0
        %1588 = vmatprep.mubr.bf16.mxu0 0
        %1589 = vmatmul.mubr.bf16.gmra.mxu0 %v1418
        %v1590 = vpop.f32.mrf.mxu0
        %v1591 = vadd.f32 0.0, %v1590
        %v1592 = vpop.f32.mrf.mxu0
        %v1593 = vpop.f32.mrf.mxu0
        %v1594 = vpop.f32.mrf.mxu0
        %1595 = vdwg.mxu0
        %v1596 = vmul.f32 %v1591, 0.17677669
        %v1597 = vadd.f32 %v1596, %v941
        %v1598 = vsel %vm1495, %v1597, -inf
        %1599 = vmax.xlane.f32.xlu0 %v1598
        %v1600 = vpop.xlane.xlu0 %1599
        %v1601 = vsub.f32 %v1597, %v1600
        %v1602 = vmul.f32 %v1601, 1.442695
        %v1603 = vpow.pop %v1602
        %v1604 = vsel %vm1495, %v1603, 0.0
        %1605 = vadd.xlane.f32.xlu0 %v1604
        %v1606 = vpop.xlane.xlu0 %1605
        %v1607 = vrcp.pop %v1606
        %v1608 = vmul.f32 %v1603, %v1607
        %v1609 = vpack.c.bf16 %v1608, %v1608
        %v1611 = vsel %vm1495, %v1609, 0
        %v1614 = vsel %vm1511, %v1420, 0
        %1616 = vmatprep.subr.bf16.mxu0 0
        %1617 = vmatpush1.bf16.msra.mxu0 0
        %1618 = vmatprep.subr.bf16.mxu0 0
        %1619 = vmatpush1.bf16.msra.mxu0 0
        %1620 = vmatprep.subr.bf16.mxu0 0
        %1621 = vmatpush1.bf16.msra.mxu0 0
        %1622 = vmatprep.subr.bf16.mxu0 0
        %1623 = vmatpush1.bf16.msra.mxu0 0
        %1624 = vmatprep.subr.bf16.mxu0 0
        %1625 = vmatpush1.bf16.msra.mxu0 0
        %1626 = vmatprep.subr.bf16.mxu0 0
        %1627 = vmatpush1.bf16.msra.mxu0 0
        %1628 = vmatprep.subr.bf16.mxu0 0
        %1629 = vmatpush1.bf16.msra.mxu0 0
        %1630 = vmatprep.subr.bf16.mxu0 0
        %1631 = vmatpush1.bf16.msra.mxu0 %v1614
        %1632 = vmatprep.subr.bf16.mxu0 0
        %1633 = vmatpush2.bf16.msra.mxu0 0
        %1634 = vmatprep.subr.bf16.mxu0 0
        %1635 = vmatpush2.bf16.msra.mxu0 0
        %1636 = vmatprep.subr.bf16.mxu0 0
        %1637 = vmatpush2.bf16.msra.mxu0 0
        %1638 = vmatprep.subr.bf16.mxu0 0
        %1639 = vmatpush2.bf16.msra.mxu0 0
        %1640 = vmatprep.subr.bf16.mxu0 0
        %1641 = vmatpush2.bf16.msra.mxu0 0
        %1642 = vmatprep.subr.bf16.mxu0 0
        %1643 = vmatpush2.bf16.msra.mxu0 0
        %1644 = vmatprep.subr.bf16.mxu0 0
        %1645 = vmatpush2.bf16.msra.mxu0 0
        %1646 = vmatprep.subr.bf16.mxu0 0
        %1647 = vmatpush2.bf16.msra.mxu0 0
        %1648 = vmatprep.mubr.bf16.mxu0 0
        %1649 = vmatmul.mubr.bf16.gmra.mxu0 %v1611
        %v1650 = vpop.f32.mrf.mxu0
        %v1651 = vadd.f32 0.0, %v1650
        %v1652 = vpop.f32.mrf.mxu0
        %v1653 = vpop.f32.mrf.mxu0
        %v1654 = vpop.f32.mrf.mxu0
        %1655 = vdwg.mxu0
        %v1656 = vpack.c.bf16 %v1651, %v1651
        %v1673 = vunpack.c.l.b16 %v1437
        %v1674 = vunpack.c.l.b16 %v1438
        %v1675 = vunpack.c.l.b16 %v1439
        %v1676 = vunpack.c.l.b16 %v1440
        %v1677 = vunpack.c.l.b16 %v1441
        %v1678 = vunpack.c.l.b16 %v1442
        %v1679 = vunpack.c.l.b16 %v1443
        %v1680 = vunpack.c.l.b16 %v1444
        %v1681 = vunpack.c.l.b16 %v1445
        %v1682 = vunpack.c.l.b16 %v1446
        %v1683 = vunpack.c.l.b16 %v1447
        %v1684 = vunpack.c.l.b16 %v1448
        %v1685 = vunpack.c.l.b16 %v1449
        %v1686 = vunpack.c.l.b16 %v1450
        %v1687 = vunpack.c.l.b16 %v1451
        %v1688 = vunpack.c.l.b16 %v1452
        %v1689 = vpack.c.b16 %v1674, %v1673
        %v1690 = vpack.c.b16 %v1676, %v1675
        %v1691 = vpack.c.b16 %v1678, %v1677
        %v1692 = vpack.c.b16 %v1680, %v1679
        %v1693 = vpack.c.b16 %v1682, %v1681
        %v1694 = vpack.c.b16 %v1684, %v1683
        %v1695 = vpack.c.b16 %v1686, %v1685
        %v1696 = vpack.c.b16 %v1688, %v1687
        %1705 = vmatprep.subr.bf16.mxu0 0
        %1706 = vmatpush1.bf16.msra.mxu0 %v1696
        %1707 = vmatprep.subr.bf16.mxu0 0
        %1708 = vmatpush1.bf16.msra.mxu0 %v1695
        %1709 = vmatprep.subr.bf16.mxu0 0
        %1710 = vmatpush1.bf16.msra.mxu0 %v1694
        %1711 = vmatprep.subr.bf16.mxu0 0
        %1712 = vmatpush1.bf16.msra.mxu0 %v1693
        %1713 = vmatprep.subr.bf16.mxu0 0
        %1714 = vmatpush1.bf16.msra.mxu0 %v1692
        %1715 = vmatprep.subr.bf16.mxu0 0
        %1716 = vmatpush1.bf16.msra.mxu0 %v1691
        %1717 = vmatprep.subr.bf16.mxu0 0
        %1718 = vmatpush1.bf16.msra.mxu0 %v1690
        %1719 = vmatprep.subr.bf16.mxu0 0
        %1720 = vmatpush1.bf16.msra.mxu0 %v1689
        %1721 = vmatprep.subr.bf16.mxu0 0
        %1722 = vmatpush2.bf16.msra.mxu0 0
        %1723 = vmatprep.subr.bf16.mxu0 0
        %1724 = vmatpush2.bf16.msra.mxu0 0
        %1725 = vmatprep.subr.bf16.mxu0 0
        %1726 = vmatpush2.bf16.msra.mxu0 0
        %1727 = vmatprep.subr.bf16.mxu0 0
        %1728 = vmatpush2.bf16.msra.mxu0 0
        %1729 = vmatprep.subr.bf16.mxu0 0
        %1730 = vmatpush2.bf16.msra.mxu0 0
        %1731 = vmatprep.subr.bf16.mxu0 0
        %1732 = vmatpush2.bf16.msra.mxu0 0
        %1733 = vmatprep.subr.bf16.mxu0 0
        %1734 = vmatpush2.bf16.msra.mxu0 0
        %1735 = vmatprep.subr.bf16.mxu0 0
        %1736 = vmatpush2.bf16.msra.mxu0 0
        %1737 = vmatprep.mubr.bf16.mxu0 0
        %1738 = vmatmul.mubr.bf16.gmra.mxu0 %v1656
        %v1739 = vpop.f32.mrf.mxu0
        %v1740 = vadd.f32 0.0, %v1739
        %v1741 = vpop.f32.mrf.mxu0
        %v1742 = vpop.f32.mrf.mxu0
        %v1743 = vpop.f32.mrf.mxu0
        %1744 = vdwg.mxu0
        %v1761 = vunpack.c.l.b16 %v1421
        %v1762 = vunpack.c.l.b16 %v1422
        %v1763 = vunpack.c.l.b16 %v1423
        %v1764 = vunpack.c.l.b16 %v1424
        %v1765 = vunpack.c.l.b16 %v1425
        %v1766 = vunpack.c.l.b16 %v1426
        %v1767 = vunpack.c.l.b16 %v1427
        %v1768 = vunpack.c.l.b16 %v1428
        %v1769 = vunpack.c.l.b16 %v1429
        %v1770 = vunpack.c.l.b16 %v1430
        %v1771 = vunpack.c.l.b16 %v1431
        %v1772 = vunpack.c.l.b16 %v1432
        %v1773 = vunpack.c.l.b16 %v1433
        %v1774 = vunpack.c.l.b16 %v1434
        %v1775 = vunpack.c.l.b16 %v1435
        %v1776 = vunpack.c.l.b16 %v1436
        %v1777 = vpack.c.b16 %v1762, %v1761
        %v1778 = vpack.c.b16 %v1764, %v1763
        %v1779 = vpack.c.b16 %v1766, %v1765
        %v1780 = vpack.c.b16 %v1768, %v1767
        %v1781 = vpack.c.b16 %v1770, %v1769
        %v1782 = vpack.c.b16 %v1772, %v1771
        %v1783 = vpack.c.b16 %v1774, %v1773
        %v1784 = vpack.c.b16 %v1776, %v1775
        %1793 = vmatprep.subr.bf16.mxu0 0
        %1794 = vmatpush1.bf16.msra.mxu0 %v1784
        %1795 = vmatprep.subr.bf16.mxu0 0
        %1796 = vmatpush1.bf16.msra.mxu0 %v1783
        %1797 = vmatprep.subr.bf16.mxu0 0
        %1798 = vmatpush1.bf16.msra.mxu0 %v1782
        %1799 = vmatprep.subr.bf16.mxu0 0
        %1800 = vmatpush1.bf16.msra.mxu0 %v1781
        %1801 = vmatprep.subr.bf16.mxu0 0
        %1802 = vmatpush1.bf16.msra.mxu0 %v1780
        %1803 = vmatprep.subr.bf16.mxu0 0
        %1804 = vmatpush1.bf16.msra.mxu0 %v1779
        %1805 = vmatprep.subr.bf16.mxu0 0
        %1806 = vmatpush1.bf16.msra.mxu0 %v1778
        %1807 = vmatprep.subr.bf16.mxu0 0
        %1808 = vmatpush1.bf16.msra.mxu0 %v1777
        %1809 = vmatprep.subr.bf16.mxu0 0
        %1810 = vmatpush2.bf16.msra.mxu0 0
        %1811 = vmatprep.subr.bf16.mxu0 0
        %1812 = vmatpush2.bf16.msra.mxu0 0
        %1813 = vmatprep.subr.bf16.mxu0 0
        %1814 = vmatpush2.bf16.msra.mxu0 0
        %1815 = vmatprep.subr.bf16.mxu0 0
        %1816 = vmatpush2.bf16.msra.mxu0 0
        %1817 = vmatprep.subr.bf16.mxu0 0
        %1818 = vmatpush2.bf16.msra.mxu0 0
        %1819 = vmatprep.subr.bf16.mxu0 0
        %1820 = vmatpush2.bf16.msra.mxu0 0
        %1821 = vmatprep.subr.bf16.mxu0 0
        %1822 = vmatpush2.bf16.msra.mxu0 0
        %1823 = vmatprep.subr.bf16.mxu0 0
        %1824 = vmatpush2.bf16.msra.mxu0 0
        %1825 = vmatprep.mubr.bf16.mxu0 0
        %1826 = vmatmul.mubr.bf16.gmra.mxu0 %v1555
        %v1827 = vpop.f32.mrf.mxu0
        %v1828 = vadd.f32 %v1740, %v1827
        %v1829 = vpop.f32.mrf.mxu0
        %v1830 = vpop.f32.mrf.mxu0
        %v1831 = vpop.f32.mrf.mxu0
        %1832 = vdwg.mxu0
        %v1833 = vadd.f32 %v940, %v1828
        %v1834 = vld [vmem:[#allocation7] sm:$0x1]
        %v1836 = vlaneseq
        %v1837 = vshrl.u32 %v1836, 7
        %v1838 = vsub.s32 0, %v1837
        %v1839 = vrot.slane %v1834, %v1838
        %v1841 = vadd.f32 %v1833, %v1839
        %v1842 = vld [vmem:[%s12] sm:$0x1]
        %v1843 = vld [vmem:[#allocation9] sm:$0x1]
        %1844 = vadd.xlane.f32.xlu0 %v1841
        %v1845 = vpop.xlane.xlu0 %1844
        %v1846 = vmul.f32 %v1845, 0.015625
        %v1847 = vmul.f32 %v1841, %v1841
        %1848 = vadd.xlane.f32.xlu0 %v1847
        %v1849 = vpop.xlane.xlu0 %1848
        %v1850 = vmul.f32 %v1849, 0.015625
        %v1851 = vmul.f32 %v1846, %v1846
        %v1852 = vsub.f32 %v1850, %v1851
        %v1853 = vsub.f32 %v1841, %v1846
        %v1854 = vadd.f32 %v1852, 1e-05
        %v1855 = vrsqrt.pop %v1854
        %v1856 = vmul.f32 %v1853, %v1855
        %v1858 = vlaneseq
        %v1859 = vshrl.u32 %v1858, 7
        %v1860 = vsub.s32 0, %v1859
        %v1861 = vrot.slane %v1842, %v1860
        %v1863 = vmul.f32 %v1856, %v1861
        %v1865 = vlaneseq
        %v1866 = vshrl.u32 %v1865, 7
        %v1867 = vsub.s32 0, %v1866
        %v1868 = vrot.slane %v1843, %v1867
        %v1870 = vadd.f32 %v1863, %v1868
        %v1871 = vld [vmem:[%s14] sm:$0xff]
        %v1872 = vld [vmem:[%s14 + $0x8] sm:$0xff]
        %v1873 = vld [vmem:[%s14 + $0x10] sm:$0xff]
        %v1874 = vld [vmem:[%s14 + $0x18] sm:$0xff]
        %v1875 = vld [vmem:[%s14 + $0x20] sm:$0xff]
        %v1876 = vld [vmem:[%s14 + $0x28] sm:$0xff]
        %v1877 = vld [vmem:[%s14 + $0x30] sm:$0xff]
        %v1878 = vld [vmem:[%s14 + $0x38] sm:$0xff]
        %v1879 = vld [vmem:[%s14 + $0x40] sm:$0xff]
        %v1880 = vld [vmem:[%s14 + $0x48] sm:$0xff]
        %v1881 = vld [vmem:[%s14 + $0x50] sm:$0xff]
        %v1882 = vld [vmem:[%s14 + $0x58] sm:$0xff]
        %v1883 = vld [vmem:[%s14 + $0x60] sm:$0xff]
        %v1884 = vld [vmem:[%s14 + $0x68] sm:$0xff]
        %v1885 = vld [vmem:[%s14 + $0x70] sm:$0xff]
        %v1886 = vld [vmem:[%s14 + $0x78] sm:$0xff]
        %v1887 = vpack.c.bf16 %v1870, %v1870
        %v1888 = vld [vmem:[%s15] sm:$0x3]
        %v1890 = vlaneseq
        %v1891 = vshrl.u32 %v1890, 7
        %v1892 = vsub.s32 0, %v1891
        %v1893 = vrot.slane %v1888, %v1892
        %v1894 = vlaneseq
        %v1895 = vshrl.u32 %v1894, 7
        %v1896 = vsub.s32 1, %v1895
        %v1897 = vrot.slane %v1888, %v1896
        %v1916 = vunpack.c.l.b16 %v1871
        %v1917 = vunpack.c.h.b16 %v1871
        %v1918 = vunpack.c.l.b16 %v1872
        %v1919 = vunpack.c.h.b16 %v1872
        %v1920 = vunpack.c.l.b16 %v1873
        %v1921 = vunpack.c.h.b16 %v1873
        %v1922 = vunpack.c.l.b16 %v1874
        %v1923 = vunpack.c.h.b16 %v1874
        %v1924 = vunpack.c.l.b16 %v1875
        %v1925 = vunpack.c.h.b16 %v1875
        %v1926 = vunpack.c.l.b16 %v1876
        %v1927 = vunpack.c.h.b16 %v1876
        %v1928 = vunpack.c.l.b16 %v1877
        %v1929 = vunpack.c.h.b16 %v1877
        %v1930 = vunpack.c.l.b16 %v1878
        %v1931 = vunpack.c.h.b16 %v1878
        %v1932 = vunpack.c.l.b16 %v1879
        %v1933 = vunpack.c.h.b16 %v1879
        %v1934 = vunpack.c.l.b16 %v1880
        %v1935 = vunpack.c.h.b16 %v1880
        %v1936 = vunpack.c.l.b16 %v1881
        %v1937 = vunpack.c.h.b16 %v1881
        %v1938 = vunpack.c.l.b16 %v1882
        %v1939 = vunpack.c.h.b16 %v1882
        %v1940 = vunpack.c.l.b16 %v1883
        %v1941 = vunpack.c.h.b16 %v1883
        %v1942 = vunpack.c.l.b16 %v1884
        %v1943 = vunpack.c.h.b16 %v1884
        %v1944 = vunpack.c.l.b16 %v1885
        %v1945 = vunpack.c.h.b16 %v1885
        %v1946 = vunpack.c.l.b16 %v1886
        %v1947 = vunpack.c.h.b16 %v1886
        %v1948 = vpack.c.b16 %v1918, %v1916
        %v1949 = vpack.c.b16 %v1919, %v1917
        %v1950 = vpack.c.b16 %v1922, %v1920
        %v1951 = vpack.c.b16 %v1923, %v1921
        %v1952 = vpack.c.b16 %v1926, %v1924
        %v1953 = vpack.c.b16 %v1927, %v1925
        %v1954 = vpack.c.b16 %v1930, %v1928
        %v1955 = vpack.c.b16 %v1931, %v1929
        %v1956 = vpack.c.b16 %v1934, %v1932
        %v1957 = vpack.c.b16 %v1935, %v1933
        %v1958 = vpack.c.b16 %v1938, %v1936
        %v1959 = vpack.c.b16 %v1939, %v1937
        %v1960 = vpack.c.b16 %v1942, %v1940
        %v1961 = vpack.c.b16 %v1943, %v1941
        %v1962 = vpack.c.b16 %v1946, %v1944
        %v1963 = vpack.c.b16 %v1947, %v1945
        %1980 = vmatprep.subr.bf16.mxu0 %v1963
        %1981 = vmatpush1.bf16.msra.mxu0 %v1962
        %1982 = vmatprep.subr.bf16.mxu0 %v1961
        %1983 = vmatpush1.bf16.msra.mxu0 %v1960
        %1984 = vmatprep.subr.bf16.mxu0 %v1959
        %1985 = vmatpush1.bf16.msra.mxu0 %v1958
        %1986 = vmatprep.subr.bf16.mxu0 %v1957
        %1987 = vmatpush1.bf16.msra.mxu0 %v1956
        %1988 = vmatprep.subr.bf16.mxu0 %v1955
        %1989 = vmatpush1.bf16.msra.mxu0 %v1954
        %1990 = vmatprep.subr.bf16.mxu0 %v1953
        %1991 = vmatpush1.bf16.msra.mxu0 %v1952
        %1992 = vmatprep.subr.bf16.mxu0 %v1951
        %1993 = vmatpush1.bf16.msra.mxu0 %v1950
        %1994 = vmatprep.subr.bf16.mxu0 %v1949
        %1995 = vmatpush1.bf16.msra.mxu0 %v1948
        %1996 = vmatprep.subr.bf16.mxu0 0
        %1997 = vmatpush2.bf16.msra.mxu0 0
        %1998 = vmatprep.subr.bf16.mxu0 0
        %1999 = vmatpush2.bf16.msra.mxu0 0
        %2000 = vmatprep.subr.bf16.mxu0 0
        %2001 = vmatpush2.bf16.msra.mxu0 0
        %2002 = vmatprep.subr.bf16.mxu0 0
        %2003 = vmatpush2.bf16.msra.mxu0 0
        %2004 = vmatprep.subr.bf16.mxu0 0
        %2005 = vmatpush2.bf16.msra.mxu0 0
        %2006 = vmatprep.subr.bf16.mxu0 0
        %2007 = vmatpush2.bf16.msra.mxu0 0
        %2008 = vmatprep.subr.bf16.mxu0 0
        %2009 = vmatpush2.bf16.msra.mxu0 0
        %2010 = vmatprep.subr.bf16.mxu0 0
        %2011 = vmatpush2.bf16.msra.mxu0 0
        %2012 = vmatprep.mubr.bf16.mxu0 0
        %2013 = vmatmul.mubr.bf16.gmra.mxu0 %v1887
        %v2014 = vpop.f32.mrf.mxu0
        %v2015 = vadd.f32 %v1893, %v2014
        %v2016 = vpop.f32.mrf.mxu0
        %v2017 = vadd.f32 %v1897, %v2016
        %v2018 = vpop.f32.mrf.mxu0
        %v2019 = vpop.f32.mrf.mxu0
        %2020 = vdwg.mxu0
        %v2021 = vmul.f32 %v2015, 0.5
        %v2022 = vmul.f32 %v2017, 0.5
        %v2023 = vmul.f32 %v2015, 0.044715
        %v2024 = vmul.f32 %v2017, 0.044715
        %v2025 = vmul.f32 %v2023, %v2015
        %v2026 = vmul.f32 %v2024, %v2017
        %v2027 = vmul.f32 %v2025, %v2015
        %v2028 = vmul.f32 %v2026, %v2017
        %v2029 = vadd.f32 %v2015, %v2027
        %v2030 = vadd.f32 %v2017, %v2028
        %v2031 = vmul.f32 %v2029, 0.7978846
        %v2032 = vmul.f32 %v2030, 0.7978846
        %v2033 = vtanh.pop %v2031
        %v2034 = vtanh.pop %v2032
        %v2035 = vadd.f32 %v2033, 1.0
        %v2036 = vadd.f32 %v2034, 1.0
        %v2037 = vmul.f32 %v2021, %v2035
        %v2038 = vmul.f32 %v2022, %v2036
        %v2039 = vld [vmem:[#allocation10] sm:$0xf]
        %v2040 = vld [vmem:[#allocation10 + $0x4] sm:$0xf]
        %v2041 = vld [vmem:[#allocation10 + $0x8] sm:$0xf]
        %v2042 = vld [vmem:[#allocation10 + $0xc] sm:$0xf]
        %v2043 = vld [vmem:[#allocation10 + $0x10] sm:$0xf]
        %v2044 = vld [vmem:[#allocation10 + $0x14] sm:$0xf]
        %v2045 = vld [vmem:[#allocation10 + $0x18] sm:$0xf]
        %v2046 = vld [vmem:[#allocation10 + $0x1c] sm:$0xf]
        %v2047 = vld [vmem:[#allocation10 + $0x20] sm:$0xf]
        %v2048 = vld [vmem:[#allocation10 + $0x24] sm:$0xf]
        %v2049 = vld [vmem:[#allocation10 + $0x28] sm:$0xf]
        %v2050 = vld [vmem:[#allocation10 + $0x2c] sm:$0xf]
        %v2051 = vld [vmem:[#allocation10 + $0x30] sm:$0xf]
        %v2052 = vld [vmem:[#allocation10 + $0x34] sm:$0xf]
        %v2053 = vld [vmem:[#allocation10 + $0x38] sm:$0xf]
        %v2054 = vld [vmem:[#allocation10 + $0x3c] sm:$0xf]
        %v2055 = vld [vmem:[#allocation10 + $0x40] sm:$0xf]
        %v2056 = vld [vmem:[#allocation10 + $0x44] sm:$0xf]
        %v2057 = vld [vmem:[#allocation10 + $0x48] sm:$0xf]
        %v2058 = vld [vmem:[#allocation10 + $0x4c] sm:$0xf]
        %v2059 = vld [vmem:[#allocation10 + $0x50] sm:$0xf]
        %v2060 = vld [vmem:[#allocation10 + $0x54] sm:$0xf]
        %v2061 = vld [vmem:[#allocation10 + $0x58] sm:$0xf]
        %v2062 = vld [vmem:[#allocation10 + $0x5c] sm:$0xf]
        %v2063 = vld [vmem:[#allocation10 + $0x60] sm:$0xf]
        %v2064 = vld [vmem:[#allocation10 + $0x64] sm:$0xf]
        %v2065 = vld [vmem:[#allocation10 + $0x68] sm:$0xf]
        %v2066 = vld [vmem:[#allocation10 + $0x6c] sm:$0xf]
        %v2067 = vld [vmem:[#allocation10 + $0x70] sm:$0xf]
        %v2068 = vld [vmem:[#allocation10 + $0x74] sm:$0xf]
        %v2069 = vld [vmem:[#allocation10 + $0x78] sm:$0xf]
        %v2070 = vld [vmem:[#allocation10 + $0x7c] sm:$0xf]
        %v2071 = vpack.c.bf16 %v2037, %v2037
        %v2072 = vpack.c.bf16 %v2038, %v2038
        %v2105 = vunpack.c.l.b16 %v2039
        %v2106 = vunpack.c.l.b16 %v2040
        %v2107 = vunpack.c.l.b16 %v2041
        %v2108 = vunpack.c.l.b16 %v2042
        %v2109 = vunpack.c.l.b16 %v2043
        %v2110 = vunpack.c.l.b16 %v2044
        %v2111 = vunpack.c.l.b16 %v2045
        %v2112 = vunpack.c.l.b16 %v2046
        %v2113 = vunpack.c.l.b16 %v2047
        %v2114 = vunpack.c.l.b16 %v2048
        %v2115 = vunpack.c.l.b16 %v2049
        %v2116 = vunpack.c.l.b16 %v2050
        %v2117 = vunpack.c.l.b16 %v2051
        %v2118 = vunpack.c.l.b16 %v2052
        %v2119 = vunpack.c.l.b16 %v2053
        %v2120 = vunpack.c.l.b16 %v2054
        %v2121 = vunpack.c.l.b16 %v2055
        %v2122 = vunpack.c.l.b16 %v2056
        %v2123 = vunpack.c.l.b16 %v2057
        %v2124 = vunpack.c.l.b16 %v2058
        %v2125 = vunpack.c.l.b16 %v2059
        %v2126 = vunpack.c.l.b16 %v2060
        %v2127 = vunpack.c.l.b16 %v2061
        %v2128 = vunpack.c.l.b16 %v2062
        %v2129 = vunpack.c.l.b16 %v2063
        %v2130 = vunpack.c.l.b16 %v2064
        %v2131 = vunpack.c.l.b16 %v2065
        %v2132 = vunpack.c.l.b16 %v2066
        %v2133 = vunpack.c.l.b16 %v2067
        %v2134 = vunpack.c.l.b16 %v2068
        %v2135 = vunpack.c.l.b16 %v2069
        %v2136 = vunpack.c.l.b16 %v2070
        %v2137 = vpack.c.b16 %v2106, %v2105
        %v2138 = vpack.c.b16 %v2108, %v2107
        %v2139 = vpack.c.b16 %v2110, %v2109
        %v2140 = vpack.c.b16 %v2112, %v2111
        %v2141 = vpack.c.b16 %v2114, %v2113
        %v2142 = vpack.c.b16 %v2116, %v2115
        %v2143 = vpack.c.b16 %v2118, %v2117
        %v2144 = vpack.c.b16 %v2120, %v2119
        %v2145 = vpack.c.b16 %v2122, %v2121
        %v2146 = vpack.c.b16 %v2124, %v2123
        %v2147 = vpack.c.b16 %v2126, %v2125
        %v2148 = vpack.c.b16 %v2128, %v2127
        %v2149 = vpack.c.b16 %v2130, %v2129
        %v2150 = vpack.c.b16 %v2132, %v2131
        %v2151 = vpack.c.b16 %v2134, %v2133
        %v2152 = vpack.c.b16 %v2136, %v2135
        %2169 = vmatprep.subr.bf16.mxu0 0
        %2170 = vmatpush1.bf16.msra.mxu0 %v2144
        %2171 = vmatprep.subr.bf16.mxu0 0
        %2172 = vmatpush1.bf16.msra.mxu0 %v2143
        %2173 = vmatprep.subr.bf16.mxu0 0
        %2174 = vmatpush1.bf16.msra.mxu0 %v2142
        %2175 = vmatprep.subr.bf16.mxu0 0
        %2176 = vmatpush1.bf16.msra.mxu0 %v2141
        %2177 = vmatprep.subr.bf16.mxu0 0
        %2178 = vmatpush1.bf16.msra.mxu0 %v2140
        %2179 = vmatprep.subr.bf16.mxu0 0
        %2180 = vmatpush1.bf16.msra.mxu0 %v2139
        %2181 = vmatprep.subr.bf16.mxu0 0
        %2182 = vmatpush1.bf16.msra.mxu0 %v2138
        %2183 = vmatprep.subr.bf16.mxu0 0
        %2184 = vmatpush1.bf16.msra.mxu0 %v2137
        %2185 = vmatprep.subr.bf16.mxu0 0
        %2186 = vmatpush2.bf16.msra.mxu0 %v2152
        %2187 = vmatprep.subr.bf16.mxu0 0
        %2188 = vmatpush2.bf16.msra.mxu0 %v2151
        %2189 = vmatprep.subr.bf16.mxu0 0
        %2190 = vmatpush2.bf16.msra.mxu0 %v2150
        %2191 = vmatprep.subr.bf16.mxu0 0
        %2192 = vmatpush2.bf16.msra.mxu0 %v2149
        %2193 = vmatprep.subr.bf16.mxu0 0
        %2194 = vmatpush2.bf16.msra.mxu0 %v2148
        %2195 = vmatprep.subr.bf16.mxu0 0
        %2196 = vmatpush2.bf16.msra.mxu0 %v2147
        %2197 = vmatprep.subr.bf16.mxu0 0
        %2198 = vmatpush2.bf16.msra.mxu0 %v2146
        %2199 = vmatprep.subr.bf16.mxu0 0
        %2200 = vmatpush2.bf16.msra.mxu0 %v2145
        %2201 = vmatprep.mubr.bf16.mxu0 %v2072
        %2202 = vmatmul.mubr.bf16.gmra.mxu0 %v2071
        %v2203 = vpop.f32.mrf.mxu0
        %v2204 = vadd.f32 0.0, %v2203
        %v2205 = vpop.f32.mrf.mxu0
        %v2206 = vpop.f32.mrf.mxu0
        %v2207 = vpop.f32.mrf.mxu0
        %2208 = vdwg.mxu0
        %v2209 = vadd.f32 %v1841, %v2204
        %v2210 = vld [vmem:[#allocation12] sm:$0x1]
        %v2212 = vlaneseq
        %v2213 = vshrl.u32 %v2212, 7
        %v2214 = vsub.s32 0, %v2213
        %v2215 = vrot.slane %v2210, %v2214
        %v2217 = vadd.f32 %v2209, %v2215
        %s2218 = scalar_lea.vmem %s6, 1
        %v2219 = vld [vmem:[%s2218] sm:$0x1]
        %s2220 = scalar_lea.vmem %s7, 1
        %v2221 = vld [vmem:[%s2220] sm:$0x1]
        %2222 = vadd.xlane.f32.xlu0 %v2217
        %v2223 = vpop.xlane.xlu0 %2222
        %v2224 = vmul.f32 %v2223, 0.015625
        %v2225 = vmul.f32 %v2217, %v2217
        %2226 = vadd.xlane.f32.xlu0 %v2225
        %v2227 = vpop.xlane.xlu0 %2226
        %v2228 = vmul.f32 %v2227, 0.015625
        %v2229 = vmul.f32 %v2224, %v2224
        %v2230 = vsub.f32 %v2228, %v2229
        %v2231 = vsub.f32 %v2217, %v2224
        %v2232 = vadd.f32 %v2230, 1e-05
        %v2233 = vrsqrt.pop %v2232
        %v2234 = vmul.f32 %v2231, %v2233
        %v2236 = vlaneseq
        %v2237 = vshrl.u32 %v2236, 7
        %v2238 = vsub.s32 0, %v2237
        %v2239 = vrot.slane %v2219, %v2238
        %v2241 = vmul.f32 %v2234, %v2239
        %v2243 = vlaneseq
        %v2244 = vshrl.u32 %v2243, 7
        %v2245 = vsub.s32 0, %v2244
        %v2246 = vrot.slane %v2221, %v2245
        %v2248 = vadd.f32 %v2241, %v2246
        %s2249 = scalar_lea.vmem %s8, 384
        %v2250 = vld [vmem:[%s2249] sm:$0xff]
        %v2251 = vld [vmem:[%s2249 + $0x8] sm:$0xff]
        %v2252 = vld [vmem:[%s2249 + $0x10] sm:$0xff]
        %v2253 = vld [vmem:[%s2249 + $0x18] sm:$0xff]
        %v2254 = vld [vmem:[%s2249 + $0x20] sm:$0xff]
        %v2255 = vld [vmem:[%s2249 + $0x28] sm:$0xff]
        %v2256 = vld [vmem:[%s2249 + $0x30] sm:$0xff]
        %v2257 = vld [vmem:[%s2249 + $0x38] sm:$0xff]
        %v2258 = vld [vmem:[%s2249 + $0x40] sm:$0xff]
        %v2259 = vld [vmem:[%s2249 + $0x48] sm:$0xff]
        %v2260 = vld [vmem:[%s2249 + $0x50] sm:$0xff]
        %v2261 = vld [vmem:[%s2249 + $0x58] sm:$0xff]
        %v2262 = vld [vmem:[%s2249 + $0x60] sm:$0xff]
        %v2263 = vld [vmem:[%s2249 + $0x68] sm:$0xff]
        %v2264 = vld [vmem:[%s2249 + $0x70] sm:$0xff]
        %v2265 = vld [vmem:[%s2249 + $0x78] sm:$0xff]
        %v2266 = vld [vmem:[%s2249 + $0x80] sm:$0xff]
        %v2267 = vld [vmem:[%s2249 + $0x88] sm:$0xff]
        %v2268 = vld [vmem:[%s2249 + $0x90] sm:$0xff]
        %v2269 = vld [vmem:[%s2249 + $0x98] sm:$0xff]
        %v2270 = vld [vmem:[%s2249 + $0xa0] sm:$0xff]
        %v2271 = vld [vmem:[%s2249 + $0xa8] sm:$0xff]
        %v2272 = vld [vmem:[%s2249 + $0xb0] sm:$0xff]
        %v2273 = vld [vmem:[%s2249 + $0xb8] sm:$0xff]
        %v2274 = vld [vmem:[%s2249 + $0xc0] sm:$0xff]
        %v2275 = vld [vmem:[%s2249 + $0xc8] sm:$0xff]
        %v2276 = vld [vmem:[%s2249 + $0xd0] sm:$0xff]
        %v2277 = vld [vmem:[%s2249 + $0xd8] sm:$0xff]
        %v2278 = vld [vmem:[%s2249 + $0xe0] sm:$0xff]
        %v2279 = vld [vmem:[%s2249 + $0xe8] sm:$0xff]
        %v2280 = vld [vmem:[%s2249 + $0xf0] sm:$0xff]
        %v2281 = vld [vmem:[%s2249 + $0xf8] sm:$0xff]
        %v2282 = vld [vmem:[%s2249 + $0x100] sm:$0xff]
        %v2283 = vld [vmem:[%s2249 + $0x108] sm:$0xff]
        %v2284 = vld [vmem:[%s2249 + $0x110] sm:$0xff]
        %v2285 = vld [vmem:[%s2249 + $0x118] sm:$0xff]
        %v2286 = vld [vmem:[%s2249 + $0x120] sm:$0xff]
        %v2287 = vld [vmem:[%s2249 + $0x128] sm:$0xff]
        %v2288 = vld [vmem:[%s2249 + $0x130] sm:$0xff]
        %v2289 = vld [vmem:[%s2249 + $0x138] sm:$0xff]
        %v2290 = vld [vmem:[%s2249 + $0x140] sm:$0xff]
        %v2291 = vld [vmem:[%s2249 + $0x148] sm:$0xff]
        %v2292 = vld [vmem:[%s2249 + $0x150] sm:$0xff]
        %v2293 = vld [vmem:[%s2249 + $0x158] sm:$0xff]
        %v2294 = vld [vmem:[%s2249 + $0x160] sm:$0xff]
        %v2295 = vld [vmem:[%s2249 + $0x168] sm:$0xff]
        %v2296 = vld [vmem:[%s2249 + $0x170] sm:$0xff]
        %v2297 = vld [vmem:[%s2249 + $0x178] sm:$0xff]
        %v2298 = vpack.c.bf16 %v2248, %v2248
        %s2299 = scalar_lea.vmem [#allocation6], 6
        %v2300 = vld [vmem:[%s2299] sm:$0x3f]
        %v2302 = vlaneseq
        %v2303 = vshrl.u32 %v2302, 7
        %v2304 = vsub.s32 0, %v2303
        %v2305 = vrot.slane %v2300, %v2304
        %v2306 = vlaneseq
        %v2307 = vshrl.u32 %v2306, 7
        %v2308 = vsub.s32 1, %v2307
        %v2309 = vrot.slane %v2300, %v2308
        %v2310 = vlaneseq
        %v2311 = vshrl.u32 %v2310, 7
        %v2312 = vsub.s32 2, %v2311
        %v2313 = vrot.slane %v2300, %v2312
        %v2314 = vlaneseq
        %v2315 = vshrl.u32 %v2314, 7
        %v2316 = vsub.s32 3, %v2315
        %v2317 = vrot.slane %v2300, %v2316
        %v2318 = vlaneseq
        %v2319 = vshrl.u32 %v2318, 7
        %v2320 = vsub.s32 4, %v2319
        %v2321 = vrot.slane %v2300, %v2320
        %v2322 = vlaneseq
        %v2323 = vshrl.u32 %v2322, 7
        %v2324 = vsub.s32 5, %v2323
        %v2325 = vrot.slane %v2300, %v2324
        %v2380 = vunpack.c.l.b16 %v2250
        %v2381 = vunpack.c.h.b16 %v2250
        %v2382 = vunpack.c.l.b16 %v2251
        %v2383 = vunpack.c.h.b16 %v2251
        %v2384 = vunpack.c.l.b16 %v2252
        %v2385 = vunpack.c.h.b16 %v2252
        %v2386 = vunpack.c.l.b16 %v2253
        %v2387 = vunpack.c.h.b16 %v2253
        %v2388 = vunpack.c.l.b16 %v2254
        %v2389 = vunpack.c.h.b16 %v2254
        %v2390 = vunpack.c.l.b16 %v2255
        %v2391 = vunpack.c.h.b16 %v2255
        %v2392 = vunpack.c.l.b16 %v2256
        %v2393 = vunpack.c.h.b16 %v2256
        %v2394 = vunpack.c.l.b16 %v2257
        %v2395 = vunpack.c.h.b16 %v2257
        %v2396 = vunpack.c.l.b16 %v2258
        %v2397 = vunpack.c.h.b16 %v2258
        %v2398 = vunpack.c.l.b16 %v2259
        %v2399 = vunpack.c.h.b16 %v2259
        %v2400 = vunpack.c.l.b16 %v2260
        %v2401 = vunpack.c.h.b16 %v2260
        %v2402 = vunpack.c.l.b16 %v2261
        %v2403 = vunpack.c.h.b16 %v2261
        %v2404 = vunpack.c.l.b16 %v2262
        %v2405 = vunpack.c.h.b16 %v2262
        %v2406 = vunpack.c.l.b16 %v2263
        %v2407 = vunpack.c.h.b16 %v2263
        %v2408 = vunpack.c.l.b16 %v2264
        %v2409 = vunpack.c.h.b16 %v2264
        %v2410 = vunpack.c.l.b16 %v2265
        %v2411 = vunpack.c.h.b16 %v2265
        %v2412 = vunpack.c.l.b16 %v2266
        %v2413 = vunpack.c.h.b16 %v2266
        %v2414 = vunpack.c.l.b16 %v2267
        %v2415 = vunpack.c.h.b16 %v2267
        %v2416 = vunpack.c.l.b16 %v2268
        %v2417 = vunpack.c.h.b16 %v2268
        %v2418 = vunpack.c.l.b16 %v2269
        %v2419 = vunpack.c.h.b16 %v2269
        %v2420 = vunpack.c.l.b16 %v2270
        %v2421 = vunpack.c.h.b16 %v2270
        %v2422 = vunpack.c.l.b16 %v2271
        %v2423 = vunpack.c.h.b16 %v2271
        %v2424 = vunpack.c.l.b16 %v2272
        %v2425 = vunpack.c.h.b16 %v2272
        %v2426 = vunpack.c.l.b16 %v2273
        %v2427 = vunpack.c.h.b16 %v2273
        %v2428 = vunpack.c.l.b16 %v2274
        %v2429 = vunpack.c.h.b16 %v2274
        %v2430 = vunpack.c.l.b16 %v2275
        %v2431 = vunpack.c.h.b16 %v2275
        %v2432 = vunpack.c.l.b16 %v2276
        %v2433 = vunpack.c.h.b16 %v2276
        %v2434 = vunpack.c.l.b16 %v2277
        %v2435 = vunpack.c.h.b16 %v2277
        %v2436 = vunpack.c.l.b16 %v2278
        %v2437 = vunpack.c.h.b16 %v2278
        %v2438 = vunpack.c.l.b16 %v2279
        %v2439 = vunpack.c.h.b16 %v2279
        %v2440 = vunpack.c.l.b16 %v2280
        %v2441 = vunpack.c.h.b16 %v2280
        %v2442 = vunpack.c.l.b16 %v2281
        %v2443 = vunpack.c.h.b16 %v2281
        %v2444 = vunpack.c.l.b16 %v2282
        %v2445 = vunpack.c.h.b16 %v2282
        %v2446 = vunpack.c.l.b16 %v2283
        %v2447 = vunpack.c.h.b16 %v2283
        %v2448 = vunpack.c.l.b16 %v2284
        %v2449 = vunpack.c.h.b16 %v2284
        %v2450 = vunpack.c.l.b16 %v2285
        %v2451 = vunpack.c.h.b16 %v2285
        %v2452 = vunpack.c.l.b16 %v2286
        %v2453 = vunpack.c.h.b16 %v2286
        %v2454 = vunpack.c.l.b16 %v2287
        %v2455 = vunpack.c.h.b16 %v2287
        %v2456 = vunpack.c.l.b16 %v2288
        %v2457 = vunpack.c.h.b16 %v2288
        %v2458 = vunpack.c.l.b16 %v2289
        %v2459 = vunpack.c.h.b16 %v2289
        %v2460 = vunpack.c.l.b16 %v2290
        %v2461 = vunpack.c.h.b16 %v2290
        %v2462 = vunpack.c.l.b16 %v2291
        %v2463 = vunpack.c.h.b16 %v2291
        %v2464 = vunpack.c.l.b16 %v2292
        %v2465 = vunpack.c.h.b16 %v2292
        %v2466 = vunpack.c.l.b16 %v2293
        %v2467 = vunpack.c.h.b16 %v2293
        %v2468 = vunpack.c.l.b16 %v2294
        %v2469 = vunpack.c.h.b16 %v2294
        %v2470 = vunpack.c.l.b16 %v2295
        %v2471 = vunpack.c.h.b16 %v2295
        %v2472 = vunpack.c.l.b16 %v2296
        %v2473 = vunpack.c.h.b16 %v2296
        %v2474 = vunpack.c.l.b16 %v2297
        %v2475 = vunpack.c.h.b16 %v2297
        %v2476 = vpack.c.b16 %v2386, %v2380
        %v2477 = vpack.c.b16 %v2387, %v2381
        %v2478 = vpack.c.b16 %v2388, %v2382
        %v2479 = vpack.c.b16 %v2389, %v2383
        %v2480 = vpack.c.b16 %v2390, %v2384
        %v2481 = vpack.c.b16 %v2391, %v2385
        %v2482 = vpack.c.b16 %v2398, %v2392
        %v2483 = vpack.c.b16 %v2399, %v2393
        %v2484 = vpack.c.b16 %v2400, %v2394
        %v2485 = vpack.c.b16 %v2401, %v2395
        %v2486 = vpack.c.b16 %v2402, %v2396
        %v2487 = vpack.c.b16 %v2403, %v2397
        %v2488 = vpack.c.b16 %v2410, %v2404
        %v2489 = vpack.c.b16 %v2411, %v2405
        %v2490 = vpack.c.b16 %v2412, %v2406
        %v2491 = vpack.c.b16 %v2413, %v2407
        %v2492 = vpack.c.b16 %v2414, %v2408
        %v2493 = vpack.c.b16 %v2415, %v2409
        %v2494 = vpack.c.b16 %v2422, %v2416
        %v2495 = vpack.c.b16 %v2423, %v2417
        %v2496 = vpack.c.b16 %v2424, %v2418
        %v2497 = vpack.c.b16 %v2425, %v2419
        %v2498 = vpack.c.b16 %v2426, %v2420
        %v2499 = vpack.c.b16 %v2427, %v2421
        %v2500 = vpack.c.b16 %v2434, %v2428
        %v2501 = vpack.c.b16 %v2435, %v2429
        %v2502 = vpack.c.b16 %v2436, %v2430
        %v2503 = vpack.c.b16 %v2437, %v2431
        %v2504 = vpack.c.b16 %v2438, %v2432
        %v2505 = vpack.c.b16 %v2439, %v2433
        %v2506 = vpack.c.b16 %v2446, %v2440
        %v2507 = vpack.c.b16 %v2447, %v2441
        %v2508 = vpack.c.b16 %v2448, %v2442
        %v2509 = vpack.c.b16 %v2449, %v2443
        %v2510 = vpack.c.b16 %v2450, %v2444
        %v2511 = vpack.c.b16 %v2451, %v2445
        %v2512 = vpack.c.b16 %v2458, %v2452
        %v2513 = vpack.c.b16 %v2459, %v2453
        %v2514 = vpack.c.b16 %v2460, %v2454
        %v2515 = vpack.c.b16 %v2461, %v2455
        %v2516 = vpack.c.b16 %v2462, %v2456
        %v2517 = vpack.c.b16 %v2463, %v2457
        %v2518 = vpack.c.b16 %v2470, %v2464
        %v2519 = vpack.c.b16 %v2471, %v2465
        %v2520 = vpack.c.b16 %v2472, %v2466
        %v2521 = vpack.c.b16 %v2473, %v2467
        %v2522 = vpack.c.b16 %v2474, %v2468
        %v2523 = vpack.c.b16 %v2475, %v2469
        %2572 = vmatprep.subr.bf16.mxu0 %v2519
        %2573 = vmatpush1.bf16.msra.mxu0 %v2518
        %2574 = vmatprep.subr.bf16.mxu0 %v2513
        %2575 = vmatpush1.bf16.msra.mxu0 %v2512
        %2576 = vmatprep.subr.bf16.mxu0 %v2507
        %2577 = vmatpush1.bf16.msra.mxu0 %v2506
        %2578 = vmatprep.subr.bf16.mxu0 %v2501
        %2579 = vmatpush1.bf16.msra.mxu0 %v2500
        %2580 = vmatprep.subr.bf16.mxu0 %v2495
        %2581 = vmatpush1.bf16.msra.mxu0 %v2494
        %2582 = vmatprep.subr.bf16.mxu0 %v2489
        %2583 = vmatpush1.bf16.msra.mxu0 %v2488
        %2584 = vmatprep.subr.bf16.mxu0 %v2483
        %2585 = vmatpush1.bf16.msra.mxu0 %v2482
        %2586 = vmatprep.subr.bf16.mxu0 %v2477
        %2587 = vmatpush1.bf16.msra.mxu0 %v2476
        %2588 = vmatprep.subr.bf16.mxu0 0
        %2589 = vmatpush2.bf16.msra.mxu0 0
        %2590 = vmatprep.subr.bf16.mxu0 0
        %2591 = vmatpush2.bf16.msra.mxu0 0
        %2592 = vmatprep.subr.bf16.mxu0 0
        %2593 = vmatpush2.bf16.msra.mxu0 0
        %2594 = vmatprep.subr.bf16.mxu0 0
        %2595 = vmatpush2.bf16.msra.mxu0 0
        %2596 = vmatprep.subr.bf16.mxu0 0
        %2597 = vmatpush2.bf16.msra.mxu0 0
        %2598 = vmatprep.subr.bf16.mxu0 0
        %2599 = vmatpush2.bf16.msra.mxu0 0
        %2600 = vmatprep.subr.bf16.mxu0 0
        %2601 = vmatpush2.bf16.msra.mxu0 0
        %2602 = vmatprep.subr.bf16.mxu0 0
        %2603 = vmatpush2.bf16.msra.mxu0 0
        %2604 = vmatprep.mubr.bf16.mxu0 0
        %2605 = vmatmul.mubr.bf16.gmra.mxu0 %v2298
        %v2606 = vpop.f32.mrf.mxu0
        %v2607 = vadd.f32 %v2305, %v2606
        %v2608 = vpop.f32.mrf.mxu0
        %v2609 = vadd.f32 %v2309, %v2608
        %v2610 = vpop.f32.mrf.mxu0
        %v2611 = vpop.f32.mrf.mxu0
        %2612 = vdwg.mxu0
        %2613 = vmatprep.subr.bf16.mxu0 %v2521
        %2614 = vmatpush1.bf16.msra.mxu0 %v2520
        %2615 = vmatprep.subr.bf16.mxu0 %v2515
        %2616 = vmatpush1.bf16.msra.mxu0 %v2514
        %2617 = vmatprep.subr.bf16.mxu0 %v2509
        %2618 = vmatpush1.bf16.msra.mxu0 %v2508
        %2619 = vmatprep.subr.bf16.mxu0 %v2503
        %2620 = vmatpush1.bf16.msra.mxu0 %v2502
        %2621 = vmatprep.subr.bf16.mxu0 %v2497
        %2622 = vmatpush1.bf16.msra.mxu0 %v2496
        %2623 = vmatprep.subr.bf16.mxu0 %v2491
        %2624 = vmatpush1.bf16.msra.mxu0 %v2490
        %2625 = vmatprep.subr.bf16.mxu0 %v2485
        %2626 = vmatpush1.bf16.msra.mxu0 %v2484
        %2627 = vmatprep.subr.bf16.mxu0 %v2479
        %2628 = vmatpush1.bf16.msra.mxu0 %v2478
        %2629 = vmatprep.subr.bf16.mxu0 0
        %2630 = vmatpush2.bf16.msra.mxu0 0
        %2631 = vmatprep.subr.bf16.mxu0 0
        %2632 = vmatpush2.bf16.msra.mxu0 0
        %2633 = vmatprep.subr.bf16.mxu0 0
        %2634 = vmatpush2.bf16.msra.mxu0 0
        %2635 = vmatprep.subr.bf16.mxu0 0
        %2636 = vmatpush2.bf16.msra.mxu0 0
        %2637 = vmatprep.subr.bf16.mxu0 0
        %2638 = vmatpush2.bf16.msra.mxu0 0
        %2639 = vmatprep.subr.bf16.mxu0 0
        %2640 = vmatpush2.bf16.msra.mxu0 0
        %2641 = vmatprep.subr.bf16.mxu0 0
        %2642 = vmatpush2.bf16.msra.mxu0 0
        %2643 = vmatprep.subr.bf16.mxu0 0
        %2644 = vmatpush2.bf16.msra.mxu0 0
        %2645 = vmatprep.mubr.bf16.mxu0 0
        %2646 = vmatmul.mubr.bf16.gmra.mxu0 %v2298
        %v2647 = vpop.f32.mrf.mxu0
        %v2648 = vadd.f32 %v2313, %v2647
        %v2649 = vpop.f32.mrf.mxu0
        %v2650 = vadd.f32 %v2317, %v2649
        %v2651 = vpop.f32.mrf.mxu0
        %v2652 = vpop.f32.mrf.mxu0
        %2653 = vdwg.mxu0
        %2654 = vmatprep.subr.bf16.mxu0 %v2523
        %2655 = vmatpush1.bf16.msra.mxu0 %v2522
        %2656 = vmatprep.subr.bf16.mxu0 %v2517
        %2657 = vmatpush1.bf16.msra.mxu0 %v2516
        %2658 = vmatprep.subr.bf16.mxu0 %v2511
        %2659 = vmatpush1.bf16.msra.mxu0 %v2510
        %2660 = vmatprep.subr.bf16.mxu0 %v2505
        %2661 = vmatpush1.bf16.msra.mxu0 %v2504
        %2662 = vmatprep.subr.bf16.mxu0 %v2499
        %2663 = vmatpush1.bf16.msra.mxu0 %v2498
        %2664 = vmatprep.subr.bf16.mxu0 %v2493
        %2665 = vmatpush1.bf16.msra.mxu0 %v2492
        %2666 = vmatprep.subr.bf16.mxu0 %v2487
        %2667 = vmatpush1.bf16.msra.mxu0 %v2486
        %2668 = vmatprep.subr.bf16.mxu0 %v2481
        %2669 = vmatpush1.bf16.msra.mxu0 %v2480
        %2670 = vmatprep.subr.bf16.mxu0 0
        %2671 = vmatpush2.bf16.msra.mxu0 0
        %2672 = vmatprep.subr.bf16.mxu0 0
        %2673 = vmatpush2.bf16.msra.mxu0 0
        %2674 = vmatprep.subr.bf16.mxu0 0
        %2675 = vmatpush2.bf16.msra.mxu0 0
        %2676 = vmatprep.subr.bf16.mxu0 0
        %2677 = vmatpush2.bf16.msra.mxu0 0
        %2678 = vmatprep.subr.bf16.mxu0 0
        %2679 = vmatpush2.bf16.msra.mxu0 0
        %2680 = vmatprep.subr.bf16.mxu0 0
        %2681 = vmatpush2.bf16.msra.mxu0 0
        %2682 = vmatprep.subr.bf16.mxu0 0
        %2683 = vmatpush2.bf16.msra.mxu0 0
        %2684 = vmatprep.subr.bf16.mxu0 0
        %2685 = vmatpush2.bf16.msra.mxu0 0
        %2686 = vmatprep.mubr.bf16.mxu0 0
        %2687 = vmatmul.mubr.bf16.gmra.mxu0 %v2298
        %v2688 = vpop.f32.mrf.mxu0
        %v2689 = vadd.f32 %v2321, %v2688
        %v2690 = vpop.f32.mrf.mxu0
        %v2691 = vadd.f32 %v2325, %v2690
        %v2692 = vpop.f32.mrf.mxu0
        %v2693 = vpop.f32.mrf.mxu0
        %2694 = vdwg.mxu0
        %v2695 = vpack.c.bf16 %v2607, %v2607
        %v2696 = vpack.c.bf16 %v2609, %v2609
        %v2697 = vpack.c.bf16 %v2648, %v2648
        %v2698 = vpack.c.bf16 %v2650, %v2650
        %v2699 = vpack.c.bf16 %v2689, %v2689
        %v2700 = vpack.c.bf16 %v2691, %v2691
        %s2701 = scalar_lea.vmem %s10, 128
        %v2702 = vld [vmem:[%s2701] sm:$0xf]
        %v2703 = vld [vmem:[%s2701 + $0x4] sm:$0xf]
        %v2704 = vld [vmem:[%s2701 + $0x8] sm:$0xf]
        %v2705 = vld [vmem:[%s2701 + $0xc] sm:$0xf]
        %v2706 = vld [vmem:[%s2701 + $0x10] sm:$0xf]
        %v2707 = vld [vmem:[%s2701 + $0x14] sm:$0xf]
        %v2708 = vld [vmem:[%s2701 + $0x18] sm:$0xf]
        %v2709 = vld [vmem:[%s2701 + $0x1c] sm:$0xf]
        %v2710 = vld [vmem:[%s2701 + $0x20] sm:$0xf]
        %v2711 = vld [vmem:[%s2701 + $0x24] sm:$0xf]
        %v2712 = vld [vmem:[%s2701 + $0x28] sm:$0xf]
        %v2713 = vld [vmem:[%s2701 + $0x2c] sm:$0xf]
        %v2714 = vld [vmem:[%s2701 + $0x30] sm:$0xf]
        %v2715 = vld [vmem:[%s2701 + $0x34] sm:$0xf]
        %v2716 = vld [vmem:[%s2701 + $0x38] sm:$0xf]
        %v2717 = vld [vmem:[%s2701 + $0x3c] sm:$0xf]
        %v2718 = vld [vmem:[%s2701 + $0x40] sm:$0xf]
        %v2719 = vld [vmem:[%s2701 + $0x44] sm:$0xf]
        %v2720 = vld [vmem:[%s2701 + $0x48] sm:$0xf]
        %v2721 = vld [vmem:[%s2701 + $0x4c] sm:$0xf]
        %v2722 = vld [vmem:[%s2701 + $0x50] sm:$0xf]
        %v2723 = vld [vmem:[%s2701 + $0x54] sm:$0xf]
        %v2724 = vld [vmem:[%s2701 + $0x58] sm:$0xf]
        %v2725 = vld [vmem:[%s2701 + $0x5c] sm:$0xf]
        %v2726 = vld [vmem:[%s2701 + $0x60] sm:$0xf]
        %v2727 = vld [vmem:[%s2701 + $0x64] sm:$0xf]
        %v2728 = vld [vmem:[%s2701 + $0x68] sm:$0xf]
        %v2729 = vld [vmem:[%s2701 + $0x6c] sm:$0xf]
        %v2730 = vld [vmem:[%s2701 + $0x70] sm:$0xf]
        %v2731 = vld [vmem:[%s2701 + $0x74] sm:$0xf]
        %v2732 = vld [vmem:[%s2701 + $0x78] sm:$0xf]
        %v2733 = vld [vmem:[%s2701 + $0x7c] sm:$0xf]
        %2734 = vmatprep.subr.bf16.mxu0 0
        %2735 = vmatpush1.bf16.xpose.msra.mxu0 0
        %2736 = vmatprep.subr.bf16.mxu0 0
        %2737 = vmatpush1.bf16.xpose.msra.mxu0 0
        %2738 = vmatprep.subr.bf16.mxu0 0
        %2739 = vmatpush1.bf16.xpose.msra.mxu0 0
        %2740 = vmatprep.subr.bf16.mxu0 0
        %2741 = vmatpush1.bf16.xpose.msra.mxu0 0
        %2742 = vmatprep.subr.bf16.mxu0 0
        %2743 = vmatpush1.bf16.xpose.msra.mxu0 0
        %2744 = vmatprep.subr.bf16.mxu0 0
        %2745 = vmatpush1.bf16.xpose.msra.mxu0 0
        %2746 = vmatprep.subr.bf16.mxu0 0
        %2747 = vmatpush1.bf16.xpose.msra.mxu0 0
        %2748 = vmatprep.subr.bf16.mxu0 0
        %2749 = vmatpush1.bf16.xpose.msra.mxu0 %v2696
        %2750 = vmatprep.subr.bf16.mxu0 0
        %2751 = vmatpush2.bf16.xpose.msra.mxu0 0
        %2752 = vmatprep.subr.bf16.mxu0 0
        %2753 = vmatpush2.bf16.xpose.msra.mxu0 0
        %2754 = vmatprep.subr.bf16.mxu0 0
        %2755 = vmatpush2.bf16.xpose.msra.mxu0 0
        %2756 = vmatprep.subr.bf16.mxu0 0
        %2757 = vmatpush2.bf16.xpose.msra.mxu0 0
        %2758 = vmatprep.subr.bf16.mxu0 0
        %2759 = vmatpush2.bf16.xpose.msra.mxu0 0
        %2760 = vmatprep.subr.bf16.mxu0 0
        %2761 = vmatpush2.bf16.xpose.msra.mxu0 0
        %2762 = vmatprep.subr.bf16.mxu0 0
        %2763 = vmatpush2.bf16.xpose.msra.mxu0 0
        %2764 = vmatprep.subr.bf16.mxu0 0
        %2765 = vmatpush2.bf16.xpose.msra.mxu0 0
        %2766 = vmatprep.mubr.bf16.mxu0 0
        %2767 = vmatmul.mubr.bf16.gmra.mxu0 %v2695
        %v2768 = vpop.f32.mrf.mxu0
        %v2769 = vadd.f32 0.0, %v2768
        %v2770 = vpop.f32.mrf.mxu0
        %v2771 = vpop.f32.mrf.mxu0
        %v2772 = vpop.f32.mrf.mxu0
        %2773 = vdwg.mxu0
        %v2774 = vmul.f32 %v2769, 0.17677669
        %v2775 = vadd.f32 %v2774, %v941
        %v2776 = vsel %vm1495, %v2775, -inf
        %2777 = vmax.xlane.f32.xlu0 %v2776
        %v2778 = vpop.xlane.xlu0 %2777
        %v2779 = vsub.f32 %v2775, %v2778
        %v2780 = vmul.f32 %v2779, 1.442695
        %v2781 = vpow.pop %v2780
        %v2782 = vsel %vm1495, %v2781, 0.0
        %2783 = vadd.xlane.f32.xlu0 %v2782
        %v2784 = vpop.xlane.xlu0 %2783
        %v2785 = vrcp.pop %v2784
        %v2786 = vmul.f32 %v2781, %v2785
        %v2787 = vpack.c.bf16 %v2786, %v2786
        %v2789 = vsel %vm1495, %v2787, 0
        %v2792 = vsel %vm1511, %v2697, 0
        %2794 = vmatprep.subr.bf16.mxu0 0
        %2795 = vmatpush1.bf16.msra.mxu0 0
        %2796 = vmatprep.subr.bf16.mxu0 0
        %2797 = vmatpush1.bf16.msra.mxu0 0
        %2798 = vmatprep.subr.bf16.mxu0 0
        %2799 = vmatpush1.bf16.msra.mxu0 0
        %2800 = vmatprep.subr.bf16.mxu0 0
        %2801 = vmatpush1.bf16.msra.mxu0 0
        %2802 = vmatprep.subr.bf16.mxu0 0
        %2803 = vmatpush1.bf16.msra.mxu0 0
        %2804 = vmatprep.subr.bf16.mxu0 0
        %2805 = vmatpush1.bf16.msra.mxu0 0
        %2806 = vmatprep.subr.bf16.mxu0 0
        %2807 = vmatpush1.bf16.msra.mxu0 0
        %2808 = vmatprep.subr.bf16.mxu0 0
        %2809 = vmatpush1.bf16.msra.mxu0 %v2792
        %2810 = vmatprep.subr.bf16.mxu0 0
        %2811 = vmatpush2.bf16.msra.mxu0 0
        %2812 = vmatprep.subr.bf16.mxu0 0
        %2813 = vmatpush2.bf16.msra.mxu0 0
        %2814 = vmatprep.subr.bf16.mxu0 0
        %2815 = vmatpush2.bf16.msra.mxu0 0
        %2816 = vmatprep.subr.bf16.mxu0 0
        %2817 = vmatpush2.bf16.msra.mxu0 0
        %2818 = vmatprep.subr.bf16.mxu0 0
        %2819 = vmatpush2.bf16.msra.mxu0 0
        %2820 = vmatprep.subr.bf16.mxu0 0
        %2821 = vmatpush2.bf16.msra.mxu0 0
        %2822 = vmatprep.subr.bf16.mxu0 0
        %2823 = vmatpush2.bf16.msra.mxu0 0
        %2824 = vmatprep.subr.bf16.mxu0 0
        %2825 = vmatpush2.bf16.msra.mxu0 0
        %2826 = vmatprep.mubr.bf16.mxu0 0
        %2827 = vmatmul.mubr.bf16.gmra.mxu0 %v2789
        %v2828 = vpop.f32.mrf.mxu0
        %v2829 = vadd.f32 0.0, %v2828
        %v2830 = vpop.f32.mrf.mxu0
        %v2831 = vpop.f32.mrf.mxu0
        %v2832 = vpop.f32.mrf.mxu0
        %2833 = vdwg.mxu0
        %v2834 = vpack.c.bf16 %v2829, %v2829
        %2835 = vmatprep.subr.bf16.mxu0 0
        %2836 = vmatpush1.bf16.xpose.msra.mxu0 0
        %2837 = vmatprep.subr.bf16.mxu0 0
        %2838 = vmatpush1.bf16.xpose.msra.mxu0 0
        %2839 = vmatprep.subr.bf16.mxu0 0
        %2840 = vmatpush1.bf16.xpose.msra.mxu0 0
        %2841 = vmatprep.subr.bf16.mxu0 0
        %2842 = vmatpush1.bf16.xpose.msra.mxu0 0
        %2843 = vmatprep.subr.bf16.mxu0 0
        %2844 = vmatpush1.bf16.xpose.msra.mxu0 0
        %2845 = vmatprep.subr.bf16.mxu0 0
        %2846 = vmatpush1.bf16.xpose.msra.mxu0 0
        %2847 = vmatprep.subr.bf16.mxu0 0
        %2848 = vmatpush1.bf16.xpose.msra.mxu0 0
        %2849 = vmatprep.subr.bf16.mxu0 0
        %2850 = vmatpush1.bf16.xpose.msra.mxu0 %v2699
        %2851 = vmatprep.subr.bf16.mxu0 0
        %2852 = vmatpush2.bf16.xpose.msra.mxu0 0
        %2853 = vmatprep.subr.bf16.mxu0 0
        %2854 = vmatpush2.bf16.xpose.msra.mxu0 0
        %2855 = vmatprep.subr.bf16.mxu0 0
        %2856 = vmatpush2.bf16.xpose.msra.mxu0 0
        %2857 = vmatprep.subr.bf16.mxu0 0
        %2858 = vmatpush2.bf16.xpose.msra.mxu0 0
        %2859 = vmatprep.subr.bf16.mxu0 0
        %2860 = vmatpush2.bf16.xpose.msra.mxu0 0
        %2861 = vmatprep.subr.bf16.mxu0 0
        %2862 = vmatpush2.bf16.xpose.msra.mxu0 0
        %2863 = vmatprep.subr.bf16.mxu0 0
        %2864 = vmatpush2.bf16.xpose.msra.mxu0 0
        %2865 = vmatprep.subr.bf16.mxu0 0
        %2866 = vmatpush2.bf16.xpose.msra.mxu0 0
        %2867 = vmatprep.mubr.bf16.mxu0 0
        %2868 = vmatmul.mubr.bf16.gmra.mxu0 %v2698
        %v2869 = vpop.f32.mrf.mxu0
        %v2870 = vadd.f32 0.0, %v2869
        %v2871 = vpop.f32.mrf.mxu0
        %v2872 = vpop.f32.mrf.mxu0
        %v2873 = vpop.f32.mrf.mxu0
        %2874 = vdwg.mxu0
        %v2875 = vmul.f32 %v2870, 0.17677669
        %v2876 = vadd.f32 %v2875, %v941
        %v2877 = vsel %vm1495, %v2876, -inf
        %2878 = vmax.xlane.f32.xlu0 %v2877
        %v2879 = vpop.xlane.xlu0 %2878
        %v2880 = vsub.f32 %v2876, %v2879
        %v2881 = vmul.f32 %v2880, 1.442695
        %v2882 = vpow.pop %v2881
        %v2883 = vsel %vm1495, %v2882, 0.0
        %2884 = vadd.xlane.f32.xlu0 %v2883
        %v2885 = vpop.xlane.xlu0 %2884
        %v2886 = vrcp.pop %v2885
        %v2887 = vmul.f32 %v2882, %v2886
        %v2888 = vpack.c.bf16 %v2887, %v2887
        %v2890 = vsel %vm1495, %v2888, 0
        %v2893 = vsel %vm1511, %v2700, 0
        %2895 = vmatprep.subr.bf16.mxu0 0
        %2896 = vmatpush1.bf16.msra.mxu0 0
        %2897 = vmatprep.subr.bf16.mxu0 0
        %2898 = vmatpush1.bf16.msra.mxu0 0
        %2899 = vmatprep.subr.bf16.mxu0 0
        %2900 = vmatpush1.bf16.msra.mxu0 0
        %2901 = vmatprep.subr.bf16.mxu0 0
        %2902 = vmatpush1.bf16.msra.mxu0 0
        %2903 = vmatprep.subr.bf16.mxu0 0
        %2904 = vmatpush1.bf16.msra.mxu0 0
        %2905 = vmatprep.subr.bf16.mxu0 0
        %2906 = vmatpush1.bf16.msra.mxu0 0
        %2907 = vmatprep.subr.bf16.mxu0 0
        %2908 = vmatpush1.bf16.msra.mxu0 0
        %2909 = vmatprep.subr.bf16.mxu0 0
        %2910 = vmatpush1.bf16.msra.mxu0 %v2893
        %2911 = vmatprep.subr.bf16.mxu0 0
        %2912 = vmatpush2.bf16.msra.mxu0 0
        %2913 = vmatprep.subr.bf16.mxu0 0
        %2914 = vmatpush2.bf16.msra.mxu0 0
        %2915 = vmatprep.subr.bf16.mxu0 0
        %2916 = vmatpush2.bf16.msra.mxu0 0
        %2917 = vmatprep.subr.bf16.mxu0 0
        %2918 = vmatpush2.bf16.msra.mxu0 0
        %2919 = vmatprep.subr.bf16.mxu0 0
        %2920 = vmatpush2.bf16.msra.mxu0 0
        %2921 = vmatprep.subr.bf16.mxu0 0
        %2922 = vmatpush2.bf16.msra.mxu0 0
        %2923 = vmatprep.subr.bf16.mxu0 0
        %2924 = vmatpush2.bf16.msra.mxu0 0
        %2925 = vmatprep.subr.bf16.mxu0 0
        %2926 = vmatpush2.bf16.msra.mxu0 0
        %2927 = vmatprep.mubr.bf16.mxu0 0
        %2928 = vmatmul.mubr.bf16.gmra.mxu0 %v2890
        %v2929 = vpop.f32.mrf.mxu0
        %v2930 = vadd.f32 0.0, %v2929
        %v2931 = vpop.f32.mrf.mxu0
        %v2932 = vpop.f32.mrf.mxu0
        %v2933 = vpop.f32.mrf.mxu0
        %2934 = vdwg.mxu0
        %v2935 = vpack.c.bf16 %v2930, %v2930
        %v2952 = vunpack.c.l.b16 %v2718
        %v2953 = vunpack.c.l.b16 %v2719
        %v2954 = vunpack.c.l.b16 %v2720
        %v2955 = vunpack.c.l.b16 %v2721
        %v2956 = vunpack.c.l.b16 %v2722
        %v2957 = vunpack.c.l.b16 %v2723
        %v2958 = vunpack.c.l.b16 %v2724
        %v2959 = vunpack.c.l.b16 %v2725
        %v2960 = vunpack.c.l.b16 %v2726
        %v2961 = vunpack.c.l.b16 %v2727
        %v2962 = vunpack.c.l.b16 %v2728
        %v2963 = vunpack.c.l.b16 %v2729
        %v2964 = vunpack.c.l.b16 %v2730
        %v2965 = vunpack.c.l.b16 %v2731
        %v2966 = vunpack.c.l.b16 %v2732
        %v2967 = vunpack.c.l.b16 %v2733
        %v2968 = vpack.c.b16 %v2953, %v2952
        %v2969 = vpack.c.b16 %v2955, %v2954
        %v2970 = vpack.c.b16 %v2957, %v2956
        %v2971 = vpack.c.b16 %v2959, %v2958
        %v2972 = vpack.c.b16 %v2961, %v2960
        %v2973 = vpack.c.b16 %v2963, %v2962
        %v2974 = vpack.c.b16 %v2965, %v2964
        %v2975 = vpack.c.b16 %v2967, %v2966
        %2984 = vmatprep.subr.bf16.mxu0 0
        %2985 = vmatpush1.bf16.msra.mxu0 %v2975
        %2986 = vmatprep.subr.bf16.mxu0 0
        %2987 = vmatpush1.bf16.msra.mxu0 %v2974
        %2988 = vmatprep.subr.bf16.mxu0 0
        %2989 = vmatpush1.bf16.msra.mxu0 %v2973
        %2990 = vmatprep.subr.bf16.mxu0 0
        %2991 = vmatpush1.bf16.msra.mxu0 %v2972
        %2992 = vmatprep.subr.bf16.mxu0 0
        %2993 = vmatpush1.bf16.msra.mxu0 %v2971
        %2994 = vmatprep.subr.bf16.mxu0 0
        %2995 = vmatpush1.bf16.msra.mxu0 %v2970
        %2996 = vmatprep.subr.bf16.mxu0 0
        %2997 = vmatpush1.bf16.msra.mxu0 %v2969
        %2998 = vmatprep.subr.bf16.mxu0 0
        %2999 = vmatpush1.bf16.msra.mxu0 %v2968
        %3000 = vmatprep.subr.bf16.mxu0 0
        %3001 = vmatpush2.bf16.msra.mxu0 0
        %3002 = vmatprep.subr.bf16.mxu0 0
        %3003 = vmatpush2.bf16.msra.mxu0 0
        %3004 = vmatprep.subr.bf16.mxu0 0
        %3005 = vmatpush2.bf16.msra.mxu0 0
        %3006 = vmatprep.subr.bf16.mxu0 0
        %3007 = vmatpush2.bf16.msra.mxu0 0
        %3008 = vmatprep.subr.bf16.mxu0 0
        %3009 = vmatpush2.bf16.msra.mxu0 0
        %3010 = vmatprep.subr.bf16.mxu0 0
        %3011 = vmatpush2.bf16.msra.mxu0 0
        %3012 = vmatprep.subr.bf16.mxu0 0
        %3013 = vmatpush2.bf16.msra.mxu0 0
        %3014 = vmatprep.subr.bf16.mxu0 0
        %3015 = vmatpush2.bf16.msra.mxu0 0
        %3016 = vmatprep.mubr.bf16.mxu0 0
        %3017 = vmatmul.mubr.bf16.gmra.mxu0 %v2935
        %v3018 = vpop.f32.mrf.mxu0
        %v3019 = vadd.f32 0.0, %v3018
        %v3020 = vpop.f32.mrf.mxu0
        %v3021 = vpop.f32.mrf.mxu0
        %v3022 = vpop.f32.mrf.mxu0
        %3023 = vdwg.mxu0
        %v3040 = vunpack.c.l.b16 %v2702
        %v3041 = vunpack.c.l.b16 %v2703
        %v3042 = vunpack.c.l.b16 %v2704
        %v3043 = vunpack.c.l.b16 %v2705
        %v3044 = vunpack.c.l.b16 %v2706
        %v3045 = vunpack.c.l.b16 %v2707
        %v3046 = vunpack.c.l.b16 %v2708
        %v3047 = vunpack.c.l.b16 %v2709
        %v3048 = vunpack.c.l.b16 %v2710
        %v3049 = vunpack.c.l.b16 %v2711
        %v3050 = vunpack.c.l.b16 %v2712
        %v3051 = vunpack.c.l.b16 %v2713
        %v3052 = vunpack.c.l.b16 %v2714
        %v3053 = vunpack.c.l.b16 %v2715
        %v3054 = vunpack.c.l.b16 %v2716
        %v3055 = vunpack.c.l.b16 %v2717
        %v3056 = vpack.c.b16 %v3041, %v3040
        %v3057 = vpack.c.b16 %v3043, %v3042
        %v3058 = vpack.c.b16 %v3045, %v3044
        %v3059 = vpack.c.b16 %v3047, %v3046
        %v3060 = vpack.c.b16 %v3049, %v3048
        %v3061 = vpack.c.b16 %v3051, %v3050
        %v3062 = vpack.c.b16 %v3053, %v3052
        %v3063 = vpack.c.b16 %v3055, %v3054
        %3072 = vmatprep.subr.bf16.mxu0 0
        %3073 = vmatpush1.bf16.msra.mxu0 %v3063
        %3074 = vmatprep.subr.bf16.mxu0 0
        %3075 = vmatpush1.bf16.msra.mxu0 %v3062
        %3076 = vmatprep.subr.bf16.mxu0 0
        %3077 = vmatpush1.bf16.msra.mxu0 %v3061
        %3078 = vmatprep.subr.bf16.mxu0 0
        %3079 = vmatpush1.bf16.msra.mxu0 %v3060
        %3080 = vmatprep.subr.bf16.mxu0 0
        %3081 = vmatpush1.bf16.msra.mxu0 %v3059
        %3082 = vmatprep.subr.bf16.mxu0 0
        %3083 = vmatpush1.bf16.msra.mxu0 %v3058
        %3084 = vmatprep.subr.bf16.mxu0 0
        %3085 = vmatpush1.bf16.msra.mxu0 %v3057
        %3086 = vmatprep.subr.bf16.mxu0 0
        %3087 = vmatpush1.bf16.msra.mxu0 %v3056
        %3088 = vmatprep.subr.bf16.mxu0 0
        %3089 = vmatpush2.bf16.msra.mxu0 0
        %3090 = vmatprep.subr.bf16.mxu0 0
        %3091 = vmatpush2.bf16.msra.mxu0 0
        %3092 = vmatprep.subr.bf16.mxu0 0
        %3093 = vmatpush2.bf16.msra.mxu0 0
        %3094 = vmatprep.subr.bf16.mxu0 0
        %3095 = vmatpush2.bf16.msra.mxu0 0
        %3096 = vmatprep.subr.bf16.mxu0 0
        %3097 = vmatpush2.bf16.msra.mxu0 0
        %3098 = vmatprep.subr.bf16.mxu0 0
        %3099 = vmatpush2.bf16.msra.mxu0 0
        %3100 = vmatprep.subr.bf16.mxu0 0
        %3101 = vmatpush2.bf16.msra.mxu0 0
        %3102 = vmatprep.subr.bf16.mxu0 0
        %3103 = vmatpush2.bf16.msra.mxu0 0
        %3104 = vmatprep.mubr.bf16.mxu0 0
        %3105 = vmatmul.mubr.bf16.gmra.mxu0 %v2834
        %v3106 = vpop.f32.mrf.mxu0
        %v3107 = vadd.f32 %v3019, %v3106
        %v3108 = vpop.f32.mrf.mxu0
        %v3109 = vpop.f32.mrf.mxu0
        %v3110 = vpop.f32.mrf.mxu0
        %3111 = vdwg.mxu0
        %v3112 = vadd.f32 %v2217, %v3107
        %s3113 = scalar_lea.vmem [#allocation7], 1
        %v3114 = vld [vmem:[%s3113] sm:$0x1]
        %v3116 = vlaneseq
        %v3117 = vshrl.u32 %v3116, 7
        %v3118 = vsub.s32 0, %v3117
        %v3119 = vrot.slane %v3114, %v3118
        %v3121 = vadd.f32 %v3112, %v3119
        %s3122 = scalar_lea.vmem %s12, 1
        %v3123 = vld [vmem:[%s3122] sm:$0x1]
        %s3124 = scalar_lea.vmem [#allocation9], 1
        %v3125 = vld [vmem:[%s3124] sm:$0x1]
        %3126 = vadd.xlane.f32.xlu0 %v3121
        %v3127 = vpop.xlane.xlu0 %3126
        %v3128 = vmul.f32 %v3127, 0.015625
        %v3129 = vmul.f32 %v3121, %v3121
        %3130 = vadd.xlane.f32.xlu0 %v3129
        %v3131 = vpop.xlane.xlu0 %3130
        %v3132 = vmul.f32 %v3131, 0.015625
        %v3133 = vmul.f32 %v3128, %v3128
        %v3134 = vsub.f32 %v3132, %v3133
        %v3135 = vsub.f32 %v3121, %v3128
        %v3136 = vadd.f32 %v3134, 1e-05
        %v3137 = vrsqrt.pop %v3136
        %v3138 = vmul.f32 %v3135, %v3137
        %v3140 = vlaneseq
        %v3141 = vshrl.u32 %v3140, 7
        %v3142 = vsub.s32 0, %v3141
        %v3143 = vrot.slane %v3123, %v3142
        %v3145 = vmul.f32 %v3138, %v3143
        %v3147 = vlaneseq
        %v3148 = vshrl.u32 %v3147, 7
        %v3149 = vsub.s32 0, %v3148
        %v3150 = vrot.slane %v3125, %v3149
        %v3152 = vadd.f32 %v3145, %v3150
        %s3153 = scalar_lea.vmem %s14, 128
        %v3154 = vld [vmem:[%s3153] sm:$0xff]
        %v3155 = vld [vmem:[%s3153 + $0x8] sm:$0xff]
        %v3156 = vld [vmem:[%s3153 + $0x10] sm:$0xff]
        %v3157 = vld [vmem:[%s3153 + $0x18] sm:$0xff]
        %v3158 = vld [vmem:[%s3153 + $0x20] sm:$0xff]
        %v3159 = vld [vmem:[%s3153 + $0x28] sm:$0xff]
        %v3160 = vld [vmem:[%s3153 + $0x30] sm:$0xff]
        %v3161 = vld [vmem:[%s3153 + $0x38] sm:$0xff]
        %v3162 = vld [vmem:[%s3153 + $0x40] sm:$0xff]
        %v3163 = vld [vmem:[%s3153 + $0x48] sm:$0xff]
        %v3164 = vld [vmem:[%s3153 + $0x50] sm:$0xff]
        %v3165 = vld [vmem:[%s3153 + $0x58] sm:$0xff]
        %v3166 = vld [vmem:[%s3153 + $0x60] sm:$0xff]
        %v3167 = vld [vmem:[%s3153 + $0x68] sm:$0xff]
        %v3168 = vld [vmem:[%s3153 + $0x70] sm:$0xff]
        %v3169 = vld [vmem:[%s3153 + $0x78] sm:$0xff]
        %v3170 = vpack.c.bf16 %v3152, %v3152
        %s3171 = scalar_lea.vmem %s15, 2
        %v3172 = vld [vmem:[%s3171] sm:$0x3]
        %v3174 = vlaneseq
        %v3175 = vshrl.u32 %v3174, 7
        %v3176 = vsub.s32 0, %v3175
        %v3177 = vrot.slane %v3172, %v3176
        %v3178 = vlaneseq
        %v3179 = vshrl.u32 %v3178, 7
        %v3180 = vsub.s32 1, %v3179
        %v3181 = vrot.slane %v3172, %v3180
        %v3200 = vunpack.c.l.b16 %v3154
        %v3201 = vunpack.c.h.b16 %v3154
        %v3202 = vunpack.c.l.b16 %v3155
        %v3203 = vunpack.c.h.b16 %v3155
        %v3204 = vunpack.c.l.b16 %v3156
        %v3205 = vunpack.c.h.b16 %v3156
        %v3206 = vunpack.c.l.b16 %v3157
        %v3207 = vunpack.c.h.b16 %v3157
        %v3208 = vunpack.c.l.b16 %v3158
        %v3209 = vunpack.c.h.b16 %v3158
        %v3210 = vunpack.c.l.b16 %v3159
        %v3211 = vunpack.c.h.b16 %v3159
        %v3212 = vunpack.c.l.b16 %v3160
        %v3213 = vunpack.c.h.b16 %v3160
        %v3214 = vunpack.c.l.b16 %v3161
        %v3215 = vunpack.c.h.b16 %v3161
        %v3216 = vunpack.c.l.b16 %v3162
        %v3217 = vunpack.c.h.b16 %v3162
        %v3218 = vunpack.c.l.b16 %v3163
        %v3219 = vunpack.c.h.b16 %v3163
        %v3220 = vunpack.c.l.b16 %v3164
        %v3221 = vunpack.c.h.b16 %v3164
        %v3222 = vunpack.c.l.b16 %v3165
        %v3223 = vunpack.c.h.b16 %v3165
        %v3224 = vunpack.c.l.b16 %v3166
        %v3225 = vunpack.c.h.b16 %v3166
        %v3226 = vunpack.c.l.b16 %v3167
        %v3227 = vunpack.c.h.b16 %v3167
        %v3228 = vunpack.c.l.b16 %v3168
        %v3229 = vunpack.c.h.b16 %v3168
        %v3230 = vunpack.c.l.b16 %v3169
        %v3231 = vunpack.c.h.b16 %v3169
        %v3232 = vpack.c.b16 %v3202, %v3200
        %v3233 = vpack.c.b16 %v3203, %v3201
        %v3234 = vpack.c.b16 %v3206, %v3204
        %v3235 = vpack.c.b16 %v3207, %v3205
        %v3236 = vpack.c.b16 %v3210, %v3208
        %v3237 = vpack.c.b16 %v3211, %v3209
        %v3238 = vpack.c.b16 %v3214, %v3212
        %v3239 = vpack.c.b16 %v3215, %v3213
        %v3240 = vpack.c.b16 %v3218, %v3216
        %v3241 = vpack.c.b16 %v3219, %v3217
        %v3242 = vpack.c.b16 %v3222, %v3220
        %v3243 = vpack.c.b16 %v3223, %v3221
        %v3244 = vpack.c.b16 %v3226, %v3224
        %v3245 = vpack.c.b16 %v3227, %v3225
        %v3246 = vpack.c.b16 %v3230, %v3228
        %v3247 = vpack.c.b16 %v3231, %v3229
        %3264 = vmatprep.subr.bf16.mxu0 %v3247
        %3265 = vmatpush1.bf16.msra.mxu0 %v3246
        %3266 = vmatprep.subr.bf16.mxu0 %v3245
        %3267 = vmatpush1.bf16.msra.mxu0 %v3244
        %3268 = vmatprep.subr.bf16.mxu0 %v3243
        %3269 = vmatpush1.bf16.msra.mxu0 %v3242
        %3270 = vmatprep.subr.bf16.mxu0 %v3241
        %3271 = vmatpush1.bf16.msra.mxu0 %v3240
        %3272 = vmatprep.subr.bf16.mxu0 %v3239
        %3273 = vmatpush1.bf16.msra.mxu0 %v3238
        %3274 = vmatprep.subr.bf16.mxu0 %v3237
        %3275 = vmatpush1.bf16.msra.mxu0 %v3236
        %3276 = vmatprep.subr.bf16.mxu0 %v3235
        %3277 = vmatpush1.bf16.msra.mxu0 %v3234
        %3278 = vmatprep.subr.bf16.mxu0 %v3233
        %3279 = vmatpush1.bf16.msra.mxu0 %v3232
        %3280 = vmatprep.subr.bf16.mxu0 0
        %3281 = vmatpush2.bf16.msra.mxu0 0
        %3282 = vmatprep.subr.bf16.mxu0 0
        %3283 = vmatpush2.bf16.msra.mxu0 0
        %3284 = vmatprep.subr.bf16.mxu0 0
        %3285 = vmatpush2.bf16.msra.mxu0 0
        %3286 = vmatprep.subr.bf16.mxu0 0
        %3287 = vmatpush2.bf16.msra.mxu0 0
        %3288 = vmatprep.subr.bf16.mxu0 0
        %3289 = vmatpush2.bf16.msra.mxu0 0
        %3290 = vmatprep.subr.bf16.mxu0 0
        %3291 = vmatpush2.bf16.msra.mxu0 0
        %3292 = vmatprep.subr.bf16.mxu0 0
        %3293 = vmatpush2.bf16.msra.mxu0 0
        %3294 = vmatprep.subr.bf16.mxu0 0
        %3295 = vmatpush2.bf16.msra.mxu0 0
        %3296 = vmatprep.mubr.bf16.mxu0 0
        %3297 = vmatmul.mubr.bf16.gmra.mxu0 %v3170
        %v3298 = vpop.f32.mrf.mxu0
        %v3299 = vadd.f32 %v3177, %v3298
        %v3300 = vpop.f32.mrf.mxu0
        %v3301 = vadd.f32 %v3181, %v3300
        %v3302 = vpop.f32.mrf.mxu0
        %v3303 = vpop.f32.mrf.mxu0
        %3304 = vdwg.mxu0
        %v3305 = vmul.f32 %v3299, 0.5
        %v3306 = vmul.f32 %v3301, 0.5
        %v3307 = vmul.f32 %v3299, 0.044715
        %v3308 = vmul.f32 %v3301, 0.044715
        %v3309 = vmul.f32 %v3307, %v3299
        %v3310 = vmul.f32 %v3308, %v3301
        %v3311 = vmul.f32 %v3309, %v3299
        %v3312 = vmul.f32 %v3310, %v3301
        %v3313 = vadd.f32 %v3299, %v3311
        %v3314 = vadd.f32 %v3301, %v3312
        %v3315 = vmul.f32 %v3313, 0.7978846
        %v3316 = vmul.f32 %v3314, 0.7978846
        %v3317 = vtanh.pop %v3315
        %v3318 = vtanh.pop %v3316
        %v3319 = vadd.f32 %v3317, 1.0
        %v3320 = vadd.f32 %v3318, 1.0
        %v3321 = vmul.f32 %v3305, %v3319
        %v3322 = vmul.f32 %v3306, %v3320
        %s3323 = scalar_lea.vmem [#allocation10], 128
        %v3324 = vld [vmem:[%s3323] sm:$0xf]
        %v3325 = vld [vmem:[%s3323 + $0x4] sm:$0xf]
        %v3326 = vld [vmem:[%s3323 + $0x8] sm:$0xf]
        %v3327 = vld [vmem:[%s3323 + $0xc] sm:$0xf]
        %v3328 = vld [vmem:[%s3323 + $0x10] sm:$0xf]
        %v3329 = vld [vmem:[%s3323 + $0x14] sm:$0xf]
        %v3330 = vld [vmem:[%s3323 + $0x18] sm:$0xf]
        %v3331 = vld [vmem:[%s3323 + $0x1c] sm:$0xf]
        %v3332 = vld [vmem:[%s3323 + $0x20] sm:$0xf]
        %v3333 = vld [vmem:[%s3323 + $0x24] sm:$0xf]
        %v3334 = vld [vmem:[%s3323 + $0x28] sm:$0xf]
        %v3335 = vld [vmem:[%s3323 + $0x2c] sm:$0xf]
        %v3336 = vld [vmem:[%s3323 + $0x30] sm:$0xf]
        %v3337 = vld [vmem:[%s3323 + $0x34] sm:$0xf]
        %v3338 = vld [vmem:[%s3323 + $0x38] sm:$0xf]
        %v3339 = vld [vmem:[%s3323 + $0x3c] sm:$0xf]
        %v3340 = vld [vmem:[%s3323 + $0x40] sm:$0xf]
        %v3341 = vld [vmem:[%s3323 + $0x44] sm:$0xf]
        %v3342 = vld [vmem:[%s3323 + $0x48] sm:$0xf]
        %v3343 = vld [vmem:[%s3323 + $0x4c] sm:$0xf]
        %v3344 = vld [vmem:[%s3323 + $0x50] sm:$0xf]
        %v3345 = vld [vmem:[%s3323 + $0x54] sm:$0xf]
        %v3346 = vld [vmem:[%s3323 + $0x58] sm:$0xf]
        %v3347 = vld [vmem:[%s3323 + $0x5c] sm:$0xf]
        %v3348 = vld [vmem:[%s3323 + $0x60] sm:$0xf]
        %v3349 = vld [vmem:[%s3323 + $0x64] sm:$0xf]
        %v3350 = vld [vmem:[%s3323 + $0x68] sm:$0xf]
        %v3351 = vld [vmem:[%s3323 + $0x6c] sm:$0xf]
        %v3352 = vld [vmem:[%s3323 + $0x70] sm:$0xf]
        %v3353 = vld [vmem:[%s3323 + $0x74] sm:$0xf]
        %v3354 = vld [vmem:[%s3323 + $0x78] sm:$0xf]
        %v3355 = vld [vmem:[%s3323 + $0x7c] sm:$0xf]
        %v3356 = vpack.c.bf16 %v3321, %v3321
        %v3357 = vpack.c.bf16 %v3322, %v3322
        %v3390 = vunpack.c.l.b16 %v3324
        %v3391 = vunpack.c.l.b16 %v3325
        %v3392 = vunpack.c.l.b16 %v3326
        %v3393 = vunpack.c.l.b16 %v3327
        %v3394 = vunpack.c.l.b16 %v3328
        %v3395 = vunpack.c.l.b16 %v3329
        %v3396 = vunpack.c.l.b16 %v3330
        %v3397 = vunpack.c.l.b16 %v3331
        %v3398 = vunpack.c.l.b16 %v3332
        %v3399 = vunpack.c.l.b16 %v3333
        %v3400 = vunpack.c.l.b16 %v3334
        %v3401 = vunpack.c.l.b16 %v3335
        %v3402 = vunpack.c.l.b16 %v3336
        %v3403 = vunpack.c.l.b16 %v3337
        %v3404 = vunpack.c.l.b16 %v3338
        %v3405 = vunpack.c.l.b16 %v3339
        %v3406 = vunpack.c.l.b16 %v3340
        %v3407 = vunpack.c.l.b16 %v3341
        %v3408 = vunpack.c.l.b16 %v3342
        %v3409 = vunpack.c.l.b16 %v3343
        %v3410 = vunpack.c.l.b16 %v3344
        %v3411 = vunpack.c.l.b16 %v3345
        %v3412 = vunpack.c.l.b16 %v3346
        %v3413 = vunpack.c.l.b16 %v3347
        %v3414 = vunpack.c.l.b16 %v3348
        %v3415 = vunpack.c.l.b16 %v3349
        %v3416 = vunpack.c.l.b16 %v3350
        %v3417 = vunpack.c.l.b16 %v3351
        %v3418 = vunpack.c.l.b16 %v3352
        %v3419 = vunpack.c.l.b16 %v3353
        %v3420 = vunpack.c.l.b16 %v3354
        %v3421 = vunpack.c.l.b16 %v3355
        %v3422 = vpack.c.b16 %v3391, %v3390
        %v3423 = vpack.c.b16 %v3393, %v3392
        %v3424 = vpack.c.b16 %v3395, %v3394
        %v3425 = vpack.c.b16 %v3397, %v3396
        %v3426 = vpack.c.b16 %v3399, %v3398
        %v3427 = vpack.c.b16 %v3401, %v3400
        %v3428 = vpack.c.b16 %v3403, %v3402
        %v3429 = vpack.c.b16 %v3405, %v3404
        %v3430 = vpack.c.b16 %v3407, %v3406
        %v3431 = vpack.c.b16 %v3409, %v3408
        %v3432 = vpack.c.b16 %v3411, %v3410
        %v3433 = vpack.c.b16 %v3413, %v3412
        %v3434 = vpack.c.b16 %v3415, %v3414
        %v3435 = vpack.c.b16 %v3417, %v3416
        %v3436 = vpack.c.b16 %v3419, %v3418
        %v3437 = vpack.c.b16 %v3421, %v3420
        %3454 = vmatprep.subr.bf16.mxu0 0
        %3455 = vmatpush1.bf16.msra.mxu0 %v3429
        %3456 = vmatprep.subr.bf16.mxu0 0
        %3457 = vmatpush1.bf16.msra.mxu0 %v3428
        %3458 = vmatprep.subr.bf16.mxu0 0
        %3459 = vmatpush1.bf16.msra.mxu0 %v3427
        %3460 = vmatprep.subr.bf16.mxu0 0
        %3461 = vmatpush1.bf16.msra.mxu0 %v3426
        %3462 = vmatprep.subr.bf16.mxu0 0
        %3463 = vmatpush1.bf16.msra.mxu0 %v3425
        %3464 = vmatprep.subr.bf16.mxu0 0
        %3465 = vmatpush1.bf16.msra.mxu0 %v3424
        %3466 = vmatprep.subr.bf16.mxu0 0
        %3467 = vmatpush1.bf16.msra.mxu0 %v3423
        %3468 = vmatprep.subr.bf16.mxu0 0
        %3469 = vmatpush1.bf16.msra.mxu0 %v3422
        %3470 = vmatprep.subr.bf16.mxu0 0
        %3471 = vmatpush2.bf16.msra.mxu0 %v3437
        %3472 = vmatprep.subr.bf16.mxu0 0
        %3473 = vmatpush2.bf16.msra.mxu0 %v3436
        %3474 = vmatprep.subr.bf16.mxu0 0
        %3475 = vmatpush2.bf16.msra.mxu0 %v3435
        %3476 = vmatprep.subr.bf16.mxu0 0
        %3477 = vmatpush2.bf16.msra.mxu0 %v3434
        %3478 = vmatprep.subr.bf16.mxu0 0
        %3479 = vmatpush2.bf16.msra.mxu0 %v3433
        %3480 = vmatprep.subr.bf16.mxu0 0
        %3481 = vmatpush2.bf16.msra.mxu0 %v3432
        %3482 = vmatprep.subr.bf16.mxu0 0
        %3483 = vmatpush2.bf16.msra.mxu0 %v3431
        %3484 = vmatprep.subr.bf16.mxu0 0
        %3485 = vmatpush2.bf16.msra.mxu0 %v3430
        %3486 = vmatprep.mubr.bf16.mxu0 %v3357
        %3487 = vmatmul.mubr.bf16.gmra.mxu0 %v3356
        %v3488 = vpop.f32.mrf.mxu0
        %v3489 = vadd.f32 0.0, %v3488
        %v3490 = vpop.f32.mrf.mxu0
        %v3491 = vpop.f32.mrf.mxu0
        %v3492 = vpop.f32.mrf.mxu0
        %3493 = vdwg.mxu0
        %v3494 = vadd.f32 %v3121, %v3489
        %s3495 = scalar_lea.vmem [#allocation12], 1
        %v3496 = vld [vmem:[%s3495] sm:$0x1]
        %v3498 = vlaneseq
        %v3499 = vshrl.u32 %v3498, 7
        %v3500 = vsub.s32 0, %v3499
        %v3501 = vrot.slane %v3496, %v3500
        %v3503 = vadd.f32 %v3494, %v3501
        %v3504 = vld [vmem:[#allocation13] sm:$0x1]
        %v3505 = vld [vmem:[%s19] sm:$0x1]
        %3506 = vadd.xlane.f32.xlu0 %v3503
        %v3507 = vpop.xlane.xlu0 %3506
        %v3508 = vmul.f32 %v3507, 0.015625
        %v3509 = vmul.f32 %v3503, %v3503
        %3510 = vadd.xlane.f32.xlu0 %v3509
        %v3511 = vpop.xlane.xlu0 %3510
        %v3512 = vmul.f32 %v3511, 0.015625
        %v3513 = vmul.f32 %v3508, %v3508
        %v3514 = vsub.f32 %v3512, %v3513
        %v3515 = vsub.f32 %v3503, %v3508
        %v3516 = vadd.f32 %v3514, 1e-05
        %v3517 = vrsqrt.pop %v3516
        %v3518 = vmul.f32 %v3515, %v3517
        %v3520 = vlaneseq
        %v3521 = vshrl.u32 %v3520, 7
        %v3522 = vsub.s32 0, %v3521
        %v3523 = vrot.slane %v3504, %v3522
        %v3525 = vmul.f32 %v3518, %v3523
        %v3527 = vlaneseq
        %v3528 = vshrl.u32 %v3527, 7
        %v3529 = vsub.s32 0, %v3528
        %v3530 = vrot.slane %v3505, %v3529
        %v3532 = vadd.f32 %v3525, %v3530
        %v3533 = vld [vmem:[%s20] sm:$0xf]
        %v3534 = vld [vmem:[%s20 + $0x4] sm:$0xf]
        %v3535 = vld [vmem:[%s20 + $0x8] sm:$0xf]
        %v3536 = vld [vmem:[%s20 + $0xc] sm:$0xf]
        %v3537 = vld [vmem:[%s20 + $0x10] sm:$0xf]
        %v3538 = vld [vmem:[%s20 + $0x14] sm:$0xf]
        %v3539 = vld [vmem:[%s20 + $0x18] sm:$0xf]
        %v3540 = vld [vmem:[%s20 + $0x1c] sm:$0xf]
        %v3541 = vld [vmem:[%s20 + $0x20] sm:$0xf]
        %v3542 = vld [vmem:[%s20 + $0x24] sm:$0xf]
        %v3543 = vld [vmem:[%s20 + $0x28] sm:$0xf]
        %v3544 = vld [vmem:[%s20 + $0x2c] sm:$0xf]
        %v3545 = vld [vmem:[%s20 + $0x30] sm:$0xf]
        %v3546 = vld [vmem:[%s20 + $0x34] sm:$0xf]
        %v3547 = vld [vmem:[%s20 + $0x38] sm:$0xf]
        %v3548 = vld [vmem:[%s20 + $0x3c] sm:$0xf]
        %v3549 = vpack.c.bf16 %v3532, %v3532
        %v3566 = vunpack.c.l.b16 %v3533
        %v3567 = vunpack.c.l.b16 %v3534
        %v3568 = vunpack.c.l.b16 %v3535
        %v3569 = vunpack.c.l.b16 %v3536
        %v3570 = vunpack.c.l.b16 %v3537
        %v3571 = vunpack.c.l.b16 %v3538
        %v3572 = vunpack.c.l.b16 %v3539
        %v3573 = vunpack.c.l.b16 %v3540
        %v3574 = vunpack.c.l.b16 %v3541
        %v3575 = vunpack.c.l.b16 %v3542
        %v3576 = vunpack.c.l.b16 %v3543
        %v3577 = vunpack.c.l.b16 %v3544
        %v3578 = vunpack.c.l.b16 %v3545
        %v3579 = vunpack.c.l.b16 %v3546
        %v3580 = vunpack.c.l.b16 %v3547
        %v3581 = vunpack.c.l.b16 %v3548
        %v3582 = vpack.c.b16 %v3567, %v3566
        %v3583 = vpack.c.b16 %v3569, %v3568
        %v3584 = vpack.c.b16 %v3571, %v3570
        %v3585 = vpack.c.b16 %v3573, %v3572
        %v3586 = vpack.c.b16 %v3575, %v3574
        %v3587 = vpack.c.b16 %v3577, %v3576
        %v3588 = vpack.c.b16 %v3579, %v3578
        %v3589 = vpack.c.b16 %v3581, %v3580
        %3598 = vmatprep.subr.bf16.mxu0 0
        %3599 = vmatpush1.bf16.msra.mxu0 %v3589
        %3600 = vmatprep.subr.bf16.mxu0 0
        %3601 = vmatpush1.bf16.msra.mxu0 %v3588
        %3602 = vmatprep.subr.bf16.mxu0 0
        %3603 = vmatpush1.bf16.msra.mxu0 %v3587
        %3604 = vmatprep.subr.bf16.mxu0 0
        %3605 = vmatpush1.bf16.msra.mxu0 %v3586
        %3606 = vmatprep.subr.bf16.mxu0 0
        %3607 = vmatpush1.bf16.msra.mxu0 %v3585
        %3608 = vmatprep.subr.bf16.mxu0 0
        %3609 = vmatpush1.bf16.msra.mxu0 %v3584
        %3610 = vmatprep.subr.bf16.mxu0 0
        %3611 = vmatpush1.bf16.msra.mxu0 %v3583
        %3612 = vmatprep.subr.bf16.mxu0 0
        %3613 = vmatpush1.bf16.msra.mxu0 %v3582
        %3614 = vmatprep.subr.bf16.mxu0 0
        %3615 = vmatpush2.bf16.msra.mxu0 0
        %3616 = vmatprep.subr.bf16.mxu0 0
        %3617 = vmatpush2.bf16.msra.mxu0 0
        %3618 = vmatprep.subr.bf16.mxu0 0
        %3619 = vmatpush2.bf16.msra.mxu0 0
        %3620 = vmatprep.subr.bf16.mxu0 0
        %3621 = vmatpush2.bf16.msra.mxu0 0
        %3622 = vmatprep.subr.bf16.mxu0 0
        %3623 = vmatpush2.bf16.msra.mxu0 0
        %3624 = vmatprep.subr.bf16.mxu0 0
        %3625 = vmatpush2.bf16.msra.mxu0 0
        %3626 = vmatprep.subr.bf16.mxu0 0
        %3627 = vmatpush2.bf16.msra.mxu0 0
        %3628 = vmatprep.subr.bf16.mxu0 0
        %3629 = vmatpush2.bf16.msra.mxu0 0
        %3630 = vmatprep.mubr.bf16.mxu0 0
        %3631 = vmatmul.mubr.bf16.gmra.mxu0 %v3549
        %v3632 = vpop.f32.mrf.mxu0
        %v3633 = vadd.f32 0.0, %v3632
        %v3634 = vpop.f32.mrf.mxu0
        %v3635 = vpop.f32.mrf.mxu0
        %v3636 = vpop.f32.mrf.mxu0
        %3637 = vdwg.mxu0
        %v3638 = vmul.f32 %v3633, %v3633
        %3639 = vadd.xlane.f32.xlu0 %v3638
        %v3640 = vpop.xlane.xlu0 %3639
        %v3641 = vmax.f32 %v3640, 1e-24
        %v3642 = vrsqrt.pop %v3641
        %v3643 = vmul.f32 %v3633, %v3642
        %3644 = vst [vmem:[%s765] sm:$0xff] %v3643
        %p3645 = scmp.lt.s32.totalorder %s37, 1
        %s3646 = scalar_select %p3645, %s37, 1
        %s3647 = smul.addr %s3646, 8
        %s3648 = scalar_lea.vmem %s21, %s3647
        // Predicated region
        $region137: #{encode_images.1} parent=103 // pred_check
          %p3649 = pneg %p501
        $region138: #{encode_images.1} parent=103 // pred_check_branch
          %3651 = sbr.rel (%p3649) target = $region140
        $region139: #{encode_images.1} parent=103 // pred_region
          _
        $region140: #{encode_images.1} parent=103 // pred_fallthru
          _
      $region104: #{encode_images.1} parent=5 // pred_fallthru
        _
      %p3652 = scmp.le.s32.totalorder 2, %s32
      // Predicated region
      $region141: #{encode_images.1} parent=5 // pred_check
        %p3653 = pneg %p3652
      $region142: #{encode_images.1} parent=5 // pred_check_branch
        %3655 = sbr.rel (%p3653) target = $region144
      $region143: #{encode_images.1} parent=5 // pred_region
        %s3656 = ssub.s32 %s32, 2
        // Predicated region
        $region145: #{encode_images.1} parent=143 // pred_check
          %p3657 = pneg %p507
        $region146: #{encode_images.1} parent=143 // pred_check_branch
          %3659 = sbr.rel (%p3657) target = $region148
        $region147: #{encode_images.1} parent=143 // pred_region
          %p3660 = scmp.lt.s32.totalorder %s38, 1
          %s3661 = scalar_select %p3660, %s38, 1
          %s3662 = smul.addr %s3661, 8
          %s3663 = scalar_lea.vmem %s21, %s3662
        $region148: #{encode_images.1} parent=143 // pred_fallthru
          _
      $region144: #{encode_images.1} parent=5 // pred_fallthru
        _
    $region6: #{encode_images.1} parent=1 // loop_footer
      %s36 = sadd.s32 1, %s32
    $region7: #{encode_images.1} parent=1 // loop_footer_branch
      %31 = sbr.rel target = $region3
    $region8: #{encode_images.1} parent=1 // loop_exit
      _
    %3664 = vsyncpa [#allocation3], 1
    %s3665 = scalar_lea.sflag [#allocation3], 1
    %3666 = vsyncpa %s3665, 1
    %3667 = vsyncpa [#allocation5], 1
    %3668 = vsyncpa [#allocation8], 1
    %3669 = vsyncpa [#allocation11], 1
    %3670 = vsyncpa [#allocation14], 1

</llo_original>
